<compile_context>
chip_gen: v5e
topology: v5e:2x2
jax: 0.10.0
libtpu: 0.0.40
codegen_flags: <defaults>
</compile_context>

<pallas_src>
import functools

import jax
import jax.numpy as jnp
import numpy as np
from jax import lax
from jax.experimental import pallas as pl
from jax.experimental.pallas import tpu as pltpu

# wtpsplit Constants
NEWLINE_INDEX = 0
AUX_OFFSET = 1

LANE = 128  # lane width of one half of the folded [hi | lo] logits table


def _pick_tile_rows(m, cap=1024):
    """Largest tile <= cap dividing M, preferring >= 2 tiles (v7x megacore)."""
    fallback = None
    for tm in (1024, 512, 256, 128, 64, 32, 16, 8):
        if tm <= cap and m % tm == 0:
            if fallback is None:
                fallback = tm
            if m // tm >= 2:
                return tm
    # TODO(synk): pad M to a multiple of 8 for ragged batch*seq instead of
    # falling back to a single whole-array tile.
    return fallback if fallback is not None else m


# ------------------------------------------------------------------ kernel
def _fused_kernel(tab_ref, margin_ref, lab_ref, ids_ref, logits_ref, part_ref,
                  *, num_labels):
    tm = ids_ref.shape[0]
    vocab = tab_ref.shape[0]

    ids = ids_ref[...]                                        # (tm, 1) int32

    # ---- 1) in-register gather: one-hot bf16 MXU matmul vs resident table --
    cols = lax.broadcasted_iota(jnp.int32, (tm, vocab), 1)
    onehot = (cols == ids).astype(jnp.bfloat16)               # (tm, V)
    # Single MXU pass over [hi | lo] (N = 256); recombining halves recovers the
    # f32 folded logits exactly (one nonzero term per row, all others 0.0).
    both = jnp.dot(onehot, tab_ref[...],
                   preferred_element_type=jnp.float32)        # (tm, 2*LANE) f32
    logits = both[:, :LANE] + both[:, LANE:]                  # (tm, LANE) f32

    # ---- 2) unpadded logits writeback (contiguous (tm, L) f32 block) --------
    logits_ref[...] = logits[:, :num_labels]

    # ---- 3) masked BCE-with-logits sentence-loss partials -------------------
    margin = margin_ref[0]                                    # SMEM scalar
    z = logits[:, NEWLINE_INDEX:NEWLINE_INDEX + 1]            # (tm, 1)
    lab = lab_ref[...]                                        # (tm, 1) int32
    mask = (ids != 0).astype(jnp.float32)                     # (tm, 1)
    # sentence_labels = 0.5 - margin + (labels == NEWLINE_INDEX+1) * margin * 2
    y = (0.5 - margin) + (lab == NEWLINE_INDEX + 1).astype(jnp.float32) * (margin * 2.0)
    # stable BCEWithLogits(reduction='none'): max(z,0) - z*y + log1p(exp(-|z|))
    bce = jnp.maximum(z, 0.0) - z * y + jnp.log1p(jnp.exp(-jnp.abs(z)))
    num = jnp.sum(bce * mask)
    den = jnp.sum(mask)

    rows = lax.broadcasted_iota(jnp.int32, (8, LANE), 0)
    part = jnp.where(rows == 0, num, jnp.where(rows == 1, den, 0.0))
    part_ref[...] = part.reshape(1, 8, LANE)


# ------------------------------------------------------------------ wrapper
def model_forward(params, input_ids, labels=None, loss_margin=0.5):
    """Mirrors Model.forward with do_sentence_training=True,
    do_auxiliary_training=False, use_loss_weights=False."""
    B, S = input_ids.shape
    M = B * S
    V, H = params["embedding"].shape
    L = params["w"].shape[1]
    assert L <= LANE

    tm = _pick_tile_rows(M)
    nt = M // tm

    # Fold the classifier head into the table: logits_table = E @ W + b (V, L).
    table = jnp.dot(params["embedding"].astype(jnp.float32),
                    params["w"].astype(jnp.float32),
                    precision=lax.Precision.HIGHEST) + params["b"].astype(jnp.float32)
    table_pad = jnp.zeros((V, LANE), jnp.float32).at[:, :L].set(table)
    # bf16 hi/lo split: one-hot MXU gather then hi+lo reproduces f32 to ~2^-17.
    hi = table_pad.astype(jnp.bfloat16)
    lo = (table_pad - hi.astype(jnp.float32)).astype(jnp.bfloat16)
    tab_cat = jnp.concatenate([hi, lo], axis=1)               # (V, 2*LANE) bf16

    ids_col = input_ids.reshape(M, 1).astype(jnp.int32)
    lab_col = (labels if labels is not None
               else jnp.zeros_like(input_ids)).reshape(M, 1).astype(jnp.int32)
    margin = jnp.full((1,), loss_margin, jnp.float32)

    grid_spec = pltpu.PrefetchScalarGridSpec(
        num_scalar_prefetch=0,
        grid=(nt,),
        in_specs=[
            pl.BlockSpec((V, 2 * LANE), lambda i: (0, 0)),      # folded table (VMEM-resident)
            pl.BlockSpec(memory_space=pltpu.MemorySpace.SMEM),  # loss margin scalar
            pl.BlockSpec((tm, 1), lambda i: (i, 0)),            # labels column
            pl.BlockSpec((tm, 1), lambda i: (i, 0)),            # input_ids column (gather + mask)
        ],
        out_specs=[
            pl.BlockSpec((tm, L), lambda i: (i, 0)),            # unpadded logits (contiguous HBM)
            pl.BlockSpec((1, 8, LANE), lambda i: (i, 0, 0)),    # per-tile loss partials
        ],
    )

    logits_flat, partials = pl.pallas_call(
        functools.partial(_fused_kernel, num_labels=L),
        grid_spec=grid_spec,
        out_shape=(
            jax.ShapeDtypeStruct((M, L), jnp.float32),
            jax.ShapeDtypeStruct((nt, 8, LANE), jnp.float32),
        ),
        compiler_params=pltpu.CompilerParams(
            dimension_semantics=("parallel",),        # megacore sharding on v7x
            vmem_limit_bytes=48 * 1024 * 1024,        # <= v7x physical 64 MiB
        ),
    )(tab_cat, margin, lab_col, ids_col)

    logits = logits_flat.reshape(B, S, L)
    output = {"logits": logits}
    if labels is not None:
        num = jnp.sum(partials[:, 0, 0])
        den = jnp.sum(partials[:, 1, 0])
        # plain division, matching the PyTorch reference (NaN for all-padding)
        output["loss"] = num / den
        # TODO(synk): do_auxiliary_training CrossEntropy branch and
        # use_loss_weights/label_weights are not implemented (module defaults are off).
    return output


# ------------------------------------------------------------------ reference
def model_forward_ref(params, input_ids, labels, loss_margin=0.5):
    B, S = input_ids.shape
    emb = params["embedding"].astype(jnp.float32)
    w = params["w"].astype(jnp.float32)
    b = params["b"].astype(jnp.float32)
    hidden = jnp.take(emb, input_ids.reshape(-1), axis=0)
    logits = (jnp.dot(hidden, w, precision=lax.Precision.HIGHEST) + b).reshape(B, S, -1)
    z = logits[:, :, NEWLINE_INDEX].reshape(-1)
    y = (0.5 - loss_margin) + (labels.reshape(-1) == (NEWLINE_INDEX + 1)).astype(
        jnp.float32) * (loss_margin * 2.0)
    mask = (input_ids.reshape(-1) != 0).astype(jnp.float32)
    bce = jnp.maximum(z, 0.0) - z * y + jnp.log1p(jnp.exp(-jnp.abs(z)))
    loss = jnp.sum(bce * mask) / jnp.sum(mask)
    return {"logits": logits, "loss": loss}


# ------------------------------------------------------------------ main
if __name__ == "__main__":
    key = jax.random.PRNGKey(0)
    k_emb, k_w, k_ids, k_lab = jax.random.split(key, 4)

    batch, seq, hidden, vocab, num_labels = 2, 512, 128, 512, 8

    params = {
        "embedding": jax.random.normal(k_emb, (vocab, hidden), jnp.float32),
        "w": jax.random.normal(k_w, (hidden, num_labels), jnp.float32) * 0.05,
        "b": jnp.zeros((1, num_labels), jnp.float32),
    }

    # token ids in [1, vocab); force a padding tail (id == 0)
    input_ids = jax.random.randint(k_ids, (batch, seq), 1, vocab, dtype=jnp.int32)
    input_ids = input_ids.at[:, -64:].set(0)
    labels = jax.random.randint(k_lab, (batch, seq), 0, num_labels, dtype=jnp.int32)

    out = model_forward(params, input_ids, labels, loss_margin=0.5)
    jax.block_until_ready(out["loss"])
    jax.block_until_ready(out["logits"])

    ref = model_forward_ref(params, input_ids, labels, loss_margin=0.5)
    assert out["logits"].shape == (batch, seq, num_labels)
    assert np.allclose(np.asarray(out["logits"]), np.asarray(ref["logits"]),
                       atol=1e-4, rtol=1e-4), "logits mismatch"
    assert np.allclose(np.asarray(out["loss"]), np.asarray(ref["loss"]),
                       atol=1e-4, rtol=1e-4), "loss mismatch"

    print("KERNEL_OK")
</pallas_src>

<mosaic_0001>
module attributes {stable_mosaic.version = 11 : i64} {
  func.func @_fused_kernel(%arg0: i32, %arg1: memref<512x256xbf16, #tpu.memory_space<vmem>>, %arg2: memref<1xf32, #tpu.memory_space<smem>>, %arg3: memref<512x1xi32, #tpu.memory_space<vmem>>, %arg4: memref<512x1xi32, #tpu.memory_space<vmem>>, %arg5: memref<512x8xf32, #tpu.memory_space<vmem>>, %arg6: memref<1x8x128xf32, #tpu.memory_space<vmem>>) attributes {dimension_semantics = [#tpu.dimension_semantics<parallel>], iteration_bounds = array<i64: 2>, scalar_prefetch = 0 : i64, scratch_operands = 0 : i64, tpu.core_type = #tpu.core_type<tc>, window_params = [{pipeline_mode = #tpu.pipeline_mode<synchronous>, transform_indices = @transform_0, window_bounds = array<i64: 512, 256>}, {transform_indices = @transform_1, window_bounds = array<i64: 1>}, {transform_indices = @transform_2, window_bounds = array<i64: 512, 1>}, {transform_indices = @transform_3, window_bounds = array<i64: 512, 1>}, {transform_indices = @transform_4, window_bounds = array<i64: 512, 8>}, {transform_indices = @transform_5, window_bounds = array<i64: 1, 8, 128>}]} {
    %c0 = arith.constant 0 : index
    %c0_0 = arith.constant 0 : index
    %0 = vector.load %arg4[%c0, %c0_0] : memref<512x1xi32, #tpu.memory_space<vmem>>, vector<512x1xi32>
    %1 = tpu.iota {dimensions = array<i32: 1>} : vector<512x512xi32>
    %2 = vector.broadcast %0 : vector<512x1xi32> to vector<512x512xi32>
    %3 = arith.cmpi eq, %1, %2 : vector<512x512xi32>
    %4 = arith.extui %3 : vector<512x512xi1> to vector<512x512xi32>
    %5 = arith.sitofp %4 : vector<512x512xi32> to vector<512x512xf32>
    %6 = arith.truncf %5 : vector<512x512xf32> to vector<512x512xbf16>
    %c0_1 = arith.constant 0 : index
    %c0_2 = arith.constant 0 : index
    %7 = vector.load %arg1[%c0_1, %c0_2] : memref<512x256xbf16, #tpu.memory_space<vmem>>, vector<512x256xbf16>
    %cst = arith.constant dense<0.000000e+00> : vector<512x256xf32>
    %8 = tpu.matmul %6, %7, %cst {dimension_numbers = #tpu.dot_dimension_numbers<[1], [0], [0], [1], [0, 0, 1, 1], [], []>} : vector<512x512xbf16>, vector<512x256xbf16>, vector<512x256xf32> -> vector<512x256xf32>
    %9 = vector.extract_strided_slice %8 {offsets = [0, 0], sizes = [512, 128], strides = [1, 1]} : vector<512x256xf32> to vector<512x128xf32>
    %10 = vector.extract_strided_slice %8 {offsets = [0, 128], sizes = [512, 128], strides = [1, 1]} : vector<512x256xf32> to vector<512x128xf32>
    %11 = arith.addf %9, %10 : vector<512x128xf32>
    %12 = vector.extract_strided_slice %11 {offsets = [0, 0], sizes = [512, 8], strides = [1, 1]} : vector<512x128xf32> to vector<512x8xf32>
    %c0_3 = arith.constant 0 : index
    %c0_4 = arith.constant 0 : index
    %13 = vector.load %arg5[%c0_3, %c0_4] : memref<512x8xf32, #tpu.memory_space<vmem>>, vector<512x8xf32>
    tpu.vector_store %arg5[%c0_3, %c0_4], %12 {strides = array<i32>} : memref<512x8xf32, #tpu.memory_space<vmem>>, vector<512x8xf32>,
    %c0_5 = arith.constant 0 : index
    %14 = memref.load %arg2[%c0_5] : memref<1xf32, #tpu.memory_space<smem>>
    %15 = vector.extract_strided_slice %11 {offsets = [0, 0], sizes = [512, 1], strides = [1, 1]} : vector<512x128xf32> to vector<512x1xf32>
    %c0_6 = arith.constant 0 : index
    %c0_7 = arith.constant 0 : index
    %16 = vector.load %arg3[%c0_6, %c0_7] : memref<512x1xi32, #tpu.memory_space<vmem>>, vector<512x1xi32>
    %c0_i32 = arith.constant 0 : i32
    %17 = vector.broadcast %c0_i32 : i32 to vector<512x1xi32>
    %18 = arith.cmpi ne, %0, %17 : vector<512x1xi32>
    %19 = arith.extui %18 : vector<512x1xi1> to vector<512x1xi32>
    %20 = arith.sitofp %19 : vector<512x1xi32> to vector<512x1xf32>
    %cst_8 = arith.constant 5.000000e-01 : f32
    %21 = arith.subf %cst_8, %14 : f32
    %c1_i32 = arith.constant 1 : i32
    %22 = vector.broadcast %c1_i32 : i32 to vector<512x1xi32>
    %23 = arith.cmpi eq, %16, %22 : vector<512x1xi32>
    %24 = arith.extui %23 : vector<512x1xi1> to vector<512x1xi32>
    %25 = arith.sitofp %24 : vector<512x1xi32> to vector<512x1xf32>
    %cst_9 = arith.constant 2.000000e+00 : f32
    %26 = arith.mulf %14, %cst_9 : f32
    %27 = vector.broadcast %26 : f32 to vector<512x1xf32>
    %28 = arith.mulf %25, %27 : vector<512x1xf32>
    %29 = vector.broadcast %21 : f32 to vector<512x1xf32>
    %30 = arith.addf %29, %28 : vector<512x1xf32>
    %cst_10 = arith.constant 0.000000e+00 : f32
    %31 = vector.broadcast %cst_10 : f32 to vector<512x1xf32>
    %32 = arith.maximumf %15, %31 : vector<512x1xf32>
    %33 = arith.mulf %15, %30 : vector<512x1xf32>
    %34 = arith.subf %32, %33 : vector<512x1xf32>
    %35 = math.absf %15 : vector<512x1xf32>
    %cst_11 = arith.constant 0.000000e+00 : f32
    %36 = vector.broadcast %cst_11 : f32 to vector<512x1xf32>
    %37 = arith.subf %36, %35 : vector<512x1xf32>
    %38 = math.exp %37 : vector<512x1xf32>
    %39 = math.log1p %38 : vector<512x1xf32>
    %40 = arith.addf %34, %39 : vector<512x1xf32>
    %41 = arith.mulf %40, %20 : vector<512x1xf32>
    %42 = vector.shape_cast %41 : vector<512x1xf32> to vector<1x512x1xf32>
    %cst_12 = arith.constant dense<0.000000e+00> : vector<1xf32>
    %43 = vector.multi_reduction <add>, %42, %cst_12 [1, 2] : vector<1x512x1xf32> to vector<1xf32>
    %44 = vector.shape_cast %43 : vector<1xf32> to vector<1x1x1xf32>
    %45 = vector.extract %44[0, 0, 0] : f32 from vector<1x1x1xf32>
    %46 = vector.shape_cast %20 : vector<512x1xf32> to vector<1x512x1xf32>
    %cst_13 = arith.constant dense<0.000000e+00> : vector<1xf32>
    %47 = vector.multi_reduction <add>, %46, %cst_13 [1, 2] : vector<1x512x1xf32> to vector<1xf32>
    %48 = vector.shape_cast %47 : vector<1xf32> to vector<1x1x1xf32>
    %49 = vector.extract %48[0, 0, 0] : f32 from vector<1x1x1xf32>
    %50 = tpu.iota {dimensions = array<i32: 0>} : vector<8x128xi32>
    %c0_i32_14 = arith.constant 0 : i32
    %51 = vector.broadcast %c0_i32_14 : i32 to vector<8x128xi32>
    %52 = arith.cmpi eq, %50, %51 : vector<8x128xi32>
    %c1_i32_15 = arith.constant 1 : i32
    %53 = vector.broadcast %c1_i32_15 : i32 to vector<8x128xi32>
    %54 = arith.cmpi eq, %50, %53 : vector<8x128xi32>
    %cst_16 = arith.constant 0.000000e+00 : f32
    %55 = vector.broadcast %49 : f32 to vector<8x128xf32>
    %56 = vector.broadcast %cst_16 : f32 to vector<8x128xf32>
    %57 = arith.select %54, %55, %56 : vector<8x128xi1>, vector<8x128xf32>
    %58 = vector.broadcast %45 : f32 to vector<8x128xf32>
    %59 = arith.select %52, %58, %57 : vector<8x128xi1>, vector<8x128xf32>
    %60 = vector.shape_cast %59 : vector<8x128xf32> to vector<1x8x128xf32>
    %c0_17 = arith.constant 0 : index
    %c0_18 = arith.constant 0 : index
    %c0_19 = arith.constant 0 : index
    %61 = vector.load %arg6[%c0_17, %c0_18, %c0_19] : memref<1x8x128xf32, #tpu.memory_space<vmem>>, vector<1x8x128xf32>
    tpu.vector_store %arg6[%c0_17, %c0_18, %c0_19], %60 {strides = array<i32>} : memref<1x8x128xf32, #tpu.memory_space<vmem>>, vector<1x8x128xf32>,
    return
  }
  func.func @transform_0(%arg0: i32) -> (i32, i32) {
    %c0_i32 = arith.constant 0 : i32
    %c0_i32_0 = arith.constant 0 : i32
    %c0_i32_1 = arith.constant 0 : i32
    return %c0_i32, %c0_i32_0 : i32, i32
  }
  func.func @transform_1(%arg0: i32) -> i32 {
    %c0_i32 = arith.constant 0 : i32
    %c0_i32_0 = arith.constant 0 : i32
    return %c0_i32 : i32
  }
  func.func @transform_2(%arg0: i32) -> (i32, i32) {
    %c0_i32 = arith.constant 0 : i32
    %c0_i32_0 = arith.constant 0 : i32
    return %arg0, %c0_i32 : i32, i32
  }
  func.func @transform_3(%arg0: i32) -> (i32, i32) {
    %c0_i32 = arith.constant 0 : i32
    %c0_i32_0 = arith.constant 0 : i32
    return %arg0, %c0_i32 : i32, i32
  }
  func.func @transform_4(%arg0: i32) -> (i32, i32) {
    %c0_i32 = arith.constant 0 : i32
    %c0_i32_0 = arith.constant 0 : i32
    return %arg0, %c0_i32 : i32, i32
  }
  func.func @transform_5(%arg0: i32) -> (i32, i32, i32) {
    %c0_i32 = arith.constant 0 : i32
    %c0_i32_0 = arith.constant 0 : i32
    %c0_i32_1 = arith.constant 0 : i32
    return %arg0, %c0_i32, %c0_i32_0 : i32, i32, i32
  }
}

</mosaic_0001>

<llo_original>
// kernel: tpu_custom_call.1
$region0: #{tpu_custom_call.1}
  #allocation0 [shape = 'u32[]', space=smem, size = 0x4, offset = 0x4, fixed_abs, tag = 'smem constant byte address 0x4 - core index']
  #allocation1 [shape = 'u32[72,128]{1,0:T(1,128)}', space=vmem, size = 0x9000, scoped, tag = 'internal scratch']
  #allocation2 [shape = 'f32[1]{0:T(128)S(6)}', space=smem, size = 0x200, scoped, tag = 'scoped memory for tpu_custom_call.1']
  %s0 = inlined_call_operand.vmem [shape: bf16[512,256], index: 0, kind: input, shape index: {}]
  %s1 = inlined_call_operand.<no memory space> [shape: f32[1], index: 1, kind: input, shape index: {}]
  %s2 = inlined_call_operand.vmem [shape: s32[1024,1], index: 2, kind: input, shape index: {}]
  %s3 = inlined_call_operand.vmem [shape: s32[1024,1], index: 3, kind: input, shape index: {}]
  %s4 = inlined_call_operand.vmem [shape: f32[1024,8], index: 4, kind: output, shape index: {0}]
  %s5 = inlined_call_operand.hbm [shape: f32[2,8,128], index: 5, kind: output, shape index: {1}]
  %6 = xla_tuple %s4, %s5
  %s7 = sld [smem:[#allocation0]]
  $region57: #{tpu_custom_call.1} parent=0
    _
  %s9 = ssub.s32 1, %s7
  %s10 = scalar_select 0, %s9, %s7
  %11 = sst [smem:[#allocation2]] %s1
  $region1: #{tpu_custom_call.1} parent=0
    #allocation3 [shape = 'u8[8192]{0}', space=vmem, size = 0x2000, scoped, tag = 'output window, operand 1']
    #allocation4 [shape = 's32[2]{0}', space=sflag, size = 0x8, scoped, tag = 'scoped memory for tpu_custom_call.1']
    %12 = vsyncpa [#allocation4], 0
    %s13 = scalar_lea.sflag [#allocation4], 1
    %14 = vsyncpa %s13, 0
    loop: start=0, step=1, limit=4
    $region2: #{tpu_custom_call.1} parent=1 // loop_pre_header
      _
    $region3: #{tpu_custom_call.1} parent=1 // loop_header
      %s16 = sphi 0, %s20
      %p17 = scmp.ge.s32.totalorder %s16, 4
      %s24 = sphi 0, %s24
      %s26 = sphi 0, %s24
      %s27 = sphi 0, %s26
      %s41 = sphi 0, %s27
      %s45 = sphi 0, %s45
      %s47 = sphi 0, %s45
      %s48 = sphi 0, %s47
      %s62 = sphi 0, %s48
      %s68 = sphi 0, %s70
      %s71 = sphi 0, %s68
      %s72 = sphi 0, %s71
      %s88 = sphi 0, %s72
      %s94 = sphi 0, %s96
      %s97 = sphi 0, %s94
      %s98 = sphi 0, %s97
      %s114 = sphi 0, %s98
      %s120 = sphi 0, %s122
      %s123 = sphi 0, %s120
      %s124 = sphi 0, %s123
      %s140 = sphi 0, %s124
      %s146 = sphi 0, %s148
      %s149 = sphi 0, %s146
      %s150 = sphi 0, %s149
      %s166 = sphi 0, %s150
    $region4: #{tpu_custom_call.1} parent=1 // loop_header_branch
      %19 = sbr.rel (%p17) target = $region8
    $region5: #{tpu_custom_call.1} parent=1 // loop_body
      %s21 = ssub.s32 %s16, 1
      %s22 = ssub.s32 %s16, 2
      %s23 = sadd.s32 %s16, 1
      %s25 = sadd.s32 %s24, 1
      %p28 = scmp.eq.s32.totalorder %s16, 1
      %p29 = scmp.ne.s32.totalorder %s24, %s26
      %p30 = scmp.eq.s32.totalorder %s16, 0
      %p31 = por %p29, %p30
      %p32 = scmp.ne.s32.totalorder %s24, %s26
      %p33 = scmp.eq.s32.totalorder %s21, 1
      %p34 = por %p32, %p33
      %p35 = scmp.ne.s32.totalorder %s26, %s27
      %p36 = scmp.eq.s32.totalorder %s21, 0
      %p37 = por %p35, %p36
      %p38 = scmp.ne.s32.totalorder %s26, %s27
      %p39 = scmp.eq.s32.totalorder %s22, 1
      %p40 = por %p38, %p39
      %p42 = scmp.ne.s32.totalorder %s27, %s41
      %p43 = scmp.eq.s32.totalorder %s22, 0
      %p44 = por %p42, %p43
      %s46 = sadd.s32 %s45, 1
      %p49 = scmp.eq.s32.totalorder %s16, 1
      %p50 = scmp.ne.s32.totalorder %s45, %s47
      %p51 = scmp.eq.s32.totalorder %s16, 0
      %p52 = por %p50, %p51
      %p53 = scmp.ne.s32.totalorder %s45, %s47
      %p54 = scmp.eq.s32.totalorder %s21, 1
      %p55 = por %p53, %p54
      %p56 = scmp.ne.s32.totalorder %s47, %s48
      %p57 = scmp.eq.s32.totalorder %s21, 0
      %p58 = por %p56, %p57
      %p59 = scmp.ne.s32.totalorder %s47, %s48
      %p60 = scmp.eq.s32.totalorder %s22, 1
      %p61 = por %p59, %p60
      %p63 = scmp.ne.s32.totalorder %s48, %s62
      %p64 = scmp.eq.s32.totalorder %s22, 0
      %p65 = por %p63, %p64
      %s66 = ssub.s32 %s16, %s23
      %p67 = scmp.eq.s32.totalorder %s66, 0
      %s69 = sadd.s32 %s68, 1
      %s70 = scalar_select %p67, %s68, %s69
      %p73 = pneg %p67
      %p74 = scmp.eq.s32.totalorder %s16, 1
      %p75 = por %p73, %p74
      %p76 = scmp.ne.s32.totalorder %s68, %s71
      %p77 = scmp.eq.s32.totalorder %s16, 0
      %p78 = por %p76, %p77
      %p79 = scmp.ne.s32.totalorder %s68, %s71
      %p80 = scmp.eq.s32.totalorder %s21, 1
      %p81 = por %p79, %p80
      %p82 = scmp.ne.s32.totalorder %s71, %s72
      %p83 = scmp.eq.s32.totalorder %s21, 0
      %p84 = por %p82, %p83
      %p85 = scmp.ne.s32.totalorder %s71, %s72
      %p86 = scmp.eq.s32.totalorder %s22, 1
      %p87 = por %p85, %p86
      %p89 = scmp.ne.s32.totalorder %s72, %s88
      %p90 = scmp.eq.s32.totalorder %s22, 0
      %p91 = por %p89, %p90
      %s92 = ssub.s32 %s16, %s23
      %p93 = scmp.eq.s32.totalorder %s92, 0
      %s95 = sadd.s32 %s94, 1
      %s96 = scalar_select %p93, %s94, %s95
      %p99 = pneg %p93
      %p100 = scmp.eq.s32.totalorder %s16, 1
      %p101 = por %p99, %p100
      %p102 = scmp.ne.s32.totalorder %s94, %s97
      %p103 = scmp.eq.s32.totalorder %s16, 0
      %p104 = por %p102, %p103
      %p105 = scmp.ne.s32.totalorder %s94, %s97
      %p106 = scmp.eq.s32.totalorder %s21, 1
      %p107 = por %p105, %p106
      %p108 = scmp.ne.s32.totalorder %s97, %s98
      %p109 = scmp.eq.s32.totalorder %s21, 0
      %p110 = por %p108, %p109
      %p111 = scmp.ne.s32.totalorder %s97, %s98
      %p112 = scmp.eq.s32.totalorder %s22, 1
      %p113 = por %p111, %p112
      %p115 = scmp.ne.s32.totalorder %s98, %s114
      %p116 = scmp.eq.s32.totalorder %s22, 0
      %p117 = por %p115, %p116
      %s118 = ssub.s32 %s16, %s23
      %p119 = scmp.eq.s32.totalorder %s118, 0
      %s121 = sadd.s32 %s120, 1
      %s122 = scalar_select %p119, %s120, %s121
      %p125 = pneg %p119
      %p126 = scmp.eq.s32.totalorder %s16, 1
      %p127 = por %p125, %p126
      %p128 = scmp.ne.s32.totalorder %s120, %s123
      %p129 = scmp.eq.s32.totalorder %s16, 0
      %p130 = por %p128, %p129
      %p131 = scmp.ne.s32.totalorder %s120, %s123
      %p132 = scmp.eq.s32.totalorder %s21, 1
      %p133 = por %p131, %p132
      %p134 = scmp.ne.s32.totalorder %s123, %s124
      %p135 = scmp.eq.s32.totalorder %s21, 0
      %p136 = por %p134, %p135
      %p137 = scmp.ne.s32.totalorder %s123, %s124
      %p138 = scmp.eq.s32.totalorder %s22, 1
      %p139 = por %p137, %p138
      %p141 = scmp.ne.s32.totalorder %s124, %s140
      %p142 = scmp.eq.s32.totalorder %s22, 0
      %p143 = por %p141, %p142
      %s144 = ssub.s32 %s16, %s23
      %p145 = scmp.eq.s32.totalorder %s144, 0
      %s147 = sadd.s32 %s146, 1
      %s148 = scalar_select %p145, %s146, %s147
      %p151 = pneg %p145
      %p152 = scmp.eq.s32.totalorder %s16, 1
      %p153 = por %p151, %p152
      %p154 = scmp.ne.s32.totalorder %s146, %s149
      %p155 = scmp.eq.s32.totalorder %s16, 0
      %p156 = por %p154, %p155
      %p157 = scmp.ne.s32.totalorder %s146, %s149
      %p158 = scmp.eq.s32.totalorder %s21, 1
      %p159 = por %p157, %p158
      %p160 = scmp.ne.s32.totalorder %s149, %s150
      %p161 = scmp.eq.s32.totalorder %s21, 0
      %p162 = por %p160, %p161
      %p163 = scmp.ne.s32.totalorder %s149, %s150
      %p164 = scmp.eq.s32.totalorder %s22, 1
      %p165 = por %p163, %p164
      %p167 = scmp.ne.s32.totalorder %s150, %s166
      %p168 = scmp.eq.s32.totalorder %s22, 0
      %p169 = por %p167, %p168
      %p170 = scmp.le.s32.totalorder 1, %s16
      %p171 = scmp.lt.s32.totalorder %s16, 3
      %p172 = pnand %p170, %p171
      %p173 = pneg %p172
      // Predicated region
      $region9: #{tpu_custom_call.1} parent=5 // pred_check
        _
      $region10: #{tpu_custom_call.1} parent=5 // pred_check_branch
        %175 = sbr.rel (%p172) target = $region12
      $region11: #{tpu_custom_call.1} parent=5 // pred_region
        %s176 = ssub.s32 %s16, 1
        // Predicated region
        $region13: #{tpu_custom_call.1} parent=11 // pred_check
          %p177 = pneg %p37
        $region14: #{tpu_custom_call.1} parent=11 // pred_check_branch
          %179 = sbr.rel (%p177) target = $region16
        $region15: #{tpu_custom_call.1} parent=11 // pred_region
          _
        $region16: #{tpu_custom_call.1} parent=11 // pred_fallthru
          _
        // Predicated region
        $region17: #{tpu_custom_call.1} parent=11 // pred_check
          %p180 = pneg %p58
        $region18: #{tpu_custom_call.1} parent=11 // pred_check_branch
          %182 = sbr.rel (%p180) target = $region20
        $region19: #{tpu_custom_call.1} parent=11 // pred_region
          _
        $region20: #{tpu_custom_call.1} parent=11 // pred_fallthru
          _
      $region12: #{tpu_custom_call.1} parent=5 // pred_fallthru
        _
      %p183 = scmp.lt.s32.totalorder %s16, 2
      // Predicated region
      $region21: #{tpu_custom_call.1} parent=5 // pred_check
        %p184 = pneg %p183
      $region22: #{tpu_custom_call.1} parent=5 // pred_check_branch
        %186 = sbr.rel (%p184) target = $region24
      $region23: #{tpu_custom_call.1} parent=5 // pred_region
        // Predicated region
        $region25: #{tpu_custom_call.1} parent=23 // pred_check
          %p187 = pneg %p78
        $region26: #{tpu_custom_call.1} parent=23 // pred_check_branch
          %189 = sbr.rel (%p187) target = $region28
        $region27: #{tpu_custom_call.1} parent=23 // pred_region
          %s190 = smul.u32 64, %s16
          %p191 = scmp.lt.s32.totalorder %s190, 127
          %s192 = scalar_select %p191, %s190, 127
          %s193 = smul.addr %s192, 8
          %s194 = scalar_lea.vmem %s2, %s193
          %s195 = smul.u32 64, %s16
        $region28: #{tpu_custom_call.1} parent=23 // pred_fallthru
          _
        // Predicated region
        $region29: #{tpu_custom_call.1} parent=23 // pred_check
          %p196 = pneg %p104
        $region30: #{tpu_custom_call.1} parent=23 // pred_check_branch
          %198 = sbr.rel (%p196) target = $region32
        $region31: #{tpu_custom_call.1} parent=23 // pred_region
          %s199 = smul.u32 64, %s16
          %p200 = scmp.lt.s32.totalorder %s199, 127
          %s201 = scalar_select %p200, %s199, 127
          %s202 = smul.addr %s201, 8
          %s203 = scalar_lea.vmem %s3, %s202
          %s204 = smul.u32 64, %s16
        $region32: #{tpu_custom_call.1} parent=23 // pred_fallthru
          _
      $region24: #{tpu_custom_call.1} parent=5 // pred_fallthru
        _
      %p205 = scmp.le.s32.totalorder 1, %s16
      %p206 = scmp.lt.s32.totalorder %s16, 3
      %p207 = pnand %p205, %p206
      %p208 = pneg %p207
      // Predicated region
      $region33: #{tpu_custom_call.1} parent=5 // pred_check
        _
      $region34: #{tpu_custom_call.1} parent=5 // pred_check_branch
        %210 = sbr.rel (%p207) target = $region36
      $region35: #{tpu_custom_call.1} parent=5 // pred_region
        %s211 = ssub.s32 %s16, 1
        %p212 = pneg %p37
        %p213 = pneg %p34
        %p214 = pneg %p58
        %p215 = pneg %p55
        %s216 = smul.u32 64, %s21
        %p217 = scmp.lt.s32.totalorder %s216, 127
        %s218 = scalar_select %p217, %s216, 127
        %s219 = smul.addr %s218, 8
        %s220 = scalar_lea.vmem %s2, %s219
        %p221 = pneg %p84
        %p222 = pneg %p81
        %s223 = smul.u32 64, %s21
        %p224 = scmp.lt.s32.totalorder %s223, 127
        %s225 = scalar_select %p224, %s223, 127
        %s226 = smul.addr %s225, 8
        %s227 = scalar_lea.vmem %s3, %s226
        %p228 = pneg %p110
        %p229 = pneg %p107
        %p230 = pneg %p136
        %p231 = pneg %p133
        %s232 = smul.u32 64, %s21
        %p233 = scmp.lt.s32.totalorder %s232, 127
        %s234 = scalar_select %p233, %s232, 127
        %s235 = smul.addr %s234, 8
        %s236 = scalar_lea.vmem %s4, %s235
        %p237 = pneg %p162
        %p238 = pneg %p159
        %s239 = sand.u32 %s149, 1
        %s240 = scalar_lea.sflag [#allocation4], %s239
        %s241 = sand.u32 %s149, 1
        %s242 = smul.addr %s241, 8
        %s243 = scalar_lea.vmem [#allocation3], %s242
        %s244 = smul.u32 64, %s21
        %p245 = scmp.lt.s32.totalorder %s244, 127
        %s246 = scalar_select %p245, %s244, 127
        %s247 = smul.addr %s246, 8
        %s248 = scalar_lea.vmem %s2, %s247
        %s249 = smul.u32 64, %s21
        %s250 = smul.u32 64, %s21
        %p251 = scmp.lt.s32.totalorder %s250, 127
        %s252 = scalar_select %p251, %s250, 127
        %s253 = smul.addr %s252, 8
        %s254 = scalar_lea.vmem %s3, %s253
        %s255 = smul.u32 64, %s21
        %s256 = smul.u32 64, %s21
        %p257 = scmp.lt.s32.totalorder %s256, 127
        %s258 = scalar_select %p257, %s256, 127
        %s259 = smul.addr %s258, 8
        %s260 = scalar_lea.vmem %s4, %s259
        %s261 = smul.u32 64, %s21
        %v262 = vld [vmem:[%s254] sm:$0xff]
        %v263 = vld [vmem:[%s254 + $0x8] sm:$0xff]
        %v264 = vld [vmem:[%s254 + $0x10] sm:$0xff]
        %v265 = vld [vmem:[%s254 + $0x18] sm:$0xff]
        %v266 = vld [vmem:[%s254 + $0x20] sm:$0xff]
        %v267 = vld [vmem:[%s254 + $0x28] sm:$0xff]
        %v268 = vld [vmem:[%s254 + $0x30] sm:$0xff]
        %v269 = vld [vmem:[%s254 + $0x38] sm:$0xff]
        %v270 = vld [vmem:[%s254 + $0x40] sm:$0xff]
        %v271 = vld [vmem:[%s254 + $0x48] sm:$0xff]
        %v272 = vld [vmem:[%s254 + $0x50] sm:$0xff]
        %v273 = vld [vmem:[%s254 + $0x58] sm:$0xff]
        %v274 = vld [vmem:[%s254 + $0x60] sm:$0xff]
        %v275 = vld [vmem:[%s254 + $0x68] sm:$0xff]
        %v276 = vld [vmem:[%s254 + $0x70] sm:$0xff]
        %v277 = vld [vmem:[%s254 + $0x78] sm:$0xff]
        %v278 = vld [vmem:[%s254 + $0x80] sm:$0xff]
        %v279 = vld [vmem:[%s254 + $0x88] sm:$0xff]
        %v280 = vld [vmem:[%s254 + $0x90] sm:$0xff]
        %v281 = vld [vmem:[%s254 + $0x98] sm:$0xff]
        %v282 = vld [vmem:[%s254 + $0xa0] sm:$0xff]
        %v283 = vld [vmem:[%s254 + $0xa8] sm:$0xff]
        %v284 = vld [vmem:[%s254 + $0xb0] sm:$0xff]
        %v285 = vld [vmem:[%s254 + $0xb8] sm:$0xff]
        %v286 = vld [vmem:[%s254 + $0xc0] sm:$0xff]
        %v287 = vld [vmem:[%s254 + $0xc8] sm:$0xff]
        %v288 = vld [vmem:[%s254 + $0xd0] sm:$0xff]
        %v289 = vld [vmem:[%s254 + $0xd8] sm:$0xff]
        %v290 = vld [vmem:[%s254 + $0xe0] sm:$0xff]
        %v291 = vld [vmem:[%s254 + $0xe8] sm:$0xff]
        %v292 = vld [vmem:[%s254 + $0xf0] sm:$0xff]
        %v293 = vld [vmem:[%s254 + $0xf8] sm:$0xff]
        %v294 = vld [vmem:[%s254 + $0x100] sm:$0xff]
        %v295 = vld [vmem:[%s254 + $0x108] sm:$0xff]
        %v296 = vld [vmem:[%s254 + $0x110] sm:$0xff]
        %v297 = vld [vmem:[%s254 + $0x118] sm:$0xff]
        %v298 = vld [vmem:[%s254 + $0x120] sm:$0xff]
        %v299 = vld [vmem:[%s254 + $0x128] sm:$0xff]
        %v300 = vld [vmem:[%s254 + $0x130] sm:$0xff]
        %v301 = vld [vmem:[%s254 + $0x138] sm:$0xff]
        %v302 = vld [vmem:[%s254 + $0x140] sm:$0xff]
        %v303 = vld [vmem:[%s254 + $0x148] sm:$0xff]
        %v304 = vld [vmem:[%s254 + $0x150] sm:$0xff]
        %v305 = vld [vmem:[%s254 + $0x158] sm:$0xff]
        %v306 = vld [vmem:[%s254 + $0x160] sm:$0xff]
        %v307 = vld [vmem:[%s254 + $0x168] sm:$0xff]
        %v308 = vld [vmem:[%s254 + $0x170] sm:$0xff]
        %v309 = vld [vmem:[%s254 + $0x178] sm:$0xff]
        %v310 = vld [vmem:[%s254 + $0x180] sm:$0xff]
        %v311 = vld [vmem:[%s254 + $0x188] sm:$0xff]
        %v312 = vld [vmem:[%s254 + $0x190] sm:$0xff]
        %v313 = vld [vmem:[%s254 + $0x198] sm:$0xff]
        %v314 = vld [vmem:[%s254 + $0x1a0] sm:$0xff]
        %v315 = vld [vmem:[%s254 + $0x1a8] sm:$0xff]
        %v316 = vld [vmem:[%s254 + $0x1b0] sm:$0xff]
        %v317 = vld [vmem:[%s254 + $0x1b8] sm:$0xff]
        %v318 = vld [vmem:[%s254 + $0x1c0] sm:$0xff]
        %v319 = vld [vmem:[%s254 + $0x1c8] sm:$0xff]
        %v320 = vld [vmem:[%s254 + $0x1d0] sm:$0xff]
        %v321 = vld [vmem:[%s254 + $0x1d8] sm:$0xff]
        %v322 = vld [vmem:[%s254 + $0x1e0] sm:$0xff]
        %v323 = vld [vmem:[%s254 + $0x1e8] sm:$0xff]
        %v324 = vld [vmem:[%s254 + $0x1f0] sm:$0xff]
        %v325 = vld [vmem:[%s254 + $0x1f8] sm:$0xff]
        %v326 = vlaneseq
        %v327 = vand.u32 %v326, 127
        %v328 = vadd.s32 %v327, 128
        %v329 = vadd.s32 %v327, 256
        %v330 = vadd.s32 %v327, 384
        %331 = vset.pattern.permute.xlu0 0
        %332 = vperm.xlu0 %331, %v262
        %v333 = vpop.permute.xlu0 %332
        %334 = vset.pattern.permute.xlu0 0
        %335 = vperm.xlu0 %334, %v263
        %v336 = vpop.permute.xlu0 %335
        %337 = vset.pattern.permute.xlu0 0
        %338 = vperm.xlu0 %337, %v264
        %v339 = vpop.permute.xlu0 %338
        %340 = vset.pattern.permute.xlu0 0
        %341 = vperm.xlu0 %340, %v265
        %v342 = vpop.permute.xlu0 %341
        %343 = vset.pattern.permute.xlu0 0
        %344 = vperm.xlu0 %343, %v266
        %v345 = vpop.permute.xlu0 %344
        %346 = vset.pattern.permute.xlu0 0
        %347 = vperm.xlu0 %346, %v267
        %v348 = vpop.permute.xlu0 %347
        %349 = vset.pattern.permute.xlu0 0
        %350 = vperm.xlu0 %349, %v268
        %v351 = vpop.permute.xlu0 %350
        %352 = vset.pattern.permute.xlu0 0
        %353 = vperm.xlu0 %352, %v269
        %v354 = vpop.permute.xlu0 %353
        %355 = vset.pattern.permute.xlu0 0
        %356 = vperm.xlu0 %355, %v270
        %v357 = vpop.permute.xlu0 %356
        %358 = vset.pattern.permute.xlu0 0
        %359 = vperm.xlu0 %358, %v271
        %v360 = vpop.permute.xlu0 %359
        %361 = vset.pattern.permute.xlu0 0
        %362 = vperm.xlu0 %361, %v272
        %v363 = vpop.permute.xlu0 %362
        %364 = vset.pattern.permute.xlu0 0
        %365 = vperm.xlu0 %364, %v273
        %v366 = vpop.permute.xlu0 %365
        %367 = vset.pattern.permute.xlu0 0
        %368 = vperm.xlu0 %367, %v274
        %v369 = vpop.permute.xlu0 %368
        %370 = vset.pattern.permute.xlu0 0
        %371 = vperm.xlu0 %370, %v275
        %v372 = vpop.permute.xlu0 %371
        %373 = vset.pattern.permute.xlu0 0
        %374 = vperm.xlu0 %373, %v276
        %v375 = vpop.permute.xlu0 %374
        %376 = vset.pattern.permute.xlu0 0
        %377 = vperm.xlu0 %376, %v277
        %v378 = vpop.permute.xlu0 %377
        %379 = vset.pattern.permute.xlu0 0
        %380 = vperm.xlu0 %379, %v278
        %v381 = vpop.permute.xlu0 %380
        %382 = vset.pattern.permute.xlu0 0
        %383 = vperm.xlu0 %382, %v279
        %v384 = vpop.permute.xlu0 %383
        %385 = vset.pattern.permute.xlu0 0
        %386 = vperm.xlu0 %385, %v280
        %v387 = vpop.permute.xlu0 %386
        %388 = vset.pattern.permute.xlu0 0
        %389 = vperm.xlu0 %388, %v281
        %v390 = vpop.permute.xlu0 %389
        %391 = vset.pattern.permute.xlu0 0
        %392 = vperm.xlu0 %391, %v282
        %v393 = vpop.permute.xlu0 %392
        %394 = vset.pattern.permute.xlu0 0
        %395 = vperm.xlu0 %394, %v283
        %v396 = vpop.permute.xlu0 %395
        %397 = vset.pattern.permute.xlu0 0
        %398 = vperm.xlu0 %397, %v284
        %v399 = vpop.permute.xlu0 %398
        %400 = vset.pattern.permute.xlu0 0
        %401 = vperm.xlu0 %400, %v285
        %v402 = vpop.permute.xlu0 %401
        %403 = vset.pattern.permute.xlu0 0
        %404 = vperm.xlu0 %403, %v286
        %v405 = vpop.permute.xlu0 %404
        %406 = vset.pattern.permute.xlu0 0
        %407 = vperm.xlu0 %406, %v287
        %v408 = vpop.permute.xlu0 %407
        %409 = vset.pattern.permute.xlu0 0
        %410 = vperm.xlu0 %409, %v288
        %v411 = vpop.permute.xlu0 %410
        %412 = vset.pattern.permute.xlu0 0
        %413 = vperm.xlu0 %412, %v289
        %v414 = vpop.permute.xlu0 %413
        %415 = vset.pattern.permute.xlu0 0
        %416 = vperm.xlu0 %415, %v290
        %v417 = vpop.permute.xlu0 %416
        %418 = vset.pattern.permute.xlu0 0
        %419 = vperm.xlu0 %418, %v291
        %v420 = vpop.permute.xlu0 %419
        %421 = vset.pattern.permute.xlu0 0
        %422 = vperm.xlu0 %421, %v292
        %v423 = vpop.permute.xlu0 %422
        %424 = vset.pattern.permute.xlu0 0
        %425 = vperm.xlu0 %424, %v293
        %v426 = vpop.permute.xlu0 %425
        %427 = vset.pattern.permute.xlu0 0
        %428 = vperm.xlu0 %427, %v294
        %v429 = vpop.permute.xlu0 %428
        %430 = vset.pattern.permute.xlu0 0
        %431 = vperm.xlu0 %430, %v295
        %v432 = vpop.permute.xlu0 %431
        %433 = vset.pattern.permute.xlu0 0
        %434 = vperm.xlu0 %433, %v296
        %v435 = vpop.permute.xlu0 %434
        %436 = vset.pattern.permute.xlu0 0
        %437 = vperm.xlu0 %436, %v297
        %v438 = vpop.permute.xlu0 %437
        %439 = vset.pattern.permute.xlu0 0
        %440 = vperm.xlu0 %439, %v298
        %v441 = vpop.permute.xlu0 %440
        %442 = vset.pattern.permute.xlu0 0
        %443 = vperm.xlu0 %442, %v299
        %v444 = vpop.permute.xlu0 %443
        %445 = vset.pattern.permute.xlu0 0
        %446 = vperm.xlu0 %445, %v300
        %v447 = vpop.permute.xlu0 %446
        %448 = vset.pattern.permute.xlu0 0
        %449 = vperm.xlu0 %448, %v301
        %v450 = vpop.permute.xlu0 %449
        %451 = vset.pattern.permute.xlu0 0
        %452 = vperm.xlu0 %451, %v302
        %v453 = vpop.permute.xlu0 %452
        %454 = vset.pattern.permute.xlu0 0
        %455 = vperm.xlu0 %454, %v303
        %v456 = vpop.permute.xlu0 %455
        %457 = vset.pattern.permute.xlu0 0
        %458 = vperm.xlu0 %457, %v304
        %v459 = vpop.permute.xlu0 %458
        %460 = vset.pattern.permute.xlu0 0
        %461 = vperm.xlu0 %460, %v305
        %v462 = vpop.permute.xlu0 %461
        %463 = vset.pattern.permute.xlu0 0
        %464 = vperm.xlu0 %463, %v306
        %v465 = vpop.permute.xlu0 %464
        %466 = vset.pattern.permute.xlu0 0
        %467 = vperm.xlu0 %466, %v307
        %v468 = vpop.permute.xlu0 %467
        %469 = vset.pattern.permute.xlu0 0
        %470 = vperm.xlu0 %469, %v308
        %v471 = vpop.permute.xlu0 %470
        %472 = vset.pattern.permute.xlu0 0
        %473 = vperm.xlu0 %472, %v309
        %v474 = vpop.permute.xlu0 %473
        %475 = vset.pattern.permute.xlu0 0
        %476 = vperm.xlu0 %475, %v310
        %v477 = vpop.permute.xlu0 %476
        %478 = vset.pattern.permute.xlu0 0
        %479 = vperm.xlu0 %478, %v311
        %v480 = vpop.permute.xlu0 %479
        %481 = vset.pattern.permute.xlu0 0
        %482 = vperm.xlu0 %481, %v312
        %v483 = vpop.permute.xlu0 %482
        %484 = vset.pattern.permute.xlu0 0
        %485 = vperm.xlu0 %484, %v313
        %v486 = vpop.permute.xlu0 %485
        %487 = vset.pattern.permute.xlu0 0
        %488 = vperm.xlu0 %487, %v314
        %v489 = vpop.permute.xlu0 %488
        %490 = vset.pattern.permute.xlu0 0
        %491 = vperm.xlu0 %490, %v315
        %v492 = vpop.permute.xlu0 %491
        %493 = vset.pattern.permute.xlu0 0
        %494 = vperm.xlu0 %493, %v316
        %v495 = vpop.permute.xlu0 %494
        %496 = vset.pattern.permute.xlu0 0
        %497 = vperm.xlu0 %496, %v317
        %v498 = vpop.permute.xlu0 %497
        %499 = vset.pattern.permute.xlu0 0
        %500 = vperm.xlu0 %499, %v318
        %v501 = vpop.permute.xlu0 %500
        %502 = vset.pattern.permute.xlu0 0
        %503 = vperm.xlu0 %502, %v319
        %v504 = vpop.permute.xlu0 %503
        %505 = vset.pattern.permute.xlu0 0
        %506 = vperm.xlu0 %505, %v320
        %v507 = vpop.permute.xlu0 %506
        %508 = vset.pattern.permute.xlu0 0
        %509 = vperm.xlu0 %508, %v321
        %v510 = vpop.permute.xlu0 %509
        %511 = vset.pattern.permute.xlu0 0
        %512 = vperm.xlu0 %511, %v322
        %v513 = vpop.permute.xlu0 %512
        %514 = vset.pattern.permute.xlu0 0
        %515 = vperm.xlu0 %514, %v323
        %v516 = vpop.permute.xlu0 %515
        %517 = vset.pattern.permute.xlu0 0
        %518 = vperm.xlu0 %517, %v324
        %v519 = vpop.permute.xlu0 %518
        %520 = vset.pattern.permute.xlu0 0
        %521 = vperm.xlu0 %520, %v325
        %v522 = vpop.permute.xlu0 %521
        %vm523 = vcmp.eq.s32.totalorder %v327, %v333
        %vm524 = vcmp.eq.s32.totalorder %v328, %v333
        %vm525 = vcmp.eq.s32.totalorder %v329, %v333
        %vm526 = vcmp.eq.s32.totalorder %v330, %v333
        %vm527 = vcmp.eq.s32.totalorder %v327, %v336
        %vm528 = vcmp.eq.s32.totalorder %v328, %v336
        %vm529 = vcmp.eq.s32.totalorder %v329, %v336
        %vm530 = vcmp.eq.s32.totalorder %v330, %v336
        %vm531 = vcmp.eq.s32.totalorder %v327, %v339
        %vm532 = vcmp.eq.s32.totalorder %v328, %v339
        %vm533 = vcmp.eq.s32.totalorder %v329, %v339
        %vm534 = vcmp.eq.s32.totalorder %v330, %v339
        %vm535 = vcmp.eq.s32.totalorder %v327, %v342
        %vm536 = vcmp.eq.s32.totalorder %v328, %v342
        %vm537 = vcmp.eq.s32.totalorder %v329, %v342
        %vm538 = vcmp.eq.s32.totalorder %v330, %v342
        %vm539 = vcmp.eq.s32.totalorder %v327, %v345
        %vm540 = vcmp.eq.s32.totalorder %v328, %v345
        %vm541 = vcmp.eq.s32.totalorder %v329, %v345
        %vm542 = vcmp.eq.s32.totalorder %v330, %v345
        %vm543 = vcmp.eq.s32.totalorder %v327, %v348
        %vm544 = vcmp.eq.s32.totalorder %v328, %v348
        %vm545 = vcmp.eq.s32.totalorder %v329, %v348
        %vm546 = vcmp.eq.s32.totalorder %v330, %v348
        %vm547 = vcmp.eq.s32.totalorder %v327, %v351
        %vm548 = vcmp.eq.s32.totalorder %v328, %v351
        %vm549 = vcmp.eq.s32.totalorder %v329, %v351
        %vm550 = vcmp.eq.s32.totalorder %v330, %v351
        %vm551 = vcmp.eq.s32.totalorder %v327, %v354
        %vm552 = vcmp.eq.s32.totalorder %v328, %v354
        %vm553 = vcmp.eq.s32.totalorder %v329, %v354
        %vm554 = vcmp.eq.s32.totalorder %v330, %v354
        %vm555 = vcmp.eq.s32.totalorder %v327, %v357
        %vm556 = vcmp.eq.s32.totalorder %v328, %v357
        %vm557 = vcmp.eq.s32.totalorder %v329, %v357
        %vm558 = vcmp.eq.s32.totalorder %v330, %v357
        %vm559 = vcmp.eq.s32.totalorder %v327, %v360
        %vm560 = vcmp.eq.s32.totalorder %v328, %v360
        %vm561 = vcmp.eq.s32.totalorder %v329, %v360
        %vm562 = vcmp.eq.s32.totalorder %v330, %v360
        %vm563 = vcmp.eq.s32.totalorder %v327, %v363
        %vm564 = vcmp.eq.s32.totalorder %v328, %v363
        %vm565 = vcmp.eq.s32.totalorder %v329, %v363
        %vm566 = vcmp.eq.s32.totalorder %v330, %v363
        %vm567 = vcmp.eq.s32.totalorder %v327, %v366
        %vm568 = vcmp.eq.s32.totalorder %v328, %v366
        %vm569 = vcmp.eq.s32.totalorder %v329, %v366
        %vm570 = vcmp.eq.s32.totalorder %v330, %v366
        %vm571 = vcmp.eq.s32.totalorder %v327, %v369
        %vm572 = vcmp.eq.s32.totalorder %v328, %v369
        %vm573 = vcmp.eq.s32.totalorder %v329, %v369
        %vm574 = vcmp.eq.s32.totalorder %v330, %v369
        %vm575 = vcmp.eq.s32.totalorder %v327, %v372
        %vm576 = vcmp.eq.s32.totalorder %v328, %v372
        %vm577 = vcmp.eq.s32.totalorder %v329, %v372
        %vm578 = vcmp.eq.s32.totalorder %v330, %v372
        %vm579 = vcmp.eq.s32.totalorder %v327, %v375
        %vm580 = vcmp.eq.s32.totalorder %v328, %v375
        %vm581 = vcmp.eq.s32.totalorder %v329, %v375
        %vm582 = vcmp.eq.s32.totalorder %v330, %v375
        %vm583 = vcmp.eq.s32.totalorder %v327, %v378
        %vm584 = vcmp.eq.s32.totalorder %v328, %v378
        %vm585 = vcmp.eq.s32.totalorder %v329, %v378
        %vm586 = vcmp.eq.s32.totalorder %v330, %v378
        %vm587 = vcmp.eq.s32.totalorder %v327, %v381
        %vm588 = vcmp.eq.s32.totalorder %v328, %v381
        %vm589 = vcmp.eq.s32.totalorder %v329, %v381
        %vm590 = vcmp.eq.s32.totalorder %v330, %v381
        %vm591 = vcmp.eq.s32.totalorder %v327, %v384
        %vm592 = vcmp.eq.s32.totalorder %v328, %v384
        %vm593 = vcmp.eq.s32.totalorder %v329, %v384
        %vm594 = vcmp.eq.s32.totalorder %v330, %v384
        %vm595 = vcmp.eq.s32.totalorder %v327, %v387
        %vm596 = vcmp.eq.s32.totalorder %v328, %v387
        %vm597 = vcmp.eq.s32.totalorder %v329, %v387
        %vm598 = vcmp.eq.s32.totalorder %v330, %v387
        %vm599 = vcmp.eq.s32.totalorder %v327, %v390
        %vm600 = vcmp.eq.s32.totalorder %v328, %v390
        %vm601 = vcmp.eq.s32.totalorder %v329, %v390
        %vm602 = vcmp.eq.s32.totalorder %v330, %v390
        %vm603 = vcmp.eq.s32.totalorder %v327, %v393
        %vm604 = vcmp.eq.s32.totalorder %v328, %v393
        %vm605 = vcmp.eq.s32.totalorder %v329, %v393
        %vm606 = vcmp.eq.s32.totalorder %v330, %v393
        %vm607 = vcmp.eq.s32.totalorder %v327, %v396
        %vm608 = vcmp.eq.s32.totalorder %v328, %v396
        %vm609 = vcmp.eq.s32.totalorder %v329, %v396
        %vm610 = vcmp.eq.s32.totalorder %v330, %v396
        %vm611 = vcmp.eq.s32.totalorder %v327, %v399
        %vm612 = vcmp.eq.s32.totalorder %v328, %v399
        %vm613 = vcmp.eq.s32.totalorder %v329, %v399
        %vm614 = vcmp.eq.s32.totalorder %v330, %v399
        %vm615 = vcmp.eq.s32.totalorder %v327, %v402
        %vm616 = vcmp.eq.s32.totalorder %v328, %v402
        %vm617 = vcmp.eq.s32.totalorder %v329, %v402
        %vm618 = vcmp.eq.s32.totalorder %v330, %v402
        %vm619 = vcmp.eq.s32.totalorder %v327, %v405
        %vm620 = vcmp.eq.s32.totalorder %v328, %v405
        %vm621 = vcmp.eq.s32.totalorder %v329, %v405
        %vm622 = vcmp.eq.s32.totalorder %v330, %v405
        %vm623 = vcmp.eq.s32.totalorder %v327, %v408
        %vm624 = vcmp.eq.s32.totalorder %v328, %v408
        %vm625 = vcmp.eq.s32.totalorder %v329, %v408
        %vm626 = vcmp.eq.s32.totalorder %v330, %v408
        %vm627 = vcmp.eq.s32.totalorder %v327, %v411
        %vm628 = vcmp.eq.s32.totalorder %v328, %v411
        %vm629 = vcmp.eq.s32.totalorder %v329, %v411
        %vm630 = vcmp.eq.s32.totalorder %v330, %v411
        %vm631 = vcmp.eq.s32.totalorder %v327, %v414
        %vm632 = vcmp.eq.s32.totalorder %v328, %v414
        %vm633 = vcmp.eq.s32.totalorder %v329, %v414
        %vm634 = vcmp.eq.s32.totalorder %v330, %v414
        %vm635 = vcmp.eq.s32.totalorder %v327, %v417
        %vm636 = vcmp.eq.s32.totalorder %v328, %v417
        %vm637 = vcmp.eq.s32.totalorder %v329, %v417
        %vm638 = vcmp.eq.s32.totalorder %v330, %v417
        %vm639 = vcmp.eq.s32.totalorder %v327, %v420
        %vm640 = vcmp.eq.s32.totalorder %v328, %v420
        %vm641 = vcmp.eq.s32.totalorder %v329, %v420
        %vm642 = vcmp.eq.s32.totalorder %v330, %v420
        %vm643 = vcmp.eq.s32.totalorder %v327, %v423
        %vm644 = vcmp.eq.s32.totalorder %v328, %v423
        %vm645 = vcmp.eq.s32.totalorder %v329, %v423
        %vm646 = vcmp.eq.s32.totalorder %v330, %v423
        %vm647 = vcmp.eq.s32.totalorder %v327, %v426
        %vm648 = vcmp.eq.s32.totalorder %v328, %v426
        %vm649 = vcmp.eq.s32.totalorder %v329, %v426
        %vm650 = vcmp.eq.s32.totalorder %v330, %v426
        %vm651 = vcmp.eq.s32.totalorder %v327, %v429
        %vm652 = vcmp.eq.s32.totalorder %v328, %v429
        %vm653 = vcmp.eq.s32.totalorder %v329, %v429
        %vm654 = vcmp.eq.s32.totalorder %v330, %v429
        %vm655 = vcmp.eq.s32.totalorder %v327, %v432
        %vm656 = vcmp.eq.s32.totalorder %v328, %v432
        %vm657 = vcmp.eq.s32.totalorder %v329, %v432
        %vm658 = vcmp.eq.s32.totalorder %v330, %v432
        %vm659 = vcmp.eq.s32.totalorder %v327, %v435
        %vm660 = vcmp.eq.s32.totalorder %v328, %v435
        %vm661 = vcmp.eq.s32.totalorder %v329, %v435
        %vm662 = vcmp.eq.s32.totalorder %v330, %v435
        %vm663 = vcmp.eq.s32.totalorder %v327, %v438
        %vm664 = vcmp.eq.s32.totalorder %v328, %v438
        %vm665 = vcmp.eq.s32.totalorder %v329, %v438
        %vm666 = vcmp.eq.s32.totalorder %v330, %v438
        %vm667 = vcmp.eq.s32.totalorder %v327, %v441
        %vm668 = vcmp.eq.s32.totalorder %v328, %v441
        %vm669 = vcmp.eq.s32.totalorder %v329, %v441
        %vm670 = vcmp.eq.s32.totalorder %v330, %v441
        %vm671 = vcmp.eq.s32.totalorder %v327, %v444
        %vm672 = vcmp.eq.s32.totalorder %v328, %v444
        %vm673 = vcmp.eq.s32.totalorder %v329, %v444
        %vm674 = vcmp.eq.s32.totalorder %v330, %v444
        %vm675 = vcmp.eq.s32.totalorder %v327, %v447
        %vm676 = vcmp.eq.s32.totalorder %v328, %v447
        %vm677 = vcmp.eq.s32.totalorder %v329, %v447
        %vm678 = vcmp.eq.s32.totalorder %v330, %v447
        %vm679 = vcmp.eq.s32.totalorder %v327, %v450
        %vm680 = vcmp.eq.s32.totalorder %v328, %v450
        %vm681 = vcmp.eq.s32.totalorder %v329, %v450
        %vm682 = vcmp.eq.s32.totalorder %v330, %v450
        %vm683 = vcmp.eq.s32.totalorder %v327, %v453
        %vm684 = vcmp.eq.s32.totalorder %v328, %v453
        %vm685 = vcmp.eq.s32.totalorder %v329, %v453
        %vm686 = vcmp.eq.s32.totalorder %v330, %v453
        %vm687 = vcmp.eq.s32.totalorder %v327, %v456
        %vm688 = vcmp.eq.s32.totalorder %v328, %v456
        %vm689 = vcmp.eq.s32.totalorder %v329, %v456
        %vm690 = vcmp.eq.s32.totalorder %v330, %v456
        %vm691 = vcmp.eq.s32.totalorder %v327, %v459
        %vm692 = vcmp.eq.s32.totalorder %v328, %v459
        %vm693 = vcmp.eq.s32.totalorder %v329, %v459
        %vm694 = vcmp.eq.s32.totalorder %v330, %v459
        %vm695 = vcmp.eq.s32.totalorder %v327, %v462
        %vm696 = vcmp.eq.s32.totalorder %v328, %v462
        %vm697 = vcmp.eq.s32.totalorder %v329, %v462
        %vm698 = vcmp.eq.s32.totalorder %v330, %v462
        %vm699 = vcmp.eq.s32.totalorder %v327, %v465
        %vm700 = vcmp.eq.s32.totalorder %v328, %v465
        %vm701 = vcmp.eq.s32.totalorder %v329, %v465
        %vm702 = vcmp.eq.s32.totalorder %v330, %v465
        %vm703 = vcmp.eq.s32.totalorder %v327, %v468
        %vm704 = vcmp.eq.s32.totalorder %v328, %v468
        %vm705 = vcmp.eq.s32.totalorder %v329, %v468
        %vm706 = vcmp.eq.s32.totalorder %v330, %v468
        %vm707 = vcmp.eq.s32.totalorder %v327, %v471
        %vm708 = vcmp.eq.s32.totalorder %v328, %v471
        %vm709 = vcmp.eq.s32.totalorder %v329, %v471
        %vm710 = vcmp.eq.s32.totalorder %v330, %v471
        %vm711 = vcmp.eq.s32.totalorder %v327, %v474
        %vm712 = vcmp.eq.s32.totalorder %v328, %v474
        %vm713 = vcmp.eq.s32.totalorder %v329, %v474
        %vm714 = vcmp.eq.s32.totalorder %v330, %v474
        %vm715 = vcmp.eq.s32.totalorder %v327, %v477
        %vm716 = vcmp.eq.s32.totalorder %v328, %v477
        %vm717 = vcmp.eq.s32.totalorder %v329, %v477
        %vm718 = vcmp.eq.s32.totalorder %v330, %v477
        %vm719 = vcmp.eq.s32.totalorder %v327, %v480
        %vm720 = vcmp.eq.s32.totalorder %v328, %v480
        %vm721 = vcmp.eq.s32.totalorder %v329, %v480
        %vm722 = vcmp.eq.s32.totalorder %v330, %v480
        %vm723 = vcmp.eq.s32.totalorder %v327, %v483
        %vm724 = vcmp.eq.s32.totalorder %v328, %v483
        %vm725 = vcmp.eq.s32.totalorder %v329, %v483
        %vm726 = vcmp.eq.s32.totalorder %v330, %v483
        %vm727 = vcmp.eq.s32.totalorder %v327, %v486
        %vm728 = vcmp.eq.s32.totalorder %v328, %v486
        %vm729 = vcmp.eq.s32.totalorder %v329, %v486
        %vm730 = vcmp.eq.s32.totalorder %v330, %v486
        %vm731 = vcmp.eq.s32.totalorder %v327, %v489
        %vm732 = vcmp.eq.s32.totalorder %v328, %v489
        %vm733 = vcmp.eq.s32.totalorder %v329, %v489
        %vm734 = vcmp.eq.s32.totalorder %v330, %v489
        %vm735 = vcmp.eq.s32.totalorder %v327, %v492
        %vm736 = vcmp.eq.s32.totalorder %v328, %v492
        %vm737 = vcmp.eq.s32.totalorder %v329, %v492
        %vm738 = vcmp.eq.s32.totalorder %v330, %v492
        %vm739 = vcmp.eq.s32.totalorder %v327, %v495
        %vm740 = vcmp.eq.s32.totalorder %v328, %v495
        %vm741 = vcmp.eq.s32.totalorder %v329, %v495
        %vm742 = vcmp.eq.s32.totalorder %v330, %v495
        %vm743 = vcmp.eq.s32.totalorder %v327, %v498
        %vm744 = vcmp.eq.s32.totalorder %v328, %v498
        %vm745 = vcmp.eq.s32.totalorder %v329, %v498
        %vm746 = vcmp.eq.s32.totalorder %v330, %v498
        %vm747 = vcmp.eq.s32.totalorder %v327, %v501
        %vm748 = vcmp.eq.s32.totalorder %v328, %v501
        %vm749 = vcmp.eq.s32.totalorder %v329, %v501
        %vm750 = vcmp.eq.s32.totalorder %v330, %v501
        %vm751 = vcmp.eq.s32.totalorder %v327, %v504
        %vm752 = vcmp.eq.s32.totalorder %v328, %v504
        %vm753 = vcmp.eq.s32.totalorder %v329, %v504
        %vm754 = vcmp.eq.s32.totalorder %v330, %v504
        %vm755 = vcmp.eq.s32.totalorder %v327, %v507
        %vm756 = vcmp.eq.s32.totalorder %v328, %v507
        %vm757 = vcmp.eq.s32.totalorder %v329, %v507
        %vm758 = vcmp.eq.s32.totalorder %v330, %v507
        %vm759 = vcmp.eq.s32.totalorder %v327, %v510
        %vm760 = vcmp.eq.s32.totalorder %v328, %v510
        %vm761 = vcmp.eq.s32.totalorder %v329, %v510
        %vm762 = vcmp.eq.s32.totalorder %v330, %v510
        %vm763 = vcmp.eq.s32.totalorder %v327, %v513
        %vm764 = vcmp.eq.s32.totalorder %v328, %v513
        %vm765 = vcmp.eq.s32.totalorder %v329, %v513
        %vm766 = vcmp.eq.s32.totalorder %v330, %v513
        %vm767 = vcmp.eq.s32.totalorder %v327, %v516
        %vm768 = vcmp.eq.s32.totalorder %v328, %v516
        %vm769 = vcmp.eq.s32.totalorder %v329, %v516
        %vm770 = vcmp.eq.s32.totalorder %v330, %v516
        %vm771 = vcmp.eq.s32.totalorder %v327, %v519
        %vm772 = vcmp.eq.s32.totalorder %v328, %v519
        %vm773 = vcmp.eq.s32.totalorder %v329, %v519
        %vm774 = vcmp.eq.s32.totalorder %v330, %v519
        %vm775 = vcmp.eq.s32.totalorder %v327, %v522
        %vm776 = vcmp.eq.s32.totalorder %v328, %v522
        %vm777 = vcmp.eq.s32.totalorder %v329, %v522
        %vm778 = vcmp.eq.s32.totalorder %v330, %v522
        %v779 = vsel %vm523, 1, 0
        %v780 = vsel %vm524, 1, 0
        %v781 = vsel %vm525, 1, 0
        %v782 = vsel %vm526, 1, 0
        %v783 = vsel %vm527, 1, 0
        %v784 = vsel %vm528, 1, 0
        %v785 = vsel %vm529, 1, 0
        %v786 = vsel %vm530, 1, 0
        %v787 = vsel %vm531, 1, 0
        %v788 = vsel %vm532, 1, 0
        %v789 = vsel %vm533, 1, 0
        %v790 = vsel %vm534, 1, 0
        %v791 = vsel %vm535, 1, 0
        %v792 = vsel %vm536, 1, 0
        %v793 = vsel %vm537, 1, 0
        %v794 = vsel %vm538, 1, 0
        %v795 = vsel %vm539, 1, 0
        %v796 = vsel %vm540, 1, 0
        %v797 = vsel %vm541, 1, 0
        %v798 = vsel %vm542, 1, 0
        %v799 = vsel %vm543, 1, 0
        %v800 = vsel %vm544, 1, 0
        %v801 = vsel %vm545, 1, 0
        %v802 = vsel %vm546, 1, 0
        %v803 = vsel %vm547, 1, 0
        %v804 = vsel %vm548, 1, 0
        %v805 = vsel %vm549, 1, 0
        %v806 = vsel %vm550, 1, 0
        %v807 = vsel %vm551, 1, 0
        %v808 = vsel %vm552, 1, 0
        %v809 = vsel %vm553, 1, 0
        %v810 = vsel %vm554, 1, 0
        %v811 = vsel %vm555, 1, 0
        %v812 = vsel %vm556, 1, 0
        %v813 = vsel %vm557, 1, 0
        %v814 = vsel %vm558, 1, 0
        %v815 = vsel %vm559, 1, 0
        %v816 = vsel %vm560, 1, 0
        %v817 = vsel %vm561, 1, 0
        %v818 = vsel %vm562, 1, 0
        %v819 = vsel %vm563, 1, 0
        %v820 = vsel %vm564, 1, 0
        %v821 = vsel %vm565, 1, 0
        %v822 = vsel %vm566, 1, 0
        %v823 = vsel %vm567, 1, 0
        %v824 = vsel %vm568, 1, 0
        %v825 = vsel %vm569, 1, 0
        %v826 = vsel %vm570, 1, 0
        %v827 = vsel %vm571, 1, 0
        %v828 = vsel %vm572, 1, 0
        %v829 = vsel %vm573, 1, 0
        %v830 = vsel %vm574, 1, 0
        %v831 = vsel %vm575, 1, 0
        %v832 = vsel %vm576, 1, 0
        %v833 = vsel %vm577, 1, 0
        %v834 = vsel %vm578, 1, 0
        %v835 = vsel %vm579, 1, 0
        %v836 = vsel %vm580, 1, 0
        %v837 = vsel %vm581, 1, 0
        %v838 = vsel %vm582, 1, 0
        %v839 = vsel %vm583, 1, 0
        %v840 = vsel %vm584, 1, 0
        %v841 = vsel %vm585, 1, 0
        %v842 = vsel %vm586, 1, 0
        %v843 = vsel %vm587, 1, 0
        %v844 = vsel %vm588, 1, 0
        %v845 = vsel %vm589, 1, 0
        %v846 = vsel %vm590, 1, 0
        %v847 = vsel %vm591, 1, 0
        %v848 = vsel %vm592, 1, 0
        %v849 = vsel %vm593, 1, 0
        %v850 = vsel %vm594, 1, 0
        %v851 = vsel %vm595, 1, 0
        %v852 = vsel %vm596, 1, 0
        %v853 = vsel %vm597, 1, 0
        %v854 = vsel %vm598, 1, 0
        %v855 = vsel %vm599, 1, 0
        %v856 = vsel %vm600, 1, 0
        %v857 = vsel %vm601, 1, 0
        %v858 = vsel %vm602, 1, 0
        %v859 = vsel %vm603, 1, 0
        %v860 = vsel %vm604, 1, 0
        %v861 = vsel %vm605, 1, 0
        %v862 = vsel %vm606, 1, 0
        %v863 = vsel %vm607, 1, 0
        %v864 = vsel %vm608, 1, 0
        %v865 = vsel %vm609, 1, 0
        %v866 = vsel %vm610, 1, 0
        %v867 = vsel %vm611, 1, 0
        %v868 = vsel %vm612, 1, 0
        %v869 = vsel %vm613, 1, 0
        %v870 = vsel %vm614, 1, 0
        %v871 = vsel %vm615, 1, 0
        %v872 = vsel %vm616, 1, 0
        %v873 = vsel %vm617, 1, 0
        %v874 = vsel %vm618, 1, 0
        %v875 = vsel %vm619, 1, 0
        %v876 = vsel %vm620, 1, 0
        %v877 = vsel %vm621, 1, 0
        %v878 = vsel %vm622, 1, 0
        %v879 = vsel %vm623, 1, 0
        %v880 = vsel %vm624, 1, 0
        %v881 = vsel %vm625, 1, 0
        %v882 = vsel %vm626, 1, 0
        %v883 = vsel %vm627, 1, 0
        %v884 = vsel %vm628, 1, 0
        %v885 = vsel %vm629, 1, 0
        %v886 = vsel %vm630, 1, 0
        %v887 = vsel %vm631, 1, 0
        %v888 = vsel %vm632, 1, 0
        %v889 = vsel %vm633, 1, 0
        %v890 = vsel %vm634, 1, 0
        %v891 = vsel %vm635, 1, 0
        %v892 = vsel %vm636, 1, 0
        %v893 = vsel %vm637, 1, 0
        %v894 = vsel %vm638, 1, 0
        %v895 = vsel %vm639, 1, 0
        %v896 = vsel %vm640, 1, 0
        %v897 = vsel %vm641, 1, 0
        %v898 = vsel %vm642, 1, 0
        %v899 = vsel %vm643, 1, 0
        %v900 = vsel %vm644, 1, 0
        %v901 = vsel %vm645, 1, 0
        %v902 = vsel %vm646, 1, 0
        %v903 = vsel %vm647, 1, 0
        %v904 = vsel %vm648, 1, 0
        %v905 = vsel %vm649, 1, 0
        %v906 = vsel %vm650, 1, 0
        %v907 = vsel %vm651, 1, 0
        %v908 = vsel %vm652, 1, 0
        %v909 = vsel %vm653, 1, 0
        %v910 = vsel %vm654, 1, 0
        %v911 = vsel %vm655, 1, 0
        %v912 = vsel %vm656, 1, 0
        %v913 = vsel %vm657, 1, 0
        %v914 = vsel %vm658, 1, 0
        %v915 = vsel %vm659, 1, 0
        %v916 = vsel %vm660, 1, 0
        %v917 = vsel %vm661, 1, 0
        %v918 = vsel %vm662, 1, 0
        %v919 = vsel %vm663, 1, 0
        %v920 = vsel %vm664, 1, 0
        %v921 = vsel %vm665, 1, 0
        %v922 = vsel %vm666, 1, 0
        %v923 = vsel %vm667, 1, 0
        %v924 = vsel %vm668, 1, 0
        %v925 = vsel %vm669, 1, 0
        %v926 = vsel %vm670, 1, 0
        %v927 = vsel %vm671, 1, 0
        %v928 = vsel %vm672, 1, 0
        %v929 = vsel %vm673, 1, 0
        %v930 = vsel %vm674, 1, 0
        %v931 = vsel %vm675, 1, 0
        %v932 = vsel %vm676, 1, 0
        %v933 = vsel %vm677, 1, 0
        %v934 = vsel %vm678, 1, 0
        %v935 = vsel %vm679, 1, 0
        %v936 = vsel %vm680, 1, 0
        %v937 = vsel %vm681, 1, 0
        %v938 = vsel %vm682, 1, 0
        %v939 = vsel %vm683, 1, 0
        %v940 = vsel %vm684, 1, 0
        %v941 = vsel %vm685, 1, 0
        %v942 = vsel %vm686, 1, 0
        %v943 = vsel %vm687, 1, 0
        %v944 = vsel %vm688, 1, 0
        %v945 = vsel %vm689, 1, 0
        %v946 = vsel %vm690, 1, 0
        %v947 = vsel %vm691, 1, 0
        %v948 = vsel %vm692, 1, 0
        %v949 = vsel %vm693, 1, 0
        %v950 = vsel %vm694, 1, 0
        %v951 = vsel %vm695, 1, 0
        %v952 = vsel %vm696, 1, 0
        %v953 = vsel %vm697, 1, 0
        %v954 = vsel %vm698, 1, 0
        %v955 = vsel %vm699, 1, 0
        %v956 = vsel %vm700, 1, 0
        %v957 = vsel %vm701, 1, 0
        %v958 = vsel %vm702, 1, 0
        %v959 = vsel %vm703, 1, 0
        %v960 = vsel %vm704, 1, 0
        %v961 = vsel %vm705, 1, 0
        %v962 = vsel %vm706, 1, 0
        %v963 = vsel %vm707, 1, 0
        %v964 = vsel %vm708, 1, 0
        %v965 = vsel %vm709, 1, 0
        %v966 = vsel %vm710, 1, 0
        %v967 = vsel %vm711, 1, 0
        %v968 = vsel %vm712, 1, 0
        %v969 = vsel %vm713, 1, 0
        %v970 = vsel %vm714, 1, 0
        %v971 = vsel %vm715, 1, 0
        %v972 = vsel %vm716, 1, 0
        %v973 = vsel %vm717, 1, 0
        %v974 = vsel %vm718, 1, 0
        %v975 = vsel %vm719, 1, 0
        %v976 = vsel %vm720, 1, 0
        %v977 = vsel %vm721, 1, 0
        %v978 = vsel %vm722, 1, 0
        %v979 = vsel %vm723, 1, 0
        %v980 = vsel %vm724, 1, 0
        %v981 = vsel %vm725, 1, 0
        %v982 = vsel %vm726, 1, 0
        %v983 = vsel %vm727, 1, 0
        %v984 = vsel %vm728, 1, 0
        %v985 = vsel %vm729, 1, 0
        %v986 = vsel %vm730, 1, 0
        %v987 = vsel %vm731, 1, 0
        %v988 = vsel %vm732, 1, 0
        %v989 = vsel %vm733, 1, 0
        %v990 = vsel %vm734, 1, 0
        %v991 = vsel %vm735, 1, 0
        %v992 = vsel %vm736, 1, 0
        %v993 = vsel %vm737, 1, 0
        %v994 = vsel %vm738, 1, 0
        %v995 = vsel %vm739, 1, 0
        %v996 = vsel %vm740, 1, 0
        %v997 = vsel %vm741, 1, 0
        %v998 = vsel %vm742, 1, 0
        %v999 = vsel %vm743, 1, 0
        %v1000 = vsel %vm744, 1, 0
        %v1001 = vsel %vm745, 1, 0
        %v1002 = vsel %vm746, 1, 0
        %v1003 = vsel %vm747, 1, 0
        %v1004 = vsel %vm748, 1, 0
        %v1005 = vsel %vm749, 1, 0
        %v1006 = vsel %vm750, 1, 0
        %v1007 = vsel %vm751, 1, 0
        %v1008 = vsel %vm752, 1, 0
        %v1009 = vsel %vm753, 1, 0
        %v1010 = vsel %vm754, 1, 0
        %v1011 = vsel %vm755, 1, 0
        %v1012 = vsel %vm756, 1, 0
        %v1013 = vsel %vm757, 1, 0
        %v1014 = vsel %vm758, 1, 0
        %v1015 = vsel %vm759, 1, 0
        %v1016 = vsel %vm760, 1, 0
        %v1017 = vsel %vm761, 1, 0
        %v1018 = vsel %vm762, 1, 0
        %v1019 = vsel %vm763, 1, 0
        %v1020 = vsel %vm764, 1, 0
        %v1021 = vsel %vm765, 1, 0
        %v1022 = vsel %vm766, 1, 0
        %v1023 = vsel %vm767, 1, 0
        %v1024 = vsel %vm768, 1, 0
        %v1025 = vsel %vm769, 1, 0
        %v1026 = vsel %vm770, 1, 0
        %v1027 = vsel %vm771, 1, 0
        %v1028 = vsel %vm772, 1, 0
        %v1029 = vsel %vm773, 1, 0
        %v1030 = vsel %vm774, 1, 0
        %v1031 = vsel %vm775, 1, 0
        %v1032 = vsel %vm776, 1, 0
        %v1033 = vsel %vm777, 1, 0
        %v1034 = vsel %vm778, 1, 0
        %v1035 = vcvt.s32.f32 %v779
        %v1036 = vcvt.s32.f32 %v780
        %v1037 = vcvt.s32.f32 %v781
        %v1038 = vcvt.s32.f32 %v782
        %v1039 = vcvt.s32.f32 %v783
        %v1040 = vcvt.s32.f32 %v784
        %v1041 = vcvt.s32.f32 %v785
        %v1042 = vcvt.s32.f32 %v786
        %v1043 = vcvt.s32.f32 %v787
        %v1044 = vcvt.s32.f32 %v788
        %v1045 = vcvt.s32.f32 %v789
        %v1046 = vcvt.s32.f32 %v790
        %v1047 = vcvt.s32.f32 %v791
        %v1048 = vcvt.s32.f32 %v792
        %v1049 = vcvt.s32.f32 %v793
        %v1050 = vcvt.s32.f32 %v794
        %v1051 = vcvt.s32.f32 %v795
        %v1052 = vcvt.s32.f32 %v796
        %v1053 = vcvt.s32.f32 %v797
        %v1054 = vcvt.s32.f32 %v798
        %v1055 = vcvt.s32.f32 %v799
        %v1056 = vcvt.s32.f32 %v800
        %v1057 = vcvt.s32.f32 %v801
        %v1058 = vcvt.s32.f32 %v802
        %v1059 = vcvt.s32.f32 %v803
        %v1060 = vcvt.s32.f32 %v804
        %v1061 = vcvt.s32.f32 %v805
        %v1062 = vcvt.s32.f32 %v806
        %v1063 = vcvt.s32.f32 %v807
        %v1064 = vcvt.s32.f32 %v808
        %v1065 = vcvt.s32.f32 %v809
        %v1066 = vcvt.s32.f32 %v810
        %v1067 = vcvt.s32.f32 %v811
        %v1068 = vcvt.s32.f32 %v812
        %v1069 = vcvt.s32.f32 %v813
        %v1070 = vcvt.s32.f32 %v814
        %v1071 = vcvt.s32.f32 %v815
        %v1072 = vcvt.s32.f32 %v816
        %v1073 = vcvt.s32.f32 %v817
        %v1074 = vcvt.s32.f32 %v818
        %v1075 = vcvt.s32.f32 %v819
        %v1076 = vcvt.s32.f32 %v820
        %v1077 = vcvt.s32.f32 %v821
        %v1078 = vcvt.s32.f32 %v822
        %v1079 = vcvt.s32.f32 %v823
        %v1080 = vcvt.s32.f32 %v824
        %v1081 = vcvt.s32.f32 %v825
        %v1082 = vcvt.s32.f32 %v826
        %v1083 = vcvt.s32.f32 %v827
        %v1084 = vcvt.s32.f32 %v828
        %v1085 = vcvt.s32.f32 %v829
        %v1086 = vcvt.s32.f32 %v830
        %v1087 = vcvt.s32.f32 %v831
        %v1088 = vcvt.s32.f32 %v832
        %v1089 = vcvt.s32.f32 %v833
        %v1090 = vcvt.s32.f32 %v834
        %v1091 = vcvt.s32.f32 %v835
        %v1092 = vcvt.s32.f32 %v836
        %v1093 = vcvt.s32.f32 %v837
        %v1094 = vcvt.s32.f32 %v838
        %v1095 = vcvt.s32.f32 %v839
        %v1096 = vcvt.s32.f32 %v840
        %v1097 = vcvt.s32.f32 %v841
        %v1098 = vcvt.s32.f32 %v842
        %v1099 = vcvt.s32.f32 %v843
        %v1100 = vcvt.s32.f32 %v844
        %v1101 = vcvt.s32.f32 %v845
        %v1102 = vcvt.s32.f32 %v846
        %v1103 = vcvt.s32.f32 %v847
        %v1104 = vcvt.s32.f32 %v848
        %v1105 = vcvt.s32.f32 %v849
        %v1106 = vcvt.s32.f32 %v850
        %v1107 = vcvt.s32.f32 %v851
        %v1108 = vcvt.s32.f32 %v852
        %v1109 = vcvt.s32.f32 %v853
        %v1110 = vcvt.s32.f32 %v854
        %v1111 = vcvt.s32.f32 %v855
        %v1112 = vcvt.s32.f32 %v856
        %v1113 = vcvt.s32.f32 %v857
        %v1114 = vcvt.s32.f32 %v858
        %v1115 = vcvt.s32.f32 %v859
        %v1116 = vcvt.s32.f32 %v860
        %v1117 = vcvt.s32.f32 %v861
        %v1118 = vcvt.s32.f32 %v862
        %v1119 = vcvt.s32.f32 %v863
        %v1120 = vcvt.s32.f32 %v864
        %v1121 = vcvt.s32.f32 %v865
        %v1122 = vcvt.s32.f32 %v866
        %v1123 = vcvt.s32.f32 %v867
        %v1124 = vcvt.s32.f32 %v868
        %v1125 = vcvt.s32.f32 %v869
        %v1126 = vcvt.s32.f32 %v870
        %v1127 = vcvt.s32.f32 %v871
        %v1128 = vcvt.s32.f32 %v872
        %v1129 = vcvt.s32.f32 %v873
        %v1130 = vcvt.s32.f32 %v874
        %v1131 = vcvt.s32.f32 %v875
        %v1132 = vcvt.s32.f32 %v876
        %v1133 = vcvt.s32.f32 %v877
        %v1134 = vcvt.s32.f32 %v878
        %v1135 = vcvt.s32.f32 %v879
        %v1136 = vcvt.s32.f32 %v880
        %v1137 = vcvt.s32.f32 %v881
        %v1138 = vcvt.s32.f32 %v882
        %v1139 = vcvt.s32.f32 %v883
        %v1140 = vcvt.s32.f32 %v884
        %v1141 = vcvt.s32.f32 %v885
        %v1142 = vcvt.s32.f32 %v886
        %v1143 = vcvt.s32.f32 %v887
        %v1144 = vcvt.s32.f32 %v888
        %v1145 = vcvt.s32.f32 %v889
        %v1146 = vcvt.s32.f32 %v890
        %v1147 = vcvt.s32.f32 %v891
        %v1148 = vcvt.s32.f32 %v892
        %v1149 = vcvt.s32.f32 %v893
        %v1150 = vcvt.s32.f32 %v894
        %v1151 = vcvt.s32.f32 %v895
        %v1152 = vcvt.s32.f32 %v896
        %v1153 = vcvt.s32.f32 %v897
        %v1154 = vcvt.s32.f32 %v898
        %v1155 = vcvt.s32.f32 %v899
        %v1156 = vcvt.s32.f32 %v900
        %v1157 = vcvt.s32.f32 %v901
        %v1158 = vcvt.s32.f32 %v902
        %v1159 = vcvt.s32.f32 %v903
        %v1160 = vcvt.s32.f32 %v904
        %v1161 = vcvt.s32.f32 %v905
        %v1162 = vcvt.s32.f32 %v906
        %v1163 = vcvt.s32.f32 %v907
        %v1164 = vcvt.s32.f32 %v908
        %v1165 = vcvt.s32.f32 %v909
        %v1166 = vcvt.s32.f32 %v910
        %v1167 = vcvt.s32.f32 %v911
        %v1168 = vcvt.s32.f32 %v912
        %v1169 = vcvt.s32.f32 %v913
        %v1170 = vcvt.s32.f32 %v914
        %v1171 = vcvt.s32.f32 %v915
        %v1172 = vcvt.s32.f32 %v916
        %v1173 = vcvt.s32.f32 %v917
        %v1174 = vcvt.s32.f32 %v918
        %v1175 = vcvt.s32.f32 %v919
        %v1176 = vcvt.s32.f32 %v920
        %v1177 = vcvt.s32.f32 %v921
        %v1178 = vcvt.s32.f32 %v922
        %v1179 = vcvt.s32.f32 %v923
        %v1180 = vcvt.s32.f32 %v924
        %v1181 = vcvt.s32.f32 %v925
        %v1182 = vcvt.s32.f32 %v926
        %v1183 = vcvt.s32.f32 %v927
        %v1184 = vcvt.s32.f32 %v928
        %v1185 = vcvt.s32.f32 %v929
        %v1186 = vcvt.s32.f32 %v930
        %v1187 = vcvt.s32.f32 %v931
        %v1188 = vcvt.s32.f32 %v932
        %v1189 = vcvt.s32.f32 %v933
        %v1190 = vcvt.s32.f32 %v934
        %v1191 = vcvt.s32.f32 %v935
        %v1192 = vcvt.s32.f32 %v936
        %v1193 = vcvt.s32.f32 %v937
        %v1194 = vcvt.s32.f32 %v938
        %v1195 = vcvt.s32.f32 %v939
        %v1196 = vcvt.s32.f32 %v940
        %v1197 = vcvt.s32.f32 %v941
        %v1198 = vcvt.s32.f32 %v942
        %v1199 = vcvt.s32.f32 %v943
        %v1200 = vcvt.s32.f32 %v944
        %v1201 = vcvt.s32.f32 %v945
        %v1202 = vcvt.s32.f32 %v946
        %v1203 = vcvt.s32.f32 %v947
        %v1204 = vcvt.s32.f32 %v948
        %v1205 = vcvt.s32.f32 %v949
        %v1206 = vcvt.s32.f32 %v950
        %v1207 = vcvt.s32.f32 %v951
        %v1208 = vcvt.s32.f32 %v952
        %v1209 = vcvt.s32.f32 %v953
        %v1210 = vcvt.s32.f32 %v954
        %v1211 = vcvt.s32.f32 %v955
        %v1212 = vcvt.s32.f32 %v956
        %v1213 = vcvt.s32.f32 %v957
        %v1214 = vcvt.s32.f32 %v958
        %v1215 = vcvt.s32.f32 %v959
        %v1216 = vcvt.s32.f32 %v960
        %v1217 = vcvt.s32.f32 %v961
        %v1218 = vcvt.s32.f32 %v962
        %v1219 = vcvt.s32.f32 %v963
        %v1220 = vcvt.s32.f32 %v964
        %v1221 = vcvt.s32.f32 %v965
        %v1222 = vcvt.s32.f32 %v966
        %v1223 = vcvt.s32.f32 %v967
        %v1224 = vcvt.s32.f32 %v968
        %v1225 = vcvt.s32.f32 %v969
        %v1226 = vcvt.s32.f32 %v970
        %v1227 = vcvt.s32.f32 %v971
        %v1228 = vcvt.s32.f32 %v972
        %v1229 = vcvt.s32.f32 %v973
        %v1230 = vcvt.s32.f32 %v974
        %v1231 = vcvt.s32.f32 %v975
        %v1232 = vcvt.s32.f32 %v976
        %v1233 = vcvt.s32.f32 %v977
        %v1234 = vcvt.s32.f32 %v978
        %v1235 = vcvt.s32.f32 %v979
        %v1236 = vcvt.s32.f32 %v980
        %v1237 = vcvt.s32.f32 %v981
        %v1238 = vcvt.s32.f32 %v982
        %v1239 = vcvt.s32.f32 %v983
        %v1240 = vcvt.s32.f32 %v984
        %v1241 = vcvt.s32.f32 %v985
        %v1242 = vcvt.s32.f32 %v986
        %v1243 = vcvt.s32.f32 %v987
        %v1244 = vcvt.s32.f32 %v988
        %v1245 = vcvt.s32.f32 %v989
        %v1246 = vcvt.s32.f32 %v990
        %v1247 = vcvt.s32.f32 %v991
        %v1248 = vcvt.s32.f32 %v992
        %v1249 = vcvt.s32.f32 %v993
        %v1250 = vcvt.s32.f32 %v994
        %v1251 = vcvt.s32.f32 %v995
        %v1252 = vcvt.s32.f32 %v996
        %v1253 = vcvt.s32.f32 %v997
        %v1254 = vcvt.s32.f32 %v998
        %v1255 = vcvt.s32.f32 %v999
        %v1256 = vcvt.s32.f32 %v1000
        %v1257 = vcvt.s32.f32 %v1001
        %v1258 = vcvt.s32.f32 %v1002
        %v1259 = vcvt.s32.f32 %v1003
        %v1260 = vcvt.s32.f32 %v1004
        %v1261 = vcvt.s32.f32 %v1005
        %v1262 = vcvt.s32.f32 %v1006
        %v1263 = vcvt.s32.f32 %v1007
        %v1264 = vcvt.s32.f32 %v1008
        %v1265 = vcvt.s32.f32 %v1009
        %v1266 = vcvt.s32.f32 %v1010
        %v1267 = vcvt.s32.f32 %v1011
        %v1268 = vcvt.s32.f32 %v1012
        %v1269 = vcvt.s32.f32 %v1013
        %v1270 = vcvt.s32.f32 %v1014
        %v1271 = vcvt.s32.f32 %v1015
        %v1272 = vcvt.s32.f32 %v1016
        %v1273 = vcvt.s32.f32 %v1017
        %v1274 = vcvt.s32.f32 %v1018
        %v1275 = vcvt.s32.f32 %v1019
        %v1276 = vcvt.s32.f32 %v1020
        %v1277 = vcvt.s32.f32 %v1021
        %v1278 = vcvt.s32.f32 %v1022
        %v1279 = vcvt.s32.f32 %v1023
        %v1280 = vcvt.s32.f32 %v1024
        %v1281 = vcvt.s32.f32 %v1025
        %v1282 = vcvt.s32.f32 %v1026
        %v1283 = vcvt.s32.f32 %v1027
        %v1284 = vcvt.s32.f32 %v1028
        %v1285 = vcvt.s32.f32 %v1029
        %v1286 = vcvt.s32.f32 %v1030
        %v1287 = vcvt.s32.f32 %v1031
        %v1288 = vcvt.s32.f32 %v1032
        %v1289 = vcvt.s32.f32 %v1033
        %v1290 = vcvt.s32.f32 %v1034
        %v1291 = vpack.c.bf16 %v1039, %v1035
        %v1292 = vpack.c.bf16 %v1040, %v1036
        %v1293 = vpack.c.bf16 %v1041, %v1037
        %v1294 = vpack.c.bf16 %v1042, %v1038
        %v1295 = vpack.c.bf16 %v1047, %v1043
        %v1296 = vpack.c.bf16 %v1048, %v1044
        %v1297 = vpack.c.bf16 %v1049, %v1045
        %v1298 = vpack.c.bf16 %v1050, %v1046
        %v1299 = vpack.c.bf16 %v1055, %v1051
        %v1300 = vpack.c.bf16 %v1056, %v1052
        %v1301 = vpack.c.bf16 %v1057, %v1053
        %v1302 = vpack.c.bf16 %v1058, %v1054
        %v1303 = vpack.c.bf16 %v1063, %v1059
        %v1304 = vpack.c.bf16 %v1064, %v1060
        %v1305 = vpack.c.bf16 %v1065, %v1061
        %v1306 = vpack.c.bf16 %v1066, %v1062
        %v1307 = vpack.c.bf16 %v1071, %v1067
        %v1308 = vpack.c.bf16 %v1072, %v1068
        %v1309 = vpack.c.bf16 %v1073, %v1069
        %v1310 = vpack.c.bf16 %v1074, %v1070
        %v1311 = vpack.c.bf16 %v1079, %v1075
        %v1312 = vpack.c.bf16 %v1080, %v1076
        %v1313 = vpack.c.bf16 %v1081, %v1077
        %v1314 = vpack.c.bf16 %v1082, %v1078
        %v1315 = vpack.c.bf16 %v1087, %v1083
        %v1316 = vpack.c.bf16 %v1088, %v1084
        %v1317 = vpack.c.bf16 %v1089, %v1085
        %v1318 = vpack.c.bf16 %v1090, %v1086
        %v1319 = vpack.c.bf16 %v1095, %v1091
        %v1320 = vpack.c.bf16 %v1096, %v1092
        %v1321 = vpack.c.bf16 %v1097, %v1093
        %v1322 = vpack.c.bf16 %v1098, %v1094
        %v1323 = vpack.c.bf16 %v1103, %v1099
        %v1324 = vpack.c.bf16 %v1104, %v1100
        %v1325 = vpack.c.bf16 %v1105, %v1101
        %v1326 = vpack.c.bf16 %v1106, %v1102
        %v1327 = vpack.c.bf16 %v1111, %v1107
        %v1328 = vpack.c.bf16 %v1112, %v1108
        %v1329 = vpack.c.bf16 %v1113, %v1109
        %v1330 = vpack.c.bf16 %v1114, %v1110
        %v1331 = vpack.c.bf16 %v1119, %v1115
        %v1332 = vpack.c.bf16 %v1120, %v1116
        %v1333 = vpack.c.bf16 %v1121, %v1117
        %v1334 = vpack.c.bf16 %v1122, %v1118
        %v1335 = vpack.c.bf16 %v1127, %v1123
        %v1336 = vpack.c.bf16 %v1128, %v1124
        %v1337 = vpack.c.bf16 %v1129, %v1125
        %v1338 = vpack.c.bf16 %v1130, %v1126
        %v1339 = vpack.c.bf16 %v1135, %v1131
        %v1340 = vpack.c.bf16 %v1136, %v1132
        %v1341 = vpack.c.bf16 %v1137, %v1133
        %v1342 = vpack.c.bf16 %v1138, %v1134
        %v1343 = vpack.c.bf16 %v1143, %v1139
        %v1344 = vpack.c.bf16 %v1144, %v1140
        %v1345 = vpack.c.bf16 %v1145, %v1141
        %v1346 = vpack.c.bf16 %v1146, %v1142
        %v1347 = vpack.c.bf16 %v1151, %v1147
        %v1348 = vpack.c.bf16 %v1152, %v1148
        %v1349 = vpack.c.bf16 %v1153, %v1149
        %v1350 = vpack.c.bf16 %v1154, %v1150
        %v1351 = vpack.c.bf16 %v1159, %v1155
        %v1352 = vpack.c.bf16 %v1160, %v1156
        %v1353 = vpack.c.bf16 %v1161, %v1157
        %v1354 = vpack.c.bf16 %v1162, %v1158
        %v1355 = vpack.c.bf16 %v1167, %v1163
        %v1356 = vpack.c.bf16 %v1168, %v1164
        %v1357 = vpack.c.bf16 %v1169, %v1165
        %v1358 = vpack.c.bf16 %v1170, %v1166
        %v1359 = vpack.c.bf16 %v1175, %v1171
        %v1360 = vpack.c.bf16 %v1176, %v1172
        %v1361 = vpack.c.bf16 %v1177, %v1173
        %v1362 = vpack.c.bf16 %v1178, %v1174
        %v1363 = vpack.c.bf16 %v1183, %v1179
        %v1364 = vpack.c.bf16 %v1184, %v1180
        %v1365 = vpack.c.bf16 %v1185, %v1181
        %v1366 = vpack.c.bf16 %v1186, %v1182
        %v1367 = vpack.c.bf16 %v1191, %v1187
        %v1368 = vpack.c.bf16 %v1192, %v1188
        %v1369 = vpack.c.bf16 %v1193, %v1189
        %v1370 = vpack.c.bf16 %v1194, %v1190
        %v1371 = vpack.c.bf16 %v1199, %v1195
        %v1372 = vpack.c.bf16 %v1200, %v1196
        %v1373 = vpack.c.bf16 %v1201, %v1197
        %v1374 = vpack.c.bf16 %v1202, %v1198
        %v1375 = vpack.c.bf16 %v1207, %v1203
        %v1376 = vpack.c.bf16 %v1208, %v1204
        %v1377 = vpack.c.bf16 %v1209, %v1205
        %v1378 = vpack.c.bf16 %v1210, %v1206
        %v1379 = vpack.c.bf16 %v1215, %v1211
        %v1380 = vpack.c.bf16 %v1216, %v1212
        %v1381 = vpack.c.bf16 %v1217, %v1213
        %v1382 = vpack.c.bf16 %v1218, %v1214
        %v1383 = vpack.c.bf16 %v1223, %v1219
        %v1384 = vpack.c.bf16 %v1224, %v1220
        %v1385 = vpack.c.bf16 %v1225, %v1221
        %v1386 = vpack.c.bf16 %v1226, %v1222
        %v1387 = vpack.c.bf16 %v1231, %v1227
        %v1388 = vpack.c.bf16 %v1232, %v1228
        %v1389 = vpack.c.bf16 %v1233, %v1229
        %v1390 = vpack.c.bf16 %v1234, %v1230
        %v1391 = vpack.c.bf16 %v1239, %v1235
        %v1392 = vpack.c.bf16 %v1240, %v1236
        %v1393 = vpack.c.bf16 %v1241, %v1237
        %v1394 = vpack.c.bf16 %v1242, %v1238
        %v1395 = vpack.c.bf16 %v1247, %v1243
        %v1396 = vpack.c.bf16 %v1248, %v1244
        %v1397 = vpack.c.bf16 %v1249, %v1245
        %v1398 = vpack.c.bf16 %v1250, %v1246
        %v1399 = vpack.c.bf16 %v1255, %v1251
        %v1400 = vpack.c.bf16 %v1256, %v1252
        %v1401 = vpack.c.bf16 %v1257, %v1253
        %v1402 = vpack.c.bf16 %v1258, %v1254
        %v1403 = vpack.c.bf16 %v1263, %v1259
        %v1404 = vpack.c.bf16 %v1264, %v1260
        %v1405 = vpack.c.bf16 %v1265, %v1261
        %v1406 = vpack.c.bf16 %v1266, %v1262
        %v1407 = vpack.c.bf16 %v1271, %v1267
        %v1408 = vpack.c.bf16 %v1272, %v1268
        %v1409 = vpack.c.bf16 %v1273, %v1269
        %v1410 = vpack.c.bf16 %v1274, %v1270
        %v1411 = vpack.c.bf16 %v1279, %v1275
        %v1412 = vpack.c.bf16 %v1280, %v1276
        %v1413 = vpack.c.bf16 %v1281, %v1277
        %v1414 = vpack.c.bf16 %v1282, %v1278
        %v1415 = vpack.c.bf16 %v1287, %v1283
        %v1416 = vpack.c.bf16 %v1288, %v1284
        %v1417 = vpack.c.bf16 %v1289, %v1285
        %v1418 = vpack.c.bf16 %v1290, %v1286
        %v1419 = vld [vmem:[%s0] sm:$0xff]
        %v1420 = vld [vmem:[%s0 + $0x8] sm:$0xff]
        %v1421 = vld [vmem:[%s0 + $0x10] sm:$0xff]
        %v1422 = vld [vmem:[%s0 + $0x18] sm:$0xff]
        %v1423 = vld [vmem:[%s0 + $0x20] sm:$0xff]
        %v1424 = vld [vmem:[%s0 + $0x28] sm:$0xff]
        %v1425 = vld [vmem:[%s0 + $0x30] sm:$0xff]
        %v1426 = vld [vmem:[%s0 + $0x38] sm:$0xff]
        %v1427 = vld [vmem:[%s0 + $0x40] sm:$0xff]
        %v1428 = vld [vmem:[%s0 + $0x48] sm:$0xff]
        %v1429 = vld [vmem:[%s0 + $0x50] sm:$0xff]
        %v1430 = vld [vmem:[%s0 + $0x58] sm:$0xff]
        %v1431 = vld [vmem:[%s0 + $0x60] sm:$0xff]
        %v1432 = vld [vmem:[%s0 + $0x68] sm:$0xff]
        %v1433 = vld [vmem:[%s0 + $0x70] sm:$0xff]
        %v1434 = vld [vmem:[%s0 + $0x78] sm:$0xff]
        %v1435 = vld [vmem:[%s0 + $0x80] sm:$0xff]
        %v1436 = vld [vmem:[%s0 + $0x88] sm:$0xff]
        %v1437 = vld [vmem:[%s0 + $0x90] sm:$0xff]
        %v1438 = vld [vmem:[%s0 + $0x98] sm:$0xff]
        %v1439 = vld [vmem:[%s0 + $0xa0] sm:$0xff]
        %v1440 = vld [vmem:[%s0 + $0xa8] sm:$0xff]
        %v1441 = vld [vmem:[%s0 + $0xb0] sm:$0xff]
        %v1442 = vld [vmem:[%s0 + $0xb8] sm:$0xff]
        %v1443 = vld [vmem:[%s0 + $0xc0] sm:$0xff]
        %v1444 = vld [vmem:[%s0 + $0xc8] sm:$0xff]
        %v1445 = vld [vmem:[%s0 + $0xd0] sm:$0xff]
        %v1446 = vld [vmem:[%s0 + $0xd8] sm:$0xff]
        %v1447 = vld [vmem:[%s0 + $0xe0] sm:$0xff]
        %v1448 = vld [vmem:[%s0 + $0xe8] sm:$0xff]
        %v1449 = vld [vmem:[%s0 + $0xf0] sm:$0xff]
        %v1450 = vld [vmem:[%s0 + $0xf8] sm:$0xff]
        %v1451 = vld [vmem:[%s0 + $0x100] sm:$0xff]
        %v1452 = vld [vmem:[%s0 + $0x108] sm:$0xff]
        %v1453 = vld [vmem:[%s0 + $0x110] sm:$0xff]
        %v1454 = vld [vmem:[%s0 + $0x118] sm:$0xff]
        %v1455 = vld [vmem:[%s0 + $0x120] sm:$0xff]
        %v1456 = vld [vmem:[%s0 + $0x128] sm:$0xff]
        %v1457 = vld [vmem:[%s0 + $0x130] sm:$0xff]
        %v1458 = vld [vmem:[%s0 + $0x138] sm:$0xff]
        %v1459 = vld [vmem:[%s0 + $0x140] sm:$0xff]
        %v1460 = vld [vmem:[%s0 + $0x148] sm:$0xff]
        %v1461 = vld [vmem:[%s0 + $0x150] sm:$0xff]
        %v1462 = vld [vmem:[%s0 + $0x158] sm:$0xff]
        %v1463 = vld [vmem:[%s0 + $0x160] sm:$0xff]
        %v1464 = vld [vmem:[%s0 + $0x168] sm:$0xff]
        %v1465 = vld [vmem:[%s0 + $0x170] sm:$0xff]
        %v1466 = vld [vmem:[%s0 + $0x178] sm:$0xff]
        %v1467 = vld [vmem:[%s0 + $0x180] sm:$0xff]
        %v1468 = vld [vmem:[%s0 + $0x188] sm:$0xff]
        %v1469 = vld [vmem:[%s0 + $0x190] sm:$0xff]
        %v1470 = vld [vmem:[%s0 + $0x198] sm:$0xff]
        %v1471 = vld [vmem:[%s0 + $0x1a0] sm:$0xff]
        %v1472 = vld [vmem:[%s0 + $0x1a8] sm:$0xff]
        %v1473 = vld [vmem:[%s0 + $0x1b0] sm:$0xff]
        %v1474 = vld [vmem:[%s0 + $0x1b8] sm:$0xff]
        %v1475 = vld [vmem:[%s0 + $0x1c0] sm:$0xff]
        %v1476 = vld [vmem:[%s0 + $0x1c8] sm:$0xff]
        %v1477 = vld [vmem:[%s0 + $0x1d0] sm:$0xff]
        %v1478 = vld [vmem:[%s0 + $0x1d8] sm:$0xff]
        %v1479 = vld [vmem:[%s0 + $0x1e0] sm:$0xff]
        %v1480 = vld [vmem:[%s0 + $0x1e8] sm:$0xff]
        %v1481 = vld [vmem:[%s0 + $0x1f0] sm:$0xff]
        %v1482 = vld [vmem:[%s0 + $0x1f8] sm:$0xff]
        %v1547 = vunpack.c.l.b16 %v1419
        %v1548 = vunpack.c.h.b16 %v1419
        %v1549 = vunpack.c.l.b16 %v1420
        %v1550 = vunpack.c.h.b16 %v1420
        %v1551 = vunpack.c.l.b16 %v1421
        %v1552 = vunpack.c.h.b16 %v1421
        %v1553 = vunpack.c.l.b16 %v1422
        %v1554 = vunpack.c.h.b16 %v1422
        %v1555 = vunpack.c.l.b16 %v1423
        %v1556 = vunpack.c.h.b16 %v1423
        %v1557 = vunpack.c.l.b16 %v1424
        %v1558 = vunpack.c.h.b16 %v1424
        %v1559 = vunpack.c.l.b16 %v1425
        %v1560 = vunpack.c.h.b16 %v1425
        %v1561 = vunpack.c.l.b16 %v1426
        %v1562 = vunpack.c.h.b16 %v1426
        %v1563 = vunpack.c.l.b16 %v1427
        %v1564 = vunpack.c.h.b16 %v1427
        %v1565 = vunpack.c.l.b16 %v1428
        %v1566 = vunpack.c.h.b16 %v1428
        %v1567 = vunpack.c.l.b16 %v1429
        %v1568 = vunpack.c.h.b16 %v1429
        %v1569 = vunpack.c.l.b16 %v1430
        %v1570 = vunpack.c.h.b16 %v1430
        %v1571 = vunpack.c.l.b16 %v1431
        %v1572 = vunpack.c.h.b16 %v1431
        %v1573 = vunpack.c.l.b16 %v1432
        %v1574 = vunpack.c.h.b16 %v1432
        %v1575 = vunpack.c.l.b16 %v1433
        %v1576 = vunpack.c.h.b16 %v1433
        %v1577 = vunpack.c.l.b16 %v1434
        %v1578 = vunpack.c.h.b16 %v1434
        %v1579 = vunpack.c.l.b16 %v1435
        %v1580 = vunpack.c.h.b16 %v1435
        %v1581 = vunpack.c.l.b16 %v1436
        %v1582 = vunpack.c.h.b16 %v1436
        %v1583 = vunpack.c.l.b16 %v1437
        %v1584 = vunpack.c.h.b16 %v1437
        %v1585 = vunpack.c.l.b16 %v1438
        %v1586 = vunpack.c.h.b16 %v1438
        %v1587 = vunpack.c.l.b16 %v1439
        %v1588 = vunpack.c.h.b16 %v1439
        %v1589 = vunpack.c.l.b16 %v1440
        %v1590 = vunpack.c.h.b16 %v1440
        %v1591 = vunpack.c.l.b16 %v1441
        %v1592 = vunpack.c.h.b16 %v1441
        %v1593 = vunpack.c.l.b16 %v1442
        %v1594 = vunpack.c.h.b16 %v1442
        %v1595 = vunpack.c.l.b16 %v1443
        %v1596 = vunpack.c.h.b16 %v1443
        %v1597 = vunpack.c.l.b16 %v1444
        %v1598 = vunpack.c.h.b16 %v1444
        %v1599 = vunpack.c.l.b16 %v1445
        %v1600 = vunpack.c.h.b16 %v1445
        %v1601 = vunpack.c.l.b16 %v1446
        %v1602 = vunpack.c.h.b16 %v1446
        %v1603 = vunpack.c.l.b16 %v1447
        %v1604 = vunpack.c.h.b16 %v1447
        %v1605 = vunpack.c.l.b16 %v1448
        %v1606 = vunpack.c.h.b16 %v1448
        %v1607 = vunpack.c.l.b16 %v1449
        %v1608 = vunpack.c.h.b16 %v1449
        %v1609 = vunpack.c.l.b16 %v1450
        %v1610 = vunpack.c.h.b16 %v1450
        %v1611 = vunpack.c.l.b16 %v1451
        %v1612 = vunpack.c.h.b16 %v1451
        %v1613 = vunpack.c.l.b16 %v1452
        %v1614 = vunpack.c.h.b16 %v1452
        %v1615 = vunpack.c.l.b16 %v1453
        %v1616 = vunpack.c.h.b16 %v1453
        %v1617 = vunpack.c.l.b16 %v1454
        %v1618 = vunpack.c.h.b16 %v1454
        %v1619 = vunpack.c.l.b16 %v1455
        %v1620 = vunpack.c.h.b16 %v1455
        %v1621 = vunpack.c.l.b16 %v1456
        %v1622 = vunpack.c.h.b16 %v1456
        %v1623 = vunpack.c.l.b16 %v1457
        %v1624 = vunpack.c.h.b16 %v1457
        %v1625 = vunpack.c.l.b16 %v1458
        %v1626 = vunpack.c.h.b16 %v1458
        %v1627 = vunpack.c.l.b16 %v1459
        %v1628 = vunpack.c.h.b16 %v1459
        %v1629 = vunpack.c.l.b16 %v1460
        %v1630 = vunpack.c.h.b16 %v1460
        %v1631 = vunpack.c.l.b16 %v1461
        %v1632 = vunpack.c.h.b16 %v1461
        %v1633 = vunpack.c.l.b16 %v1462
        %v1634 = vunpack.c.h.b16 %v1462
        %v1635 = vunpack.c.l.b16 %v1463
        %v1636 = vunpack.c.h.b16 %v1463
        %v1637 = vunpack.c.l.b16 %v1464
        %v1638 = vunpack.c.h.b16 %v1464
        %v1639 = vunpack.c.l.b16 %v1465
        %v1640 = vunpack.c.h.b16 %v1465
        %v1641 = vunpack.c.l.b16 %v1466
        %v1642 = vunpack.c.h.b16 %v1466
        %v1643 = vunpack.c.l.b16 %v1467
        %v1644 = vunpack.c.h.b16 %v1467
        %v1645 = vunpack.c.l.b16 %v1468
        %v1646 = vunpack.c.h.b16 %v1468
        %v1647 = vunpack.c.l.b16 %v1469
        %v1648 = vunpack.c.h.b16 %v1469
        %v1649 = vunpack.c.l.b16 %v1470
        %v1650 = vunpack.c.h.b16 %v1470
        %v1651 = vunpack.c.l.b16 %v1471
        %v1652 = vunpack.c.h.b16 %v1471
        %v1653 = vunpack.c.l.b16 %v1472
        %v1654 = vunpack.c.h.b16 %v1472
        %v1655 = vunpack.c.l.b16 %v1473
        %v1656 = vunpack.c.h.b16 %v1473
        %v1657 = vunpack.c.l.b16 %v1474
        %v1658 = vunpack.c.h.b16 %v1474
        %v1659 = vunpack.c.l.b16 %v1475
        %v1660 = vunpack.c.h.b16 %v1475
        %v1661 = vunpack.c.l.b16 %v1476
        %v1662 = vunpack.c.h.b16 %v1476
        %v1663 = vunpack.c.l.b16 %v1477
        %v1664 = vunpack.c.h.b16 %v1477
        %v1665 = vunpack.c.l.b16 %v1478
        %v1666 = vunpack.c.h.b16 %v1478
        %v1667 = vunpack.c.l.b16 %v1479
        %v1668 = vunpack.c.h.b16 %v1479
        %v1669 = vunpack.c.l.b16 %v1480
        %v1670 = vunpack.c.h.b16 %v1480
        %v1671 = vunpack.c.l.b16 %v1481
        %v1672 = vunpack.c.h.b16 %v1481
        %v1673 = vunpack.c.l.b16 %v1482
        %v1674 = vunpack.c.h.b16 %v1482
        %v1675 = vpack.c.b16 %v1549, %v1547
        %v1676 = vpack.c.b16 %v1550, %v1548
        %v1677 = vpack.c.b16 %v1553, %v1551
        %v1678 = vpack.c.b16 %v1554, %v1552
        %v1679 = vpack.c.b16 %v1557, %v1555
        %v1680 = vpack.c.b16 %v1558, %v1556
        %v1681 = vpack.c.b16 %v1561, %v1559
        %v1682 = vpack.c.b16 %v1562, %v1560
        %v1683 = vpack.c.b16 %v1565, %v1563
        %v1684 = vpack.c.b16 %v1566, %v1564
        %v1685 = vpack.c.b16 %v1569, %v1567
        %v1686 = vpack.c.b16 %v1570, %v1568
        %v1687 = vpack.c.b16 %v1573, %v1571
        %v1688 = vpack.c.b16 %v1574, %v1572
        %v1689 = vpack.c.b16 %v1577, %v1575
        %v1690 = vpack.c.b16 %v1578, %v1576
        %v1691 = vpack.c.b16 %v1581, %v1579
        %v1692 = vpack.c.b16 %v1582, %v1580
        %v1693 = vpack.c.b16 %v1585, %v1583
        %v1694 = vpack.c.b16 %v1586, %v1584
        %v1695 = vpack.c.b16 %v1589, %v1587
        %v1696 = vpack.c.b16 %v1590, %v1588
        %v1697 = vpack.c.b16 %v1593, %v1591
        %v1698 = vpack.c.b16 %v1594, %v1592
        %v1699 = vpack.c.b16 %v1597, %v1595
        %v1700 = vpack.c.b16 %v1598, %v1596
        %v1701 = vpack.c.b16 %v1601, %v1599
        %v1702 = vpack.c.b16 %v1602, %v1600
        %v1703 = vpack.c.b16 %v1605, %v1603
        %v1704 = vpack.c.b16 %v1606, %v1604
        %v1705 = vpack.c.b16 %v1609, %v1607
        %v1706 = vpack.c.b16 %v1610, %v1608
        %v1707 = vpack.c.b16 %v1613, %v1611
        %v1708 = vpack.c.b16 %v1614, %v1612
        %v1709 = vpack.c.b16 %v1617, %v1615
        %v1710 = vpack.c.b16 %v1618, %v1616
        %v1711 = vpack.c.b16 %v1621, %v1619
        %v1712 = vpack.c.b16 %v1622, %v1620
        %v1713 = vpack.c.b16 %v1625, %v1623
        %v1714 = vpack.c.b16 %v1626, %v1624
        %v1715 = vpack.c.b16 %v1629, %v1627
        %v1716 = vpack.c.b16 %v1630, %v1628
        %v1717 = vpack.c.b16 %v1633, %v1631
        %v1718 = vpack.c.b16 %v1634, %v1632
        %v1719 = vpack.c.b16 %v1637, %v1635
        %v1720 = vpack.c.b16 %v1638, %v1636
        %v1721 = vpack.c.b16 %v1641, %v1639
        %v1722 = vpack.c.b16 %v1642, %v1640
        %v1723 = vpack.c.b16 %v1645, %v1643
        %v1724 = vpack.c.b16 %v1646, %v1644
        %v1725 = vpack.c.b16 %v1649, %v1647
        %v1726 = vpack.c.b16 %v1650, %v1648
        %v1727 = vpack.c.b16 %v1653, %v1651
        %v1728 = vpack.c.b16 %v1654, %v1652
        %v1729 = vpack.c.b16 %v1657, %v1655
        %v1730 = vpack.c.b16 %v1658, %v1656
        %v1731 = vpack.c.b16 %v1661, %v1659
        %v1732 = vpack.c.b16 %v1662, %v1660
        %v1733 = vpack.c.b16 %v1665, %v1663
        %v1734 = vpack.c.b16 %v1666, %v1664
        %v1735 = vpack.c.b16 %v1669, %v1667
        %v1736 = vpack.c.b16 %v1670, %v1668
        %v1737 = vpack.c.b16 %v1673, %v1671
        %v1738 = vpack.c.b16 %v1674, %v1672
        %1803 = vmatpush.bf16.msra.mxu0 %v1689
        %1804 = vmatpush.bf16.msra.mxu0 %v1687
        %1805 = vmatpush.bf16.msra.mxu0 %v1685
        %1806 = vmatpush.bf16.msra.mxu0 %v1683
        %1807 = vmatpush.bf16.msra.mxu0 %v1681
        %1808 = vmatpush.bf16.msra.mxu0 %v1679
        %1809 = vmatpush.bf16.msra.mxu0 %v1677
        %1810 = vmatpush.bf16.msra.mxu0 %v1675
        %1811 = vmatmul.bf16.gmra.mxu0 %v1291
        %v1812 = vpop.f32.mrf.mxu0
        %v1813 = vadd.f32 0.0, %v1812
        %v1814 = vpop.f32.mrf.mxu0
        %v1815 = vadd.f32 0.0, %v1814
        %1816 = vmatmul.bf16.gmra.mxu0 %v1295
        %v1817 = vpop.f32.mrf.mxu0
        %v1818 = vadd.f32 0.0, %v1817
        %v1819 = vpop.f32.mrf.mxu0
        %v1820 = vadd.f32 0.0, %v1819
        %1821 = vmatmul.bf16.gmra.mxu0 %v1299
        %v1822 = vpop.f32.mrf.mxu0
        %v1823 = vadd.f32 0.0, %v1822
        %v1824 = vpop.f32.mrf.mxu0
        %v1825 = vadd.f32 0.0, %v1824
        %1826 = vmatmul.bf16.gmra.mxu0 %v1303
        %v1827 = vpop.f32.mrf.mxu0
        %v1828 = vadd.f32 0.0, %v1827
        %v1829 = vpop.f32.mrf.mxu0
        %v1830 = vadd.f32 0.0, %v1829
        %1831 = vmatmul.bf16.gmra.mxu0 %v1307
        %v1832 = vpop.f32.mrf.mxu0
        %v1833 = vadd.f32 0.0, %v1832
        %v1834 = vpop.f32.mrf.mxu0
        %v1835 = vadd.f32 0.0, %v1834
        %1836 = vmatmul.bf16.gmra.mxu0 %v1311
        %v1837 = vpop.f32.mrf.mxu0
        %v1838 = vadd.f32 0.0, %v1837
        %v1839 = vpop.f32.mrf.mxu0
        %v1840 = vadd.f32 0.0, %v1839
        %1841 = vmatmul.bf16.gmra.mxu0 %v1315
        %v1842 = vpop.f32.mrf.mxu0
        %v1843 = vadd.f32 0.0, %v1842
        %v1844 = vpop.f32.mrf.mxu0
        %v1845 = vadd.f32 0.0, %v1844
        %1846 = vmatmul.bf16.gmra.mxu0 %v1319
        %v1847 = vpop.f32.mrf.mxu0
        %v1848 = vadd.f32 0.0, %v1847
        %v1849 = vpop.f32.mrf.mxu0
        %v1850 = vadd.f32 0.0, %v1849
        %1851 = vmatmul.bf16.gmra.mxu0 %v1323
        %v1852 = vpop.f32.mrf.mxu0
        %v1853 = vadd.f32 0.0, %v1852
        %v1854 = vpop.f32.mrf.mxu0
        %v1855 = vadd.f32 0.0, %v1854
        %1856 = vmatmul.bf16.gmra.mxu0 %v1327
        %v1857 = vpop.f32.mrf.mxu0
        %v1858 = vadd.f32 0.0, %v1857
        %v1859 = vpop.f32.mrf.mxu0
        %v1860 = vadd.f32 0.0, %v1859
        %1861 = vmatmul.bf16.gmra.mxu0 %v1331
        %v1862 = vpop.f32.mrf.mxu0
        %v1863 = vadd.f32 0.0, %v1862
        %v1864 = vpop.f32.mrf.mxu0
        %v1865 = vadd.f32 0.0, %v1864
        %1866 = vmatmul.bf16.gmra.mxu0 %v1335
        %v1867 = vpop.f32.mrf.mxu0
        %v1868 = vadd.f32 0.0, %v1867
        %v1869 = vpop.f32.mrf.mxu0
        %v1870 = vadd.f32 0.0, %v1869
        %1871 = vmatmul.bf16.gmra.mxu0 %v1339
        %v1872 = vpop.f32.mrf.mxu0
        %v1873 = vadd.f32 0.0, %v1872
        %v1874 = vpop.f32.mrf.mxu0
        %v1875 = vadd.f32 0.0, %v1874
        %1876 = vmatmul.bf16.gmra.mxu0 %v1343
        %v1877 = vpop.f32.mrf.mxu0
        %v1878 = vadd.f32 0.0, %v1877
        %v1879 = vpop.f32.mrf.mxu0
        %v1880 = vadd.f32 0.0, %v1879
        %1881 = vmatmul.bf16.gmra.mxu0 %v1347
        %v1882 = vpop.f32.mrf.mxu0
        %v1883 = vadd.f32 0.0, %v1882
        %v1884 = vpop.f32.mrf.mxu0
        %v1885 = vadd.f32 0.0, %v1884
        %1886 = vmatmul.bf16.gmra.mxu0 %v1351
        %v1887 = vpop.f32.mrf.mxu0
        %v1888 = vadd.f32 0.0, %v1887
        %v1889 = vpop.f32.mrf.mxu0
        %v1890 = vadd.f32 0.0, %v1889
        %1891 = vmatmul.bf16.gmra.mxu0 %v1355
        %v1892 = vpop.f32.mrf.mxu0
        %v1893 = vadd.f32 0.0, %v1892
        %v1894 = vpop.f32.mrf.mxu0
        %v1895 = vadd.f32 0.0, %v1894
        %1896 = vmatmul.bf16.gmra.mxu0 %v1359
        %v1897 = vpop.f32.mrf.mxu0
        %v1898 = vadd.f32 0.0, %v1897
        %v1899 = vpop.f32.mrf.mxu0
        %v1900 = vadd.f32 0.0, %v1899
        %1901 = vmatmul.bf16.gmra.mxu0 %v1363
        %v1902 = vpop.f32.mrf.mxu0
        %v1903 = vadd.f32 0.0, %v1902
        %v1904 = vpop.f32.mrf.mxu0
        %v1905 = vadd.f32 0.0, %v1904
        %1906 = vmatmul.bf16.gmra.mxu0 %v1367
        %v1907 = vpop.f32.mrf.mxu0
        %v1908 = vadd.f32 0.0, %v1907
        %v1909 = vpop.f32.mrf.mxu0
        %v1910 = vadd.f32 0.0, %v1909
        %1911 = vmatmul.bf16.gmra.mxu0 %v1371
        %v1912 = vpop.f32.mrf.mxu0
        %v1913 = vadd.f32 0.0, %v1912
        %v1914 = vpop.f32.mrf.mxu0
        %v1915 = vadd.f32 0.0, %v1914
        %1916 = vmatmul.bf16.gmra.mxu0 %v1375
        %v1917 = vpop.f32.mrf.mxu0
        %v1918 = vadd.f32 0.0, %v1917
        %v1919 = vpop.f32.mrf.mxu0
        %v1920 = vadd.f32 0.0, %v1919
        %1921 = vmatmul.bf16.gmra.mxu0 %v1379
        %v1922 = vpop.f32.mrf.mxu0
        %v1923 = vadd.f32 0.0, %v1922
        %v1924 = vpop.f32.mrf.mxu0
        %v1925 = vadd.f32 0.0, %v1924
        %1926 = vmatmul.bf16.gmra.mxu0 %v1383
        %v1927 = vpop.f32.mrf.mxu0
        %v1928 = vadd.f32 0.0, %v1927
        %v1929 = vpop.f32.mrf.mxu0
        %v1930 = vadd.f32 0.0, %v1929
        %1931 = vmatmul.bf16.gmra.mxu0 %v1387
        %v1932 = vpop.f32.mrf.mxu0
        %v1933 = vadd.f32 0.0, %v1932
        %v1934 = vpop.f32.mrf.mxu0
        %v1935 = vadd.f32 0.0, %v1934
        %1936 = vmatmul.bf16.gmra.mxu0 %v1391
        %v1937 = vpop.f32.mrf.mxu0
        %v1938 = vadd.f32 0.0, %v1937
        %v1939 = vpop.f32.mrf.mxu0
        %v1940 = vadd.f32 0.0, %v1939
        %1941 = vmatmul.bf16.gmra.mxu0 %v1395
        %v1942 = vpop.f32.mrf.mxu0
        %v1943 = vadd.f32 0.0, %v1942
        %v1944 = vpop.f32.mrf.mxu0
        %v1945 = vadd.f32 0.0, %v1944
        %1946 = vmatmul.bf16.gmra.mxu0 %v1399
        %v1947 = vpop.f32.mrf.mxu0
        %v1948 = vadd.f32 0.0, %v1947
        %v1949 = vpop.f32.mrf.mxu0
        %v1950 = vadd.f32 0.0, %v1949
        %1951 = vmatmul.bf16.gmra.mxu0 %v1403
        %v1952 = vpop.f32.mrf.mxu0
        %v1953 = vadd.f32 0.0, %v1952
        %v1954 = vpop.f32.mrf.mxu0
        %v1955 = vadd.f32 0.0, %v1954
        %1956 = vmatmul.bf16.gmra.mxu0 %v1407
        %v1957 = vpop.f32.mrf.mxu0
        %v1958 = vadd.f32 0.0, %v1957
        %v1959 = vpop.f32.mrf.mxu0
        %v1960 = vadd.f32 0.0, %v1959
        %1961 = vmatmul.bf16.gmra.mxu0 %v1411
        %v1962 = vpop.f32.mrf.mxu0
        %v1963 = vadd.f32 0.0, %v1962
        %v1964 = vpop.f32.mrf.mxu0
        %v1965 = vadd.f32 0.0, %v1964
        %1966 = vmatmul.bf16.gmra.mxu0 %v1415
        %v1967 = vpop.f32.mrf.mxu0
        %v1968 = vadd.f32 0.0, %v1967
        %v1969 = vpop.f32.mrf.mxu0
        %v1970 = vadd.f32 0.0, %v1969
        %1971 = vdwg.mxu0
        %1972 = vmatpush.bf16.msra.mxu0 %v1705
        %1973 = vmatpush.bf16.msra.mxu0 %v1703
        %1974 = vmatpush.bf16.msra.mxu0 %v1701
        %1975 = vmatpush.bf16.msra.mxu0 %v1699
        %1976 = vmatpush.bf16.msra.mxu0 %v1697
        %1977 = vmatpush.bf16.msra.mxu0 %v1695
        %1978 = vmatpush.bf16.msra.mxu0 %v1693
        %1979 = vmatpush.bf16.msra.mxu0 %v1691
        %1980 = vmatmul.bf16.gmra.mxu0 %v1292
        %v1981 = vpop.f32.mrf.mxu0
        %v1982 = vadd.f32 %v1813, %v1981
        %v1983 = vpop.f32.mrf.mxu0
        %v1984 = vadd.f32 %v1815, %v1983
        %1985 = vmatmul.bf16.gmra.mxu0 %v1296
        %v1986 = vpop.f32.mrf.mxu0
        %v1987 = vadd.f32 %v1818, %v1986
        %v1988 = vpop.f32.mrf.mxu0
        %v1989 = vadd.f32 %v1820, %v1988
        %1990 = vmatmul.bf16.gmra.mxu0 %v1300
        %v1991 = vpop.f32.mrf.mxu0
        %v1992 = vadd.f32 %v1823, %v1991
        %v1993 = vpop.f32.mrf.mxu0
        %v1994 = vadd.f32 %v1825, %v1993
        %1995 = vmatmul.bf16.gmra.mxu0 %v1304
        %v1996 = vpop.f32.mrf.mxu0
        %v1997 = vadd.f32 %v1828, %v1996
        %v1998 = vpop.f32.mrf.mxu0
        %v1999 = vadd.f32 %v1830, %v1998
        %2000 = vmatmul.bf16.gmra.mxu0 %v1308
        %v2001 = vpop.f32.mrf.mxu0
        %v2002 = vadd.f32 %v1833, %v2001
        %v2003 = vpop.f32.mrf.mxu0
        %v2004 = vadd.f32 %v1835, %v2003
        %2005 = vmatmul.bf16.gmra.mxu0 %v1312
        %v2006 = vpop.f32.mrf.mxu0
        %v2007 = vadd.f32 %v1838, %v2006
        %v2008 = vpop.f32.mrf.mxu0
        %v2009 = vadd.f32 %v1840, %v2008
        %2010 = vmatmul.bf16.gmra.mxu0 %v1316
        %v2011 = vpop.f32.mrf.mxu0
        %v2012 = vadd.f32 %v1843, %v2011
        %v2013 = vpop.f32.mrf.mxu0
        %v2014 = vadd.f32 %v1845, %v2013
        %2015 = vmatmul.bf16.gmra.mxu0 %v1320
        %v2016 = vpop.f32.mrf.mxu0
        %v2017 = vadd.f32 %v1848, %v2016
        %v2018 = vpop.f32.mrf.mxu0
        %v2019 = vadd.f32 %v1850, %v2018
        %2020 = vmatmul.bf16.gmra.mxu0 %v1324
        %v2021 = vpop.f32.mrf.mxu0
        %v2022 = vadd.f32 %v1853, %v2021
        %v2023 = vpop.f32.mrf.mxu0
        %v2024 = vadd.f32 %v1855, %v2023
        %2025 = vmatmul.bf16.gmra.mxu0 %v1328
        %v2026 = vpop.f32.mrf.mxu0
        %v2027 = vadd.f32 %v1858, %v2026
        %v2028 = vpop.f32.mrf.mxu0
        %v2029 = vadd.f32 %v1860, %v2028
        %2030 = vmatmul.bf16.gmra.mxu0 %v1332
        %v2031 = vpop.f32.mrf.mxu0
        %v2032 = vadd.f32 %v1863, %v2031
        %v2033 = vpop.f32.mrf.mxu0
        %v2034 = vadd.f32 %v1865, %v2033
        %2035 = vmatmul.bf16.gmra.mxu0 %v1336
        %v2036 = vpop.f32.mrf.mxu0
        %v2037 = vadd.f32 %v1868, %v2036
        %v2038 = vpop.f32.mrf.mxu0
        %v2039 = vadd.f32 %v1870, %v2038
        %2040 = vmatmul.bf16.gmra.mxu0 %v1340
        %v2041 = vpop.f32.mrf.mxu0
        %v2042 = vadd.f32 %v1873, %v2041
        %v2043 = vpop.f32.mrf.mxu0
        %v2044 = vadd.f32 %v1875, %v2043
        %2045 = vmatmul.bf16.gmra.mxu0 %v1344
        %v2046 = vpop.f32.mrf.mxu0
        %v2047 = vadd.f32 %v1878, %v2046
        %v2048 = vpop.f32.mrf.mxu0
        %v2049 = vadd.f32 %v1880, %v2048
        %2050 = vmatmul.bf16.gmra.mxu0 %v1348
        %v2051 = vpop.f32.mrf.mxu0
        %v2052 = vadd.f32 %v1883, %v2051
        %v2053 = vpop.f32.mrf.mxu0
        %v2054 = vadd.f32 %v1885, %v2053
        %2055 = vmatmul.bf16.gmra.mxu0 %v1352
        %v2056 = vpop.f32.mrf.mxu0
        %v2057 = vadd.f32 %v1888, %v2056
        %v2058 = vpop.f32.mrf.mxu0
        %v2059 = vadd.f32 %v1890, %v2058
        %2060 = vmatmul.bf16.gmra.mxu0 %v1356
        %v2061 = vpop.f32.mrf.mxu0
        %v2062 = vadd.f32 %v1893, %v2061
        %v2063 = vpop.f32.mrf.mxu0
        %v2064 = vadd.f32 %v1895, %v2063
        %2065 = vmatmul.bf16.gmra.mxu0 %v1360
        %v2066 = vpop.f32.mrf.mxu0
        %v2067 = vadd.f32 %v1898, %v2066
        %v2068 = vpop.f32.mrf.mxu0
        %v2069 = vadd.f32 %v1900, %v2068
        %2070 = vmatmul.bf16.gmra.mxu0 %v1364
        %v2071 = vpop.f32.mrf.mxu0
        %v2072 = vadd.f32 %v1903, %v2071
        %v2073 = vpop.f32.mrf.mxu0
        %v2074 = vadd.f32 %v1905, %v2073
        %2075 = vmatmul.bf16.gmra.mxu0 %v1368
        %v2076 = vpop.f32.mrf.mxu0
        %v2077 = vadd.f32 %v1908, %v2076
        %v2078 = vpop.f32.mrf.mxu0
        %v2079 = vadd.f32 %v1910, %v2078
        %2080 = vmatmul.bf16.gmra.mxu0 %v1372
        %v2081 = vpop.f32.mrf.mxu0
        %v2082 = vadd.f32 %v1913, %v2081
        %v2083 = vpop.f32.mrf.mxu0
        %v2084 = vadd.f32 %v1915, %v2083
        %2085 = vmatmul.bf16.gmra.mxu0 %v1376
        %v2086 = vpop.f32.mrf.mxu0
        %v2087 = vadd.f32 %v1918, %v2086
        %v2088 = vpop.f32.mrf.mxu0
        %v2089 = vadd.f32 %v1920, %v2088
        %2090 = vmatmul.bf16.gmra.mxu0 %v1380
        %v2091 = vpop.f32.mrf.mxu0
        %v2092 = vadd.f32 %v1923, %v2091
        %v2093 = vpop.f32.mrf.mxu0
        %v2094 = vadd.f32 %v1925, %v2093
        %2095 = vmatmul.bf16.gmra.mxu0 %v1384
        %v2096 = vpop.f32.mrf.mxu0
        %v2097 = vadd.f32 %v1928, %v2096
        %v2098 = vpop.f32.mrf.mxu0
        %v2099 = vadd.f32 %v1930, %v2098
        %2100 = vmatmul.bf16.gmra.mxu0 %v1388
        %v2101 = vpop.f32.mrf.mxu0
        %v2102 = vadd.f32 %v1933, %v2101
        %v2103 = vpop.f32.mrf.mxu0
        %v2104 = vadd.f32 %v1935, %v2103
        %2105 = vmatmul.bf16.gmra.mxu0 %v1392
        %v2106 = vpop.f32.mrf.mxu0
        %v2107 = vadd.f32 %v1938, %v2106
        %v2108 = vpop.f32.mrf.mxu0
        %v2109 = vadd.f32 %v1940, %v2108
        %2110 = vmatmul.bf16.gmra.mxu0 %v1396
        %v2111 = vpop.f32.mrf.mxu0
        %v2112 = vadd.f32 %v1943, %v2111
        %v2113 = vpop.f32.mrf.mxu0
        %v2114 = vadd.f32 %v1945, %v2113
        %2115 = vmatmul.bf16.gmra.mxu0 %v1400
        %v2116 = vpop.f32.mrf.mxu0
        %v2117 = vadd.f32 %v1948, %v2116
        %v2118 = vpop.f32.mrf.mxu0
        %v2119 = vadd.f32 %v1950, %v2118
        %2120 = vmatmul.bf16.gmra.mxu0 %v1404
        %v2121 = vpop.f32.mrf.mxu0
        %v2122 = vadd.f32 %v1953, %v2121
        %v2123 = vpop.f32.mrf.mxu0
        %v2124 = vadd.f32 %v1955, %v2123
        %2125 = vmatmul.bf16.gmra.mxu0 %v1408
        %v2126 = vpop.f32.mrf.mxu0
        %v2127 = vadd.f32 %v1958, %v2126
        %v2128 = vpop.f32.mrf.mxu0
        %v2129 = vadd.f32 %v1960, %v2128
        %2130 = vmatmul.bf16.gmra.mxu0 %v1412
        %v2131 = vpop.f32.mrf.mxu0
        %v2132 = vadd.f32 %v1963, %v2131
        %v2133 = vpop.f32.mrf.mxu0
        %v2134 = vadd.f32 %v1965, %v2133
        %2135 = vmatmul.bf16.gmra.mxu0 %v1416
        %v2136 = vpop.f32.mrf.mxu0
        %v2137 = vadd.f32 %v1968, %v2136
        %v2138 = vpop.f32.mrf.mxu0
        %v2139 = vadd.f32 %v1970, %v2138
        %2140 = vdwg.mxu0
        %2141 = vmatpush.bf16.msra.mxu0 %v1721
        %2142 = vmatpush.bf16.msra.mxu0 %v1719
        %2143 = vmatpush.bf16.msra.mxu0 %v1717
        %2144 = vmatpush.bf16.msra.mxu0 %v1715
        %2145 = vmatpush.bf16.msra.mxu0 %v1713
        %2146 = vmatpush.bf16.msra.mxu0 %v1711
        %2147 = vmatpush.bf16.msra.mxu0 %v1709
        %2148 = vmatpush.bf16.msra.mxu0 %v1707
        %2149 = vmatmul.bf16.gmra.mxu0 %v1293
        %v2150 = vpop.f32.mrf.mxu0
        %v2151 = vadd.f32 %v1982, %v2150
        %v2152 = vpop.f32.mrf.mxu0
        %v2153 = vadd.f32 %v1984, %v2152
        %2154 = vmatmul.bf16.gmra.mxu0 %v1297
        %v2155 = vpop.f32.mrf.mxu0
        %v2156 = vadd.f32 %v1987, %v2155
        %v2157 = vpop.f32.mrf.mxu0
        %v2158 = vadd.f32 %v1989, %v2157
        %2159 = vmatmul.bf16.gmra.mxu0 %v1301
        %v2160 = vpop.f32.mrf.mxu0
        %v2161 = vadd.f32 %v1992, %v2160
        %v2162 = vpop.f32.mrf.mxu0
        %v2163 = vadd.f32 %v1994, %v2162
        %2164 = vmatmul.bf16.gmra.mxu0 %v1305
        %v2165 = vpop.f32.mrf.mxu0
        %v2166 = vadd.f32 %v1997, %v2165
        %v2167 = vpop.f32.mrf.mxu0
        %v2168 = vadd.f32 %v1999, %v2167
        %2169 = vmatmul.bf16.gmra.mxu0 %v1309
        %v2170 = vpop.f32.mrf.mxu0
        %v2171 = vadd.f32 %v2002, %v2170
        %v2172 = vpop.f32.mrf.mxu0
        %v2173 = vadd.f32 %v2004, %v2172
        %2174 = vmatmul.bf16.gmra.mxu0 %v1313
        %v2175 = vpop.f32.mrf.mxu0
        %v2176 = vadd.f32 %v2007, %v2175
        %v2177 = vpop.f32.mrf.mxu0
        %v2178 = vadd.f32 %v2009, %v2177
        %2179 = vmatmul.bf16.gmra.mxu0 %v1317
        %v2180 = vpop.f32.mrf.mxu0
        %v2181 = vadd.f32 %v2012, %v2180
        %v2182 = vpop.f32.mrf.mxu0
        %v2183 = vadd.f32 %v2014, %v2182
        %2184 = vmatmul.bf16.gmra.mxu0 %v1321
        %v2185 = vpop.f32.mrf.mxu0
        %v2186 = vadd.f32 %v2017, %v2185
        %v2187 = vpop.f32.mrf.mxu0
        %v2188 = vadd.f32 %v2019, %v2187
        %2189 = vmatmul.bf16.gmra.mxu0 %v1325
        %v2190 = vpop.f32.mrf.mxu0
        %v2191 = vadd.f32 %v2022, %v2190
        %v2192 = vpop.f32.mrf.mxu0
        %v2193 = vadd.f32 %v2024, %v2192
        %2194 = vmatmul.bf16.gmra.mxu0 %v1329
        %v2195 = vpop.f32.mrf.mxu0
        %v2196 = vadd.f32 %v2027, %v2195
        %v2197 = vpop.f32.mrf.mxu0
        %v2198 = vadd.f32 %v2029, %v2197
        %2199 = vmatmul.bf16.gmra.mxu0 %v1333
        %v2200 = vpop.f32.mrf.mxu0
        %v2201 = vadd.f32 %v2032, %v2200
        %v2202 = vpop.f32.mrf.mxu0
        %v2203 = vadd.f32 %v2034, %v2202
        %2204 = vmatmul.bf16.gmra.mxu0 %v1337
        %v2205 = vpop.f32.mrf.mxu0
        %v2206 = vadd.f32 %v2037, %v2205
        %v2207 = vpop.f32.mrf.mxu0
        %v2208 = vadd.f32 %v2039, %v2207
        %2209 = vmatmul.bf16.gmra.mxu0 %v1341
        %v2210 = vpop.f32.mrf.mxu0
        %v2211 = vadd.f32 %v2042, %v2210
        %v2212 = vpop.f32.mrf.mxu0
        %v2213 = vadd.f32 %v2044, %v2212
        %2214 = vmatmul.bf16.gmra.mxu0 %v1345
        %v2215 = vpop.f32.mrf.mxu0
        %v2216 = vadd.f32 %v2047, %v2215
        %v2217 = vpop.f32.mrf.mxu0
        %v2218 = vadd.f32 %v2049, %v2217
        %2219 = vmatmul.bf16.gmra.mxu0 %v1349
        %v2220 = vpop.f32.mrf.mxu0
        %v2221 = vadd.f32 %v2052, %v2220
        %v2222 = vpop.f32.mrf.mxu0
        %v2223 = vadd.f32 %v2054, %v2222
        %2224 = vmatmul.bf16.gmra.mxu0 %v1353
        %v2225 = vpop.f32.mrf.mxu0
        %v2226 = vadd.f32 %v2057, %v2225
        %v2227 = vpop.f32.mrf.mxu0
        %v2228 = vadd.f32 %v2059, %v2227
        %2229 = vmatmul.bf16.gmra.mxu0 %v1357
        %v2230 = vpop.f32.mrf.mxu0
        %v2231 = vadd.f32 %v2062, %v2230
        %v2232 = vpop.f32.mrf.mxu0
        %v2233 = vadd.f32 %v2064, %v2232
        %2234 = vmatmul.bf16.gmra.mxu0 %v1361
        %v2235 = vpop.f32.mrf.mxu0
        %v2236 = vadd.f32 %v2067, %v2235
        %v2237 = vpop.f32.mrf.mxu0
        %v2238 = vadd.f32 %v2069, %v2237
        %2239 = vmatmul.bf16.gmra.mxu0 %v1365
        %v2240 = vpop.f32.mrf.mxu0
        %v2241 = vadd.f32 %v2072, %v2240
        %v2242 = vpop.f32.mrf.mxu0
        %v2243 = vadd.f32 %v2074, %v2242
        %2244 = vmatmul.bf16.gmra.mxu0 %v1369
        %v2245 = vpop.f32.mrf.mxu0
        %v2246 = vadd.f32 %v2077, %v2245
        %v2247 = vpop.f32.mrf.mxu0
        %v2248 = vadd.f32 %v2079, %v2247
        %2249 = vmatmul.bf16.gmra.mxu0 %v1373
        %v2250 = vpop.f32.mrf.mxu0
        %v2251 = vadd.f32 %v2082, %v2250
        %v2252 = vpop.f32.mrf.mxu0
        %v2253 = vadd.f32 %v2084, %v2252
        %2254 = vmatmul.bf16.gmra.mxu0 %v1377
        %v2255 = vpop.f32.mrf.mxu0
        %v2256 = vadd.f32 %v2087, %v2255
        %v2257 = vpop.f32.mrf.mxu0
        %v2258 = vadd.f32 %v2089, %v2257
        %2259 = vmatmul.bf16.gmra.mxu0 %v1381
        %v2260 = vpop.f32.mrf.mxu0
        %v2261 = vadd.f32 %v2092, %v2260
        %v2262 = vpop.f32.mrf.mxu0
        %v2263 = vadd.f32 %v2094, %v2262
        %2264 = vmatmul.bf16.gmra.mxu0 %v1385
        %v2265 = vpop.f32.mrf.mxu0
        %v2266 = vadd.f32 %v2097, %v2265
        %v2267 = vpop.f32.mrf.mxu0
        %v2268 = vadd.f32 %v2099, %v2267
        %2269 = vmatmul.bf16.gmra.mxu0 %v1389
        %v2270 = vpop.f32.mrf.mxu0
        %v2271 = vadd.f32 %v2102, %v2270
        %v2272 = vpop.f32.mrf.mxu0
        %v2273 = vadd.f32 %v2104, %v2272
        %2274 = vmatmul.bf16.gmra.mxu0 %v1393
        %v2275 = vpop.f32.mrf.mxu0
        %v2276 = vadd.f32 %v2107, %v2275
        %v2277 = vpop.f32.mrf.mxu0
        %v2278 = vadd.f32 %v2109, %v2277
        %2279 = vmatmul.bf16.gmra.mxu0 %v1397
        %v2280 = vpop.f32.mrf.mxu0
        %v2281 = vadd.f32 %v2112, %v2280
        %v2282 = vpop.f32.mrf.mxu0
        %v2283 = vadd.f32 %v2114, %v2282
        %2284 = vmatmul.bf16.gmra.mxu0 %v1401
        %v2285 = vpop.f32.mrf.mxu0
        %v2286 = vadd.f32 %v2117, %v2285
        %v2287 = vpop.f32.mrf.mxu0
        %v2288 = vadd.f32 %v2119, %v2287
        %2289 = vmatmul.bf16.gmra.mxu0 %v1405
        %v2290 = vpop.f32.mrf.mxu0
        %v2291 = vadd.f32 %v2122, %v2290
        %v2292 = vpop.f32.mrf.mxu0
        %v2293 = vadd.f32 %v2124, %v2292
        %2294 = vmatmul.bf16.gmra.mxu0 %v1409
        %v2295 = vpop.f32.mrf.mxu0
        %v2296 = vadd.f32 %v2127, %v2295
        %v2297 = vpop.f32.mrf.mxu0
        %v2298 = vadd.f32 %v2129, %v2297
        %2299 = vmatmul.bf16.gmra.mxu0 %v1413
        %v2300 = vpop.f32.mrf.mxu0
        %v2301 = vadd.f32 %v2132, %v2300
        %v2302 = vpop.f32.mrf.mxu0
        %v2303 = vadd.f32 %v2134, %v2302
        %2304 = vmatmul.bf16.gmra.mxu0 %v1417
        %v2305 = vpop.f32.mrf.mxu0
        %v2306 = vadd.f32 %v2137, %v2305
        %v2307 = vpop.f32.mrf.mxu0
        %v2308 = vadd.f32 %v2139, %v2307
        %2309 = vdwg.mxu0
        %2310 = vmatpush.bf16.msra.mxu0 %v1737
        %2311 = vmatpush.bf16.msra.mxu0 %v1735
        %2312 = vmatpush.bf16.msra.mxu0 %v1733
        %2313 = vmatpush.bf16.msra.mxu0 %v1731
        %2314 = vmatpush.bf16.msra.mxu0 %v1729
        %2315 = vmatpush.bf16.msra.mxu0 %v1727
        %2316 = vmatpush.bf16.msra.mxu0 %v1725
        %2317 = vmatpush.bf16.msra.mxu0 %v1723
        %2318 = vmatmul.bf16.gmra.mxu0 %v1294
        %v2319 = vpop.f32.mrf.mxu0
        %v2320 = vadd.f32 %v2151, %v2319
        %v2321 = vpop.f32.mrf.mxu0
        %v2322 = vadd.f32 %v2153, %v2321
        %2323 = vmatmul.bf16.gmra.mxu0 %v1298
        %v2324 = vpop.f32.mrf.mxu0
        %v2325 = vadd.f32 %v2156, %v2324
        %v2326 = vpop.f32.mrf.mxu0
        %v2327 = vadd.f32 %v2158, %v2326
        %2328 = vmatmul.bf16.gmra.mxu0 %v1302
        %v2329 = vpop.f32.mrf.mxu0
        %v2330 = vadd.f32 %v2161, %v2329
        %v2331 = vpop.f32.mrf.mxu0
        %v2332 = vadd.f32 %v2163, %v2331
        %2333 = vmatmul.bf16.gmra.mxu0 %v1306
        %v2334 = vpop.f32.mrf.mxu0
        %v2335 = vadd.f32 %v2166, %v2334
        %v2336 = vpop.f32.mrf.mxu0
        %v2337 = vadd.f32 %v2168, %v2336
        %2338 = vmatmul.bf16.gmra.mxu0 %v1310
        %v2339 = vpop.f32.mrf.mxu0
        %v2340 = vadd.f32 %v2171, %v2339
        %v2341 = vpop.f32.mrf.mxu0
        %v2342 = vadd.f32 %v2173, %v2341
        %2343 = vmatmul.bf16.gmra.mxu0 %v1314
        %v2344 = vpop.f32.mrf.mxu0
        %v2345 = vadd.f32 %v2176, %v2344
        %v2346 = vpop.f32.mrf.mxu0
        %v2347 = vadd.f32 %v2178, %v2346
        %2348 = vmatmul.bf16.gmra.mxu0 %v1318
        %v2349 = vpop.f32.mrf.mxu0
        %v2350 = vadd.f32 %v2181, %v2349
        %v2351 = vpop.f32.mrf.mxu0
        %v2352 = vadd.f32 %v2183, %v2351
        %2353 = vmatmul.bf16.gmra.mxu0 %v1322
        %v2354 = vpop.f32.mrf.mxu0
        %v2355 = vadd.f32 %v2186, %v2354
        %v2356 = vpop.f32.mrf.mxu0
        %v2357 = vadd.f32 %v2188, %v2356
        %2358 = vmatmul.bf16.gmra.mxu0 %v1326
        %v2359 = vpop.f32.mrf.mxu0
        %v2360 = vadd.f32 %v2191, %v2359
        %v2361 = vpop.f32.mrf.mxu0
        %v2362 = vadd.f32 %v2193, %v2361
        %2363 = vmatmul.bf16.gmra.mxu0 %v1330
        %v2364 = vpop.f32.mrf.mxu0
        %v2365 = vadd.f32 %v2196, %v2364
        %v2366 = vpop.f32.mrf.mxu0
        %v2367 = vadd.f32 %v2198, %v2366
        %2368 = vmatmul.bf16.gmra.mxu0 %v1334
        %v2369 = vpop.f32.mrf.mxu0
        %v2370 = vadd.f32 %v2201, %v2369
        %v2371 = vpop.f32.mrf.mxu0
        %v2372 = vadd.f32 %v2203, %v2371
        %2373 = vmatmul.bf16.gmra.mxu0 %v1338
        %v2374 = vpop.f32.mrf.mxu0
        %v2375 = vadd.f32 %v2206, %v2374
        %v2376 = vpop.f32.mrf.mxu0
        %v2377 = vadd.f32 %v2208, %v2376
        %2378 = vmatmul.bf16.gmra.mxu0 %v1342
        %v2379 = vpop.f32.mrf.mxu0
        %v2380 = vadd.f32 %v2211, %v2379
        %v2381 = vpop.f32.mrf.mxu0
        %v2382 = vadd.f32 %v2213, %v2381
        %2383 = vmatmul.bf16.gmra.mxu0 %v1346
        %v2384 = vpop.f32.mrf.mxu0
        %v2385 = vadd.f32 %v2216, %v2384
        %v2386 = vpop.f32.mrf.mxu0
        %v2387 = vadd.f32 %v2218, %v2386
        %2388 = vmatmul.bf16.gmra.mxu0 %v1350
        %v2389 = vpop.f32.mrf.mxu0
        %v2390 = vadd.f32 %v2221, %v2389
        %v2391 = vpop.f32.mrf.mxu0
        %v2392 = vadd.f32 %v2223, %v2391
        %2393 = vmatmul.bf16.gmra.mxu0 %v1354
        %v2394 = vpop.f32.mrf.mxu0
        %v2395 = vadd.f32 %v2226, %v2394
        %v2396 = vpop.f32.mrf.mxu0
        %v2397 = vadd.f32 %v2228, %v2396
        %2398 = vmatmul.bf16.gmra.mxu0 %v1358
        %v2399 = vpop.f32.mrf.mxu0
        %v2400 = vadd.f32 %v2231, %v2399
        %v2401 = vpop.f32.mrf.mxu0
        %v2402 = vadd.f32 %v2233, %v2401
        %2403 = vmatmul.bf16.gmra.mxu0 %v1362
        %v2404 = vpop.f32.mrf.mxu0
        %v2405 = vadd.f32 %v2236, %v2404
        %v2406 = vpop.f32.mrf.mxu0
        %v2407 = vadd.f32 %v2238, %v2406
        %2408 = vmatmul.bf16.gmra.mxu0 %v1366
        %v2409 = vpop.f32.mrf.mxu0
        %v2410 = vadd.f32 %v2241, %v2409
        %v2411 = vpop.f32.mrf.mxu0
        %v2412 = vadd.f32 %v2243, %v2411
        %2413 = vmatmul.bf16.gmra.mxu0 %v1370
        %v2414 = vpop.f32.mrf.mxu0
        %v2415 = vadd.f32 %v2246, %v2414
        %v2416 = vpop.f32.mrf.mxu0
        %v2417 = vadd.f32 %v2248, %v2416
        %2418 = vmatmul.bf16.gmra.mxu0 %v1374
        %v2419 = vpop.f32.mrf.mxu0
        %v2420 = vadd.f32 %v2251, %v2419
        %v2421 = vpop.f32.mrf.mxu0
        %v2422 = vadd.f32 %v2253, %v2421
        %2423 = vmatmul.bf16.gmra.mxu0 %v1378
        %v2424 = vpop.f32.mrf.mxu0
        %v2425 = vadd.f32 %v2256, %v2424
        %v2426 = vpop.f32.mrf.mxu0
        %v2427 = vadd.f32 %v2258, %v2426
        %2428 = vmatmul.bf16.gmra.mxu0 %v1382
        %v2429 = vpop.f32.mrf.mxu0
        %v2430 = vadd.f32 %v2261, %v2429
        %v2431 = vpop.f32.mrf.mxu0
        %v2432 = vadd.f32 %v2263, %v2431
        %2433 = vmatmul.bf16.gmra.mxu0 %v1386
        %v2434 = vpop.f32.mrf.mxu0
        %v2435 = vadd.f32 %v2266, %v2434
        %v2436 = vpop.f32.mrf.mxu0
        %v2437 = vadd.f32 %v2268, %v2436
        %2438 = vmatmul.bf16.gmra.mxu0 %v1390
        %v2439 = vpop.f32.mrf.mxu0
        %v2440 = vadd.f32 %v2271, %v2439
        %v2441 = vpop.f32.mrf.mxu0
        %v2442 = vadd.f32 %v2273, %v2441
        %2443 = vmatmul.bf16.gmra.mxu0 %v1394
        %v2444 = vpop.f32.mrf.mxu0
        %v2445 = vadd.f32 %v2276, %v2444
        %v2446 = vpop.f32.mrf.mxu0
        %v2447 = vadd.f32 %v2278, %v2446
        %2448 = vmatmul.bf16.gmra.mxu0 %v1398
        %v2449 = vpop.f32.mrf.mxu0
        %v2450 = vadd.f32 %v2281, %v2449
        %v2451 = vpop.f32.mrf.mxu0
        %v2452 = vadd.f32 %v2283, %v2451
        %2453 = vmatmul.bf16.gmra.mxu0 %v1402
        %v2454 = vpop.f32.mrf.mxu0
        %v2455 = vadd.f32 %v2286, %v2454
        %v2456 = vpop.f32.mrf.mxu0
        %v2457 = vadd.f32 %v2288, %v2456
        %2458 = vmatmul.bf16.gmra.mxu0 %v1406
        %v2459 = vpop.f32.mrf.mxu0
        %v2460 = vadd.f32 %v2291, %v2459
        %v2461 = vpop.f32.mrf.mxu0
        %v2462 = vadd.f32 %v2293, %v2461
        %2463 = vmatmul.bf16.gmra.mxu0 %v1410
        %v2464 = vpop.f32.mrf.mxu0
        %v2465 = vadd.f32 %v2296, %v2464
        %v2466 = vpop.f32.mrf.mxu0
        %v2467 = vadd.f32 %v2298, %v2466
        %2468 = vmatmul.bf16.gmra.mxu0 %v1414
        %v2469 = vpop.f32.mrf.mxu0
        %v2470 = vadd.f32 %v2301, %v2469
        %v2471 = vpop.f32.mrf.mxu0
        %v2472 = vadd.f32 %v2303, %v2471
        %2473 = vmatmul.bf16.gmra.mxu0 %v1418
        %v2474 = vpop.f32.mrf.mxu0
        %v2475 = vadd.f32 %v2306, %v2474
        %v2476 = vpop.f32.mrf.mxu0
        %v2477 = vadd.f32 %v2308, %v2476
        %2478 = vdwg.mxu0
        %2479 = vmatpush.bf16.msra.mxu0 %v1690
        %2480 = vmatpush.bf16.msra.mxu0 %v1688
        %2481 = vmatpush.bf16.msra.mxu0 %v1686
        %2482 = vmatpush.bf16.msra.mxu0 %v1684
        %2483 = vmatpush.bf16.msra.mxu0 %v1682
        %2484 = vmatpush.bf16.msra.mxu0 %v1680
        %2485 = vmatpush.bf16.msra.mxu0 %v1678
        %2486 = vmatpush.bf16.msra.mxu0 %v1676
        %2487 = vmatmul.bf16.gmra.mxu0 %v1291
        %v2488 = vpop.f32.mrf.mxu0
        %v2489 = vadd.f32 0.0, %v2488
        %v2490 = vpop.f32.mrf.mxu0
        %v2491 = vadd.f32 0.0, %v2490
        %2492 = vmatmul.bf16.gmra.mxu0 %v1295
        %v2493 = vpop.f32.mrf.mxu0
        %v2494 = vadd.f32 0.0, %v2493
        %v2495 = vpop.f32.mrf.mxu0
        %v2496 = vadd.f32 0.0, %v2495
        %2497 = vmatmul.bf16.gmra.mxu0 %v1299
        %v2498 = vpop.f32.mrf.mxu0
        %v2499 = vadd.f32 0.0, %v2498
        %v2500 = vpop.f32.mrf.mxu0
        %v2501 = vadd.f32 0.0, %v2500
        %2502 = vmatmul.bf16.gmra.mxu0 %v1303
        %v2503 = vpop.f32.mrf.mxu0
        %v2504 = vadd.f32 0.0, %v2503
        %v2505 = vpop.f32.mrf.mxu0
        %v2506 = vadd.f32 0.0, %v2505
        %2507 = vmatmul.bf16.gmra.mxu0 %v1307
        %v2508 = vpop.f32.mrf.mxu0
        %v2509 = vadd.f32 0.0, %v2508
        %v2510 = vpop.f32.mrf.mxu0
        %v2511 = vadd.f32 0.0, %v2510
        %2512 = vmatmul.bf16.gmra.mxu0 %v1311
        %v2513 = vpop.f32.mrf.mxu0
        %v2514 = vadd.f32 0.0, %v2513
        %v2515 = vpop.f32.mrf.mxu0
        %v2516 = vadd.f32 0.0, %v2515
        %2517 = vmatmul.bf16.gmra.mxu0 %v1315
        %v2518 = vpop.f32.mrf.mxu0
        %v2519 = vadd.f32 0.0, %v2518
        %v2520 = vpop.f32.mrf.mxu0
        %v2521 = vadd.f32 0.0, %v2520
        %2522 = vmatmul.bf16.gmra.mxu0 %v1319
        %v2523 = vpop.f32.mrf.mxu0
        %v2524 = vadd.f32 0.0, %v2523
        %v2525 = vpop.f32.mrf.mxu0
        %v2526 = vadd.f32 0.0, %v2525
        %2527 = vmatmul.bf16.gmra.mxu0 %v1323
        %v2528 = vpop.f32.mrf.mxu0
        %v2529 = vadd.f32 0.0, %v2528
        %v2530 = vpop.f32.mrf.mxu0
        %v2531 = vadd.f32 0.0, %v2530
        %2532 = vmatmul.bf16.gmra.mxu0 %v1327
        %v2533 = vpop.f32.mrf.mxu0
        %v2534 = vadd.f32 0.0, %v2533
        %v2535 = vpop.f32.mrf.mxu0
        %v2536 = vadd.f32 0.0, %v2535
        %2537 = vmatmul.bf16.gmra.mxu0 %v1331
        %v2538 = vpop.f32.mrf.mxu0
        %v2539 = vadd.f32 0.0, %v2538
        %v2540 = vpop.f32.mrf.mxu0
        %v2541 = vadd.f32 0.0, %v2540
        %2542 = vmatmul.bf16.gmra.mxu0 %v1335
        %v2543 = vpop.f32.mrf.mxu0
        %v2544 = vadd.f32 0.0, %v2543
        %v2545 = vpop.f32.mrf.mxu0
        %v2546 = vadd.f32 0.0, %v2545
        %2547 = vmatmul.bf16.gmra.mxu0 %v1339
        %v2548 = vpop.f32.mrf.mxu0
        %v2549 = vadd.f32 0.0, %v2548
        %v2550 = vpop.f32.mrf.mxu0
        %v2551 = vadd.f32 0.0, %v2550
        %2552 = vmatmul.bf16.gmra.mxu0 %v1343
        %v2553 = vpop.f32.mrf.mxu0
        %v2554 = vadd.f32 0.0, %v2553
        %v2555 = vpop.f32.mrf.mxu0
        %v2556 = vadd.f32 0.0, %v2555
        %2557 = vmatmul.bf16.gmra.mxu0 %v1347
        %v2558 = vpop.f32.mrf.mxu0
        %v2559 = vadd.f32 0.0, %v2558
        %v2560 = vpop.f32.mrf.mxu0
        %v2561 = vadd.f32 0.0, %v2560
        %2562 = vmatmul.bf16.gmra.mxu0 %v1351
        %v2563 = vpop.f32.mrf.mxu0
        %v2564 = vadd.f32 0.0, %v2563
        %v2565 = vpop.f32.mrf.mxu0
        %v2566 = vadd.f32 0.0, %v2565
        %2567 = vmatmul.bf16.gmra.mxu0 %v1355
        %v2568 = vpop.f32.mrf.mxu0
        %v2569 = vadd.f32 0.0, %v2568
        %v2570 = vpop.f32.mrf.mxu0
        %v2571 = vadd.f32 0.0, %v2570
        %2572 = vmatmul.bf16.gmra.mxu0 %v1359
        %v2573 = vpop.f32.mrf.mxu0
        %v2574 = vadd.f32 0.0, %v2573
        %v2575 = vpop.f32.mrf.mxu0
        %v2576 = vadd.f32 0.0, %v2575
        %2577 = vmatmul.bf16.gmra.mxu0 %v1363
        %v2578 = vpop.f32.mrf.mxu0
        %v2579 = vadd.f32 0.0, %v2578
        %v2580 = vpop.f32.mrf.mxu0
        %v2581 = vadd.f32 0.0, %v2580
        %2582 = vmatmul.bf16.gmra.mxu0 %v1367
        %v2583 = vpop.f32.mrf.mxu0
        %v2584 = vadd.f32 0.0, %v2583
        %v2585 = vpop.f32.mrf.mxu0
        %v2586 = vadd.f32 0.0, %v2585
        %2587 = vmatmul.bf16.gmra.mxu0 %v1371
        %v2588 = vpop.f32.mrf.mxu0
        %v2589 = vadd.f32 0.0, %v2588
        %v2590 = vpop.f32.mrf.mxu0
        %v2591 = vadd.f32 0.0, %v2590
        %2592 = vmatmul.bf16.gmra.mxu0 %v1375
        %v2593 = vpop.f32.mrf.mxu0
        %v2594 = vadd.f32 0.0, %v2593
        %v2595 = vpop.f32.mrf.mxu0
        %v2596 = vadd.f32 0.0, %v2595
        %2597 = vmatmul.bf16.gmra.mxu0 %v1379
        %v2598 = vpop.f32.mrf.mxu0
        %v2599 = vadd.f32 0.0, %v2598
        %v2600 = vpop.f32.mrf.mxu0
        %v2601 = vadd.f32 0.0, %v2600
        %2602 = vmatmul.bf16.gmra.mxu0 %v1383
        %v2603 = vpop.f32.mrf.mxu0
        %v2604 = vadd.f32 0.0, %v2603
        %v2605 = vpop.f32.mrf.mxu0
        %v2606 = vadd.f32 0.0, %v2605
        %2607 = vmatmul.bf16.gmra.mxu0 %v1387
        %v2608 = vpop.f32.mrf.mxu0
        %v2609 = vadd.f32 0.0, %v2608
        %v2610 = vpop.f32.mrf.mxu0
        %v2611 = vadd.f32 0.0, %v2610
        %2612 = vmatmul.bf16.gmra.mxu0 %v1391
        %v2613 = vpop.f32.mrf.mxu0
        %v2614 = vadd.f32 0.0, %v2613
        %v2615 = vpop.f32.mrf.mxu0
        %v2616 = vadd.f32 0.0, %v2615
        %2617 = vmatmul.bf16.gmra.mxu0 %v1395
        %v2618 = vpop.f32.mrf.mxu0
        %v2619 = vadd.f32 0.0, %v2618
        %v2620 = vpop.f32.mrf.mxu0
        %v2621 = vadd.f32 0.0, %v2620
        %2622 = vmatmul.bf16.gmra.mxu0 %v1399
        %v2623 = vpop.f32.mrf.mxu0
        %v2624 = vadd.f32 0.0, %v2623
        %v2625 = vpop.f32.mrf.mxu0
        %v2626 = vadd.f32 0.0, %v2625
        %2627 = vmatmul.bf16.gmra.mxu0 %v1403
        %v2628 = vpop.f32.mrf.mxu0
        %v2629 = vadd.f32 0.0, %v2628
        %v2630 = vpop.f32.mrf.mxu0
        %v2631 = vadd.f32 0.0, %v2630
        %2632 = vmatmul.bf16.gmra.mxu0 %v1407
        %v2633 = vpop.f32.mrf.mxu0
        %v2634 = vadd.f32 0.0, %v2633
        %v2635 = vpop.f32.mrf.mxu0
        %v2636 = vadd.f32 0.0, %v2635
        %2637 = vmatmul.bf16.gmra.mxu0 %v1411
        %v2638 = vpop.f32.mrf.mxu0
        %v2639 = vadd.f32 0.0, %v2638
        %v2640 = vpop.f32.mrf.mxu0
        %v2641 = vadd.f32 0.0, %v2640
        %2642 = vmatmul.bf16.gmra.mxu0 %v1415
        %v2643 = vpop.f32.mrf.mxu0
        %v2644 = vadd.f32 0.0, %v2643
        %v2645 = vpop.f32.mrf.mxu0
        %v2646 = vadd.f32 0.0, %v2645
        %2647 = vdwg.mxu0
        %2648 = vmatpush.bf16.msra.mxu0 %v1706
        %2649 = vmatpush.bf16.msra.mxu0 %v1704
        %2650 = vmatpush.bf16.msra.mxu0 %v1702
        %2651 = vmatpush.bf16.msra.mxu0 %v1700
        %2652 = vmatpush.bf16.msra.mxu0 %v1698
        %2653 = vmatpush.bf16.msra.mxu0 %v1696
        %2654 = vmatpush.bf16.msra.mxu0 %v1694
        %2655 = vmatpush.bf16.msra.mxu0 %v1692
        %2656 = vmatmul.bf16.gmra.mxu0 %v1292
        %v2657 = vpop.f32.mrf.mxu0
        %v2658 = vadd.f32 %v2489, %v2657
        %v2659 = vpop.f32.mrf.mxu0
        %v2660 = vadd.f32 %v2491, %v2659
        %2661 = vmatmul.bf16.gmra.mxu0 %v1296
        %v2662 = vpop.f32.mrf.mxu0
        %v2663 = vadd.f32 %v2494, %v2662
        %v2664 = vpop.f32.mrf.mxu0
        %v2665 = vadd.f32 %v2496, %v2664
        %2666 = vmatmul.bf16.gmra.mxu0 %v1300
        %v2667 = vpop.f32.mrf.mxu0
        %v2668 = vadd.f32 %v2499, %v2667
        %v2669 = vpop.f32.mrf.mxu0
        %v2670 = vadd.f32 %v2501, %v2669
        %2671 = vmatmul.bf16.gmra.mxu0 %v1304
        %v2672 = vpop.f32.mrf.mxu0
        %v2673 = vadd.f32 %v2504, %v2672
        %v2674 = vpop.f32.mrf.mxu0
        %v2675 = vadd.f32 %v2506, %v2674
        %2676 = vmatmul.bf16.gmra.mxu0 %v1308
        %v2677 = vpop.f32.mrf.mxu0
        %v2678 = vadd.f32 %v2509, %v2677
        %v2679 = vpop.f32.mrf.mxu0
        %v2680 = vadd.f32 %v2511, %v2679
        %2681 = vmatmul.bf16.gmra.mxu0 %v1312
        %v2682 = vpop.f32.mrf.mxu0
        %v2683 = vadd.f32 %v2514, %v2682
        %v2684 = vpop.f32.mrf.mxu0
        %v2685 = vadd.f32 %v2516, %v2684
        %2686 = vmatmul.bf16.gmra.mxu0 %v1316
        %v2687 = vpop.f32.mrf.mxu0
        %v2688 = vadd.f32 %v2519, %v2687
        %v2689 = vpop.f32.mrf.mxu0
        %v2690 = vadd.f32 %v2521, %v2689
        %2691 = vmatmul.bf16.gmra.mxu0 %v1320
        %v2692 = vpop.f32.mrf.mxu0
        %v2693 = vadd.f32 %v2524, %v2692
        %v2694 = vpop.f32.mrf.mxu0
        %v2695 = vadd.f32 %v2526, %v2694
        %2696 = vmatmul.bf16.gmra.mxu0 %v1324
        %v2697 = vpop.f32.mrf.mxu0
        %v2698 = vadd.f32 %v2529, %v2697
        %v2699 = vpop.f32.mrf.mxu0
        %v2700 = vadd.f32 %v2531, %v2699
        %2701 = vmatmul.bf16.gmra.mxu0 %v1328
        %v2702 = vpop.f32.mrf.mxu0
        %v2703 = vadd.f32 %v2534, %v2702
        %v2704 = vpop.f32.mrf.mxu0
        %v2705 = vadd.f32 %v2536, %v2704
        %2706 = vmatmul.bf16.gmra.mxu0 %v1332
        %v2707 = vpop.f32.mrf.mxu0
        %v2708 = vadd.f32 %v2539, %v2707
        %v2709 = vpop.f32.mrf.mxu0
        %v2710 = vadd.f32 %v2541, %v2709
        %2711 = vmatmul.bf16.gmra.mxu0 %v1336
        %v2712 = vpop.f32.mrf.mxu0
        %v2713 = vadd.f32 %v2544, %v2712
        %v2714 = vpop.f32.mrf.mxu0
        %v2715 = vadd.f32 %v2546, %v2714
        %2716 = vmatmul.bf16.gmra.mxu0 %v1340
        %v2717 = vpop.f32.mrf.mxu0
        %v2718 = vadd.f32 %v2549, %v2717
        %v2719 = vpop.f32.mrf.mxu0
        %v2720 = vadd.f32 %v2551, %v2719
        %2721 = vmatmul.bf16.gmra.mxu0 %v1344
        %v2722 = vpop.f32.mrf.mxu0
        %v2723 = vadd.f32 %v2554, %v2722
        %v2724 = vpop.f32.mrf.mxu0
        %v2725 = vadd.f32 %v2556, %v2724
        %2726 = vmatmul.bf16.gmra.mxu0 %v1348
        %v2727 = vpop.f32.mrf.mxu0
        %v2728 = vadd.f32 %v2559, %v2727
        %v2729 = vpop.f32.mrf.mxu0
        %v2730 = vadd.f32 %v2561, %v2729
        %2731 = vmatmul.bf16.gmra.mxu0 %v1352
        %v2732 = vpop.f32.mrf.mxu0
        %v2733 = vadd.f32 %v2564, %v2732
        %v2734 = vpop.f32.mrf.mxu0
        %v2735 = vadd.f32 %v2566, %v2734
        %2736 = vmatmul.bf16.gmra.mxu0 %v1356
        %v2737 = vpop.f32.mrf.mxu0
        %v2738 = vadd.f32 %v2569, %v2737
        %v2739 = vpop.f32.mrf.mxu0
        %v2740 = vadd.f32 %v2571, %v2739
        %2741 = vmatmul.bf16.gmra.mxu0 %v1360
        %v2742 = vpop.f32.mrf.mxu0
        %v2743 = vadd.f32 %v2574, %v2742
        %v2744 = vpop.f32.mrf.mxu0
        %v2745 = vadd.f32 %v2576, %v2744
        %2746 = vmatmul.bf16.gmra.mxu0 %v1364
        %v2747 = vpop.f32.mrf.mxu0
        %v2748 = vadd.f32 %v2579, %v2747
        %v2749 = vpop.f32.mrf.mxu0
        %v2750 = vadd.f32 %v2581, %v2749
        %2751 = vmatmul.bf16.gmra.mxu0 %v1368
        %v2752 = vpop.f32.mrf.mxu0
        %v2753 = vadd.f32 %v2584, %v2752
        %v2754 = vpop.f32.mrf.mxu0
        %v2755 = vadd.f32 %v2586, %v2754
        %2756 = vmatmul.bf16.gmra.mxu0 %v1372
        %v2757 = vpop.f32.mrf.mxu0
        %v2758 = vadd.f32 %v2589, %v2757
        %v2759 = vpop.f32.mrf.mxu0
        %v2760 = vadd.f32 %v2591, %v2759
        %2761 = vmatmul.bf16.gmra.mxu0 %v1376
        %v2762 = vpop.f32.mrf.mxu0
        %v2763 = vadd.f32 %v2594, %v2762
        %v2764 = vpop.f32.mrf.mxu0
        %v2765 = vadd.f32 %v2596, %v2764
        %2766 = vmatmul.bf16.gmra.mxu0 %v1380
        %v2767 = vpop.f32.mrf.mxu0
        %v2768 = vadd.f32 %v2599, %v2767
        %v2769 = vpop.f32.mrf.mxu0
        %v2770 = vadd.f32 %v2601, %v2769
        %2771 = vmatmul.bf16.gmra.mxu0 %v1384
        %v2772 = vpop.f32.mrf.mxu0
        %v2773 = vadd.f32 %v2604, %v2772
        %v2774 = vpop.f32.mrf.mxu0
        %v2775 = vadd.f32 %v2606, %v2774
        %2776 = vmatmul.bf16.gmra.mxu0 %v1388
        %v2777 = vpop.f32.mrf.mxu0
        %v2778 = vadd.f32 %v2609, %v2777
        %v2779 = vpop.f32.mrf.mxu0
        %v2780 = vadd.f32 %v2611, %v2779
        %2781 = vmatmul.bf16.gmra.mxu0 %v1392
        %v2782 = vpop.f32.mrf.mxu0
        %v2783 = vadd.f32 %v2614, %v2782
        %v2784 = vpop.f32.mrf.mxu0
        %v2785 = vadd.f32 %v2616, %v2784
        %2786 = vmatmul.bf16.gmra.mxu0 %v1396
        %v2787 = vpop.f32.mrf.mxu0
        %v2788 = vadd.f32 %v2619, %v2787
        %v2789 = vpop.f32.mrf.mxu0
        %v2790 = vadd.f32 %v2621, %v2789
        %2791 = vmatmul.bf16.gmra.mxu0 %v1400
        %v2792 = vpop.f32.mrf.mxu0
        %v2793 = vadd.f32 %v2624, %v2792
        %v2794 = vpop.f32.mrf.mxu0
        %v2795 = vadd.f32 %v2626, %v2794
        %2796 = vmatmul.bf16.gmra.mxu0 %v1404
        %v2797 = vpop.f32.mrf.mxu0
        %v2798 = vadd.f32 %v2629, %v2797
        %v2799 = vpop.f32.mrf.mxu0
        %v2800 = vadd.f32 %v2631, %v2799
        %2801 = vmatmul.bf16.gmra.mxu0 %v1408
        %v2802 = vpop.f32.mrf.mxu0
        %v2803 = vadd.f32 %v2634, %v2802
        %v2804 = vpop.f32.mrf.mxu0
        %v2805 = vadd.f32 %v2636, %v2804
        %2806 = vmatmul.bf16.gmra.mxu0 %v1412
        %v2807 = vpop.f32.mrf.mxu0
        %v2808 = vadd.f32 %v2639, %v2807
        %v2809 = vpop.f32.mrf.mxu0
        %v2810 = vadd.f32 %v2641, %v2809
        %2811 = vmatmul.bf16.gmra.mxu0 %v1416
        %v2812 = vpop.f32.mrf.mxu0
        %v2813 = vadd.f32 %v2644, %v2812
        %v2814 = vpop.f32.mrf.mxu0
        %v2815 = vadd.f32 %v2646, %v2814
        %2816 = vdwg.mxu0
        %2817 = vmatpush.bf16.msra.mxu0 %v1722
        %2818 = vmatpush.bf16.msra.mxu0 %v1720
        %2819 = vmatpush.bf16.msra.mxu0 %v1718
        %2820 = vmatpush.bf16.msra.mxu0 %v1716
        %2821 = vmatpush.bf16.msra.mxu0 %v1714
        %2822 = vmatpush.bf16.msra.mxu0 %v1712
        %2823 = vmatpush.bf16.msra.mxu0 %v1710
        %2824 = vmatpush.bf16.msra.mxu0 %v1708
        %2825 = vmatmul.bf16.gmra.mxu0 %v1293
        %v2826 = vpop.f32.mrf.mxu0
        %v2827 = vadd.f32 %v2658, %v2826
        %v2828 = vpop.f32.mrf.mxu0
        %v2829 = vadd.f32 %v2660, %v2828
        %2830 = vmatmul.bf16.gmra.mxu0 %v1297
        %v2831 = vpop.f32.mrf.mxu0
        %v2832 = vadd.f32 %v2663, %v2831
        %v2833 = vpop.f32.mrf.mxu0
        %v2834 = vadd.f32 %v2665, %v2833
        %2835 = vmatmul.bf16.gmra.mxu0 %v1301
        %v2836 = vpop.f32.mrf.mxu0
        %v2837 = vadd.f32 %v2668, %v2836
        %v2838 = vpop.f32.mrf.mxu0
        %v2839 = vadd.f32 %v2670, %v2838
        %2840 = vmatmul.bf16.gmra.mxu0 %v1305
        %v2841 = vpop.f32.mrf.mxu0
        %v2842 = vadd.f32 %v2673, %v2841
        %v2843 = vpop.f32.mrf.mxu0
        %v2844 = vadd.f32 %v2675, %v2843
        %2845 = vmatmul.bf16.gmra.mxu0 %v1309
        %v2846 = vpop.f32.mrf.mxu0
        %v2847 = vadd.f32 %v2678, %v2846
        %v2848 = vpop.f32.mrf.mxu0
        %v2849 = vadd.f32 %v2680, %v2848
        %2850 = vmatmul.bf16.gmra.mxu0 %v1313
        %v2851 = vpop.f32.mrf.mxu0
        %v2852 = vadd.f32 %v2683, %v2851
        %v2853 = vpop.f32.mrf.mxu0
        %v2854 = vadd.f32 %v2685, %v2853
        %2855 = vmatmul.bf16.gmra.mxu0 %v1317
        %v2856 = vpop.f32.mrf.mxu0
        %v2857 = vadd.f32 %v2688, %v2856
        %v2858 = vpop.f32.mrf.mxu0
        %v2859 = vadd.f32 %v2690, %v2858
        %2860 = vmatmul.bf16.gmra.mxu0 %v1321
        %v2861 = vpop.f32.mrf.mxu0
        %v2862 = vadd.f32 %v2693, %v2861
        %v2863 = vpop.f32.mrf.mxu0
        %v2864 = vadd.f32 %v2695, %v2863
        %2865 = vmatmul.bf16.gmra.mxu0 %v1325
        %v2866 = vpop.f32.mrf.mxu0
        %v2867 = vadd.f32 %v2698, %v2866
        %v2868 = vpop.f32.mrf.mxu0
        %v2869 = vadd.f32 %v2700, %v2868
        %2870 = vmatmul.bf16.gmra.mxu0 %v1329
        %v2871 = vpop.f32.mrf.mxu0
        %v2872 = vadd.f32 %v2703, %v2871
        %v2873 = vpop.f32.mrf.mxu0
        %v2874 = vadd.f32 %v2705, %v2873
        %2875 = vmatmul.bf16.gmra.mxu0 %v1333
        %v2876 = vpop.f32.mrf.mxu0
        %v2877 = vadd.f32 %v2708, %v2876
        %v2878 = vpop.f32.mrf.mxu0
        %v2879 = vadd.f32 %v2710, %v2878
        %2880 = vmatmul.bf16.gmra.mxu0 %v1337
        %v2881 = vpop.f32.mrf.mxu0
        %v2882 = vadd.f32 %v2713, %v2881
        %v2883 = vpop.f32.mrf.mxu0
        %v2884 = vadd.f32 %v2715, %v2883
        %2885 = vmatmul.bf16.gmra.mxu0 %v1341
        %v2886 = vpop.f32.mrf.mxu0
        %v2887 = vadd.f32 %v2718, %v2886
        %v2888 = vpop.f32.mrf.mxu0
        %v2889 = vadd.f32 %v2720, %v2888
        %2890 = vmatmul.bf16.gmra.mxu0 %v1345
        %v2891 = vpop.f32.mrf.mxu0
        %v2892 = vadd.f32 %v2723, %v2891
        %v2893 = vpop.f32.mrf.mxu0
        %v2894 = vadd.f32 %v2725, %v2893
        %2895 = vmatmul.bf16.gmra.mxu0 %v1349
        %v2896 = vpop.f32.mrf.mxu0
        %v2897 = vadd.f32 %v2728, %v2896
        %v2898 = vpop.f32.mrf.mxu0
        %v2899 = vadd.f32 %v2730, %v2898
        %2900 = vmatmul.bf16.gmra.mxu0 %v1353
        %v2901 = vpop.f32.mrf.mxu0
        %v2902 = vadd.f32 %v2733, %v2901
        %v2903 = vpop.f32.mrf.mxu0
        %v2904 = vadd.f32 %v2735, %v2903
        %2905 = vmatmul.bf16.gmra.mxu0 %v1357
        %v2906 = vpop.f32.mrf.mxu0
        %v2907 = vadd.f32 %v2738, %v2906
        %v2908 = vpop.f32.mrf.mxu0
        %v2909 = vadd.f32 %v2740, %v2908
        %2910 = vmatmul.bf16.gmra.mxu0 %v1361
        %v2911 = vpop.f32.mrf.mxu0
        %v2912 = vadd.f32 %v2743, %v2911
        %v2913 = vpop.f32.mrf.mxu0
        %v2914 = vadd.f32 %v2745, %v2913
        %2915 = vmatmul.bf16.gmra.mxu0 %v1365
        %v2916 = vpop.f32.mrf.mxu0
        %v2917 = vadd.f32 %v2748, %v2916
        %v2918 = vpop.f32.mrf.mxu0
        %v2919 = vadd.f32 %v2750, %v2918
        %2920 = vmatmul.bf16.gmra.mxu0 %v1369
        %v2921 = vpop.f32.mrf.mxu0
        %v2922 = vadd.f32 %v2753, %v2921
        %v2923 = vpop.f32.mrf.mxu0
        %v2924 = vadd.f32 %v2755, %v2923
        %2925 = vmatmul.bf16.gmra.mxu0 %v1373
        %v2926 = vpop.f32.mrf.mxu0
        %v2927 = vadd.f32 %v2758, %v2926
        %v2928 = vpop.f32.mrf.mxu0
        %v2929 = vadd.f32 %v2760, %v2928
        %2930 = vmatmul.bf16.gmra.mxu0 %v1377
        %v2931 = vpop.f32.mrf.mxu0
        %v2932 = vadd.f32 %v2763, %v2931
        %v2933 = vpop.f32.mrf.mxu0
        %v2934 = vadd.f32 %v2765, %v2933
        %2935 = vmatmul.bf16.gmra.mxu0 %v1381
        %v2936 = vpop.f32.mrf.mxu0
        %v2937 = vadd.f32 %v2768, %v2936
        %v2938 = vpop.f32.mrf.mxu0
        %v2939 = vadd.f32 %v2770, %v2938
        %2940 = vmatmul.bf16.gmra.mxu0 %v1385
        %v2941 = vpop.f32.mrf.mxu0
        %v2942 = vadd.f32 %v2773, %v2941
        %v2943 = vpop.f32.mrf.mxu0
        %v2944 = vadd.f32 %v2775, %v2943
        %2945 = vmatmul.bf16.gmra.mxu0 %v1389
        %v2946 = vpop.f32.mrf.mxu0
        %v2947 = vadd.f32 %v2778, %v2946
        %v2948 = vpop.f32.mrf.mxu0
        %v2949 = vadd.f32 %v2780, %v2948
        %2950 = vmatmul.bf16.gmra.mxu0 %v1393
        %v2951 = vpop.f32.mrf.mxu0
        %v2952 = vadd.f32 %v2783, %v2951
        %v2953 = vpop.f32.mrf.mxu0
        %v2954 = vadd.f32 %v2785, %v2953
        %2955 = vmatmul.bf16.gmra.mxu0 %v1397
        %v2956 = vpop.f32.mrf.mxu0
        %v2957 = vadd.f32 %v2788, %v2956
        %v2958 = vpop.f32.mrf.mxu0
        %v2959 = vadd.f32 %v2790, %v2958
        %2960 = vmatmul.bf16.gmra.mxu0 %v1401
        %v2961 = vpop.f32.mrf.mxu0
        %v2962 = vadd.f32 %v2793, %v2961
        %v2963 = vpop.f32.mrf.mxu0
        %v2964 = vadd.f32 %v2795, %v2963
        %2965 = vmatmul.bf16.gmra.mxu0 %v1405
        %v2966 = vpop.f32.mrf.mxu0
        %v2967 = vadd.f32 %v2798, %v2966
        %v2968 = vpop.f32.mrf.mxu0
        %v2969 = vadd.f32 %v2800, %v2968
        %2970 = vmatmul.bf16.gmra.mxu0 %v1409
        %v2971 = vpop.f32.mrf.mxu0
        %v2972 = vadd.f32 %v2803, %v2971
        %v2973 = vpop.f32.mrf.mxu0
        %v2974 = vadd.f32 %v2805, %v2973
        %2975 = vmatmul.bf16.gmra.mxu0 %v1413
        %v2976 = vpop.f32.mrf.mxu0
        %v2977 = vadd.f32 %v2808, %v2976
        %v2978 = vpop.f32.mrf.mxu0
        %v2979 = vadd.f32 %v2810, %v2978
        %2980 = vmatmul.bf16.gmra.mxu0 %v1417
        %v2981 = vpop.f32.mrf.mxu0
        %v2982 = vadd.f32 %v2813, %v2981
        %v2983 = vpop.f32.mrf.mxu0
        %v2984 = vadd.f32 %v2815, %v2983
        %2985 = vdwg.mxu0
        %2986 = vmatpush.bf16.msra.mxu0 %v1738
        %2987 = vmatpush.bf16.msra.mxu0 %v1736
        %2988 = vmatpush.bf16.msra.mxu0 %v1734
        %2989 = vmatpush.bf16.msra.mxu0 %v1732
        %2990 = vmatpush.bf16.msra.mxu0 %v1730
        %2991 = vmatpush.bf16.msra.mxu0 %v1728
        %2992 = vmatpush.bf16.msra.mxu0 %v1726
        %2993 = vmatpush.bf16.msra.mxu0 %v1724
        %2994 = vmatmul.bf16.gmra.mxu0 %v1294
        %v2995 = vpop.f32.mrf.mxu0
        %v2996 = vadd.f32 %v2827, %v2995
        %v2997 = vpop.f32.mrf.mxu0
        %v2998 = vadd.f32 %v2829, %v2997
        %2999 = vmatmul.bf16.gmra.mxu0 %v1298
        %v3000 = vpop.f32.mrf.mxu0
        %v3001 = vadd.f32 %v2832, %v3000
        %v3002 = vpop.f32.mrf.mxu0
        %v3003 = vadd.f32 %v2834, %v3002
        %3004 = vmatmul.bf16.gmra.mxu0 %v1302
        %v3005 = vpop.f32.mrf.mxu0
        %v3006 = vadd.f32 %v2837, %v3005
        %v3007 = vpop.f32.mrf.mxu0
        %v3008 = vadd.f32 %v2839, %v3007
        %3009 = vmatmul.bf16.gmra.mxu0 %v1306
        %v3010 = vpop.f32.mrf.mxu0
        %v3011 = vadd.f32 %v2842, %v3010
        %v3012 = vpop.f32.mrf.mxu0
        %v3013 = vadd.f32 %v2844, %v3012
        %3014 = vmatmul.bf16.gmra.mxu0 %v1310
        %v3015 = vpop.f32.mrf.mxu0
        %v3016 = vadd.f32 %v2847, %v3015
        %v3017 = vpop.f32.mrf.mxu0
        %v3018 = vadd.f32 %v2849, %v3017
        %3019 = vmatmul.bf16.gmra.mxu0 %v1314
        %v3020 = vpop.f32.mrf.mxu0
        %v3021 = vadd.f32 %v2852, %v3020
        %v3022 = vpop.f32.mrf.mxu0
        %v3023 = vadd.f32 %v2854, %v3022
        %3024 = vmatmul.bf16.gmra.mxu0 %v1318
        %v3025 = vpop.f32.mrf.mxu0
        %v3026 = vadd.f32 %v2857, %v3025
        %v3027 = vpop.f32.mrf.mxu0
        %v3028 = vadd.f32 %v2859, %v3027
        %3029 = vmatmul.bf16.gmra.mxu0 %v1322
        %v3030 = vpop.f32.mrf.mxu0
        %v3031 = vadd.f32 %v2862, %v3030
        %v3032 = vpop.f32.mrf.mxu0
        %v3033 = vadd.f32 %v2864, %v3032
        %3034 = vmatmul.bf16.gmra.mxu0 %v1326
        %v3035 = vpop.f32.mrf.mxu0
        %v3036 = vadd.f32 %v2867, %v3035
        %v3037 = vpop.f32.mrf.mxu0
        %v3038 = vadd.f32 %v2869, %v3037
        %3039 = vmatmul.bf16.gmra.mxu0 %v1330
        %v3040 = vpop.f32.mrf.mxu0
        %v3041 = vadd.f32 %v2872, %v3040
        %v3042 = vpop.f32.mrf.mxu0
        %v3043 = vadd.f32 %v2874, %v3042
        %3044 = vmatmul.bf16.gmra.mxu0 %v1334
        %v3045 = vpop.f32.mrf.mxu0
        %v3046 = vadd.f32 %v2877, %v3045
        %v3047 = vpop.f32.mrf.mxu0
        %v3048 = vadd.f32 %v2879, %v3047
        %3049 = vmatmul.bf16.gmra.mxu0 %v1338
        %v3050 = vpop.f32.mrf.mxu0
        %v3051 = vadd.f32 %v2882, %v3050
        %v3052 = vpop.f32.mrf.mxu0
        %v3053 = vadd.f32 %v2884, %v3052
        %3054 = vmatmul.bf16.gmra.mxu0 %v1342
        %v3055 = vpop.f32.mrf.mxu0
        %v3056 = vadd.f32 %v2887, %v3055
        %v3057 = vpop.f32.mrf.mxu0
        %v3058 = vadd.f32 %v2889, %v3057
        %3059 = vmatmul.bf16.gmra.mxu0 %v1346
        %v3060 = vpop.f32.mrf.mxu0
        %v3061 = vadd.f32 %v2892, %v3060
        %v3062 = vpop.f32.mrf.mxu0
        %v3063 = vadd.f32 %v2894, %v3062
        %3064 = vmatmul.bf16.gmra.mxu0 %v1350
        %v3065 = vpop.f32.mrf.mxu0
        %v3066 = vadd.f32 %v2897, %v3065
        %v3067 = vpop.f32.mrf.mxu0
        %v3068 = vadd.f32 %v2899, %v3067
        %3069 = vmatmul.bf16.gmra.mxu0 %v1354
        %v3070 = vpop.f32.mrf.mxu0
        %v3071 = vadd.f32 %v2902, %v3070
        %v3072 = vpop.f32.mrf.mxu0
        %v3073 = vadd.f32 %v2904, %v3072
        %3074 = vmatmul.bf16.gmra.mxu0 %v1358
        %v3075 = vpop.f32.mrf.mxu0
        %v3076 = vadd.f32 %v2907, %v3075
        %v3077 = vpop.f32.mrf.mxu0
        %v3078 = vadd.f32 %v2909, %v3077
        %3079 = vmatmul.bf16.gmra.mxu0 %v1362
        %v3080 = vpop.f32.mrf.mxu0
        %v3081 = vadd.f32 %v2912, %v3080
        %v3082 = vpop.f32.mrf.mxu0
        %v3083 = vadd.f32 %v2914, %v3082
        %3084 = vmatmul.bf16.gmra.mxu0 %v1366
        %v3085 = vpop.f32.mrf.mxu0
        %v3086 = vadd.f32 %v2917, %v3085
        %v3087 = vpop.f32.mrf.mxu0
        %v3088 = vadd.f32 %v2919, %v3087
        %3089 = vmatmul.bf16.gmra.mxu0 %v1370
        %v3090 = vpop.f32.mrf.mxu0
        %v3091 = vadd.f32 %v2922, %v3090
        %v3092 = vpop.f32.mrf.mxu0
        %v3093 = vadd.f32 %v2924, %v3092
        %3094 = vmatmul.bf16.gmra.mxu0 %v1374
        %v3095 = vpop.f32.mrf.mxu0
        %v3096 = vadd.f32 %v2927, %v3095
        %v3097 = vpop.f32.mrf.mxu0
        %v3098 = vadd.f32 %v2929, %v3097
        %3099 = vmatmul.bf16.gmra.mxu0 %v1378
        %v3100 = vpop.f32.mrf.mxu0
        %v3101 = vadd.f32 %v2932, %v3100
        %v3102 = vpop.f32.mrf.mxu0
        %v3103 = vadd.f32 %v2934, %v3102
        %3104 = vmatmul.bf16.gmra.mxu0 %v1382
        %v3105 = vpop.f32.mrf.mxu0
        %v3106 = vadd.f32 %v2937, %v3105
        %v3107 = vpop.f32.mrf.mxu0
        %v3108 = vadd.f32 %v2939, %v3107
        %3109 = vmatmul.bf16.gmra.mxu0 %v1386
        %v3110 = vpop.f32.mrf.mxu0
        %v3111 = vadd.f32 %v2942, %v3110
        %v3112 = vpop.f32.mrf.mxu0
        %v3113 = vadd.f32 %v2944, %v3112
        %3114 = vmatmul.bf16.gmra.mxu0 %v1390
        %v3115 = vpop.f32.mrf.mxu0
        %v3116 = vadd.f32 %v2947, %v3115
        %v3117 = vpop.f32.mrf.mxu0
        %v3118 = vadd.f32 %v2949, %v3117
        %3119 = vmatmul.bf16.gmra.mxu0 %v1394
        %v3120 = vpop.f32.mrf.mxu0
        %v3121 = vadd.f32 %v2952, %v3120
        %v3122 = vpop.f32.mrf.mxu0
        %v3123 = vadd.f32 %v2954, %v3122
        %3124 = vmatmul.bf16.gmra.mxu0 %v1398
        %v3125 = vpop.f32.mrf.mxu0
        %v3126 = vadd.f32 %v2957, %v3125
        %v3127 = vpop.f32.mrf.mxu0
        %v3128 = vadd.f32 %v2959, %v3127
        %3129 = vmatmul.bf16.gmra.mxu0 %v1402
        %v3130 = vpop.f32.mrf.mxu0
        %v3131 = vadd.f32 %v2962, %v3130
        %v3132 = vpop.f32.mrf.mxu0
        %v3133 = vadd.f32 %v2964, %v3132
        %3134 = vmatmul.bf16.gmra.mxu0 %v1406
        %v3135 = vpop.f32.mrf.mxu0
        %v3136 = vadd.f32 %v2967, %v3135
        %v3137 = vpop.f32.mrf.mxu0
        %v3138 = vadd.f32 %v2969, %v3137
        %3139 = vmatmul.bf16.gmra.mxu0 %v1410
        %v3140 = vpop.f32.mrf.mxu0
        %v3141 = vadd.f32 %v2972, %v3140
        %v3142 = vpop.f32.mrf.mxu0
        %v3143 = vadd.f32 %v2974, %v3142
        %3144 = vmatmul.bf16.gmra.mxu0 %v1414
        %v3145 = vpop.f32.mrf.mxu0
        %v3146 = vadd.f32 %v2977, %v3145
        %v3147 = vpop.f32.mrf.mxu0
        %v3148 = vadd.f32 %v2979, %v3147
        %3149 = vmatmul.bf16.gmra.mxu0 %v1418
        %v3150 = vpop.f32.mrf.mxu0
        %v3151 = vadd.f32 %v2982, %v3150
        %v3152 = vpop.f32.mrf.mxu0
        %v3153 = vadd.f32 %v2984, %v3152
        %3154 = vdwg.mxu0
        %v3155 = vadd.f32 %v2320, %v2996
        %v3156 = vadd.f32 %v2322, %v2998
        %v3157 = vadd.f32 %v2325, %v3001
        %v3158 = vadd.f32 %v2327, %v3003
        %v3159 = vadd.f32 %v2330, %v3006
        %v3160 = vadd.f32 %v2332, %v3008
        %v3161 = vadd.f32 %v2335, %v3011
        %v3162 = vadd.f32 %v2337, %v3013
        %v3163 = vadd.f32 %v2340, %v3016
        %v3164 = vadd.f32 %v2342, %v3018
        %v3165 = vadd.f32 %v2345, %v3021
        %v3166 = vadd.f32 %v2347, %v3023
        %v3167 = vadd.f32 %v2350, %v3026
        %v3168 = vadd.f32 %v2352, %v3028
        %v3169 = vadd.f32 %v2355, %v3031
        %v3170 = vadd.f32 %v2357, %v3033
        %v3171 = vadd.f32 %v2360, %v3036
        %v3172 = vadd.f32 %v2362, %v3038
        %v3173 = vadd.f32 %v2365, %v3041
        %v3174 = vadd.f32 %v2367, %v3043
        %v3175 = vadd.f32 %v2370, %v3046
        %v3176 = vadd.f32 %v2372, %v3048
        %v3177 = vadd.f32 %v2375, %v3051
        %v3178 = vadd.f32 %v2377, %v3053
        %v3179 = vadd.f32 %v2380, %v3056
        %v3180 = vadd.f32 %v2382, %v3058
        %v3181 = vadd.f32 %v2385, %v3061
        %v3182 = vadd.f32 %v2387, %v3063
        %v3183 = vadd.f32 %v2390, %v3066
        %v3184 = vadd.f32 %v2392, %v3068
        %v3185 = vadd.f32 %v2395, %v3071
        %v3186 = vadd.f32 %v2397, %v3073
        %v3187 = vadd.f32 %v2400, %v3076
        %v3188 = vadd.f32 %v2402, %v3078
        %v3189 = vadd.f32 %v2405, %v3081
        %v3190 = vadd.f32 %v2407, %v3083
        %v3191 = vadd.f32 %v2410, %v3086
        %v3192 = vadd.f32 %v2412, %v3088
        %v3193 = vadd.f32 %v2415, %v3091
        %v3194 = vadd.f32 %v2417, %v3093
        %v3195 = vadd.f32 %v2420, %v3096
        %v3196 = vadd.f32 %v2422, %v3098
        %v3197 = vadd.f32 %v2425, %v3101
        %v3198 = vadd.f32 %v2427, %v3103
        %v3199 = vadd.f32 %v2430, %v3106
        %v3200 = vadd.f32 %v2432, %v3108
        %v3201 = vadd.f32 %v2435, %v3111
        %v3202 = vadd.f32 %v2437, %v3113
        %v3203 = vadd.f32 %v2440, %v3116
        %v3204 = vadd.f32 %v2442, %v3118
        %v3205 = vadd.f32 %v2445, %v3121
        %v3206 = vadd.f32 %v2447, %v3123
        %v3207 = vadd.f32 %v2450, %v3126
        %v3208 = vadd.f32 %v2452, %v3128
        %v3209 = vadd.f32 %v2455, %v3131
        %v3210 = vadd.f32 %v2457, %v3133
        %v3211 = vadd.f32 %v2460, %v3136
        %v3212 = vadd.f32 %v2462, %v3138
        %v3213 = vadd.f32 %v2465, %v3141
        %v3214 = vadd.f32 %v2467, %v3143
        %v3215 = vadd.f32 %v2470, %v3146
        %v3216 = vadd.f32 %v2472, %v3148
        %v3217 = vadd.f32 %v2475, %v3151
        %v3218 = vadd.f32 %v2477, %v3153
        %vm3219 = vcmask 64512
        %3220 = vst.msk [vmem:[%s260] sm:$0xff] %vm3219, %v3155
        %3221 = vst.msk [vmem:[%s260 + $0x8] sm:$0xff] %vm3219, %v3156
        %3222 = vst.msk [vmem:[%s260 + $0x10] sm:$0xff] %vm3219, %v3157
        %3223 = vst.msk [vmem:[%s260 + $0x18] sm:$0xff] %vm3219, %v3158
        %3224 = vst.msk [vmem:[%s260 + $0x20] sm:$0xff] %vm3219, %v3159
        %3225 = vst.msk [vmem:[%s260 + $0x28] sm:$0xff] %vm3219, %v3160
        %3226 = vst.msk [vmem:[%s260 + $0x30] sm:$0xff] %vm3219, %v3161
        %3227 = vst.msk [vmem:[%s260 + $0x38] sm:$0xff] %vm3219, %v3162
        %3228 = vst.msk [vmem:[%s260 + $0x40] sm:$0xff] %vm3219, %v3163
        %3229 = vst.msk [vmem:[%s260 + $0x48] sm:$0xff] %vm3219, %v3164
        %3230 = vst.msk [vmem:[%s260 + $0x50] sm:$0xff] %vm3219, %v3165
        %3231 = vst.msk [vmem:[%s260 + $0x58] sm:$0xff] %vm3219, %v3166
        %3232 = vst.msk [vmem:[%s260 + $0x60] sm:$0xff] %vm3219, %v3167
        %3233 = vst.msk [vmem:[%s260 + $0x68] sm:$0xff] %vm3219, %v3168
        %3234 = vst.msk [vmem:[%s260 + $0x70] sm:$0xff] %vm3219, %v3169
        %3235 = vst.msk [vmem:[%s260 + $0x78] sm:$0xff] %vm3219, %v3170
        %3236 = vst.msk [vmem:[%s260 + $0x80] sm:$0xff] %vm3219, %v3171
        %3237 = vst.msk [vmem:[%s260 + $0x88] sm:$0xff] %vm3219, %v3172
        %3238 = vst.msk [vmem:[%s260 + $0x90] sm:$0xff] %vm3219, %v3173
        %3239 = vst.msk [vmem:[%s260 + $0x98] sm:$0xff] %vm3219, %v3174
        %3240 = vst.msk [vmem:[%s260 + $0xa0] sm:$0xff] %vm3219, %v3175
        %3241 = vst.msk [vmem:[%s260 + $0xa8] sm:$0xff] %vm3219, %v3176
        %3242 = vst.msk [vmem:[%s260 + $0xb0] sm:$0xff] %vm3219, %v3177
        %3243 = vst.msk [vmem:[%s260 + $0xb8] sm:$0xff] %vm3219, %v3178
        %3244 = vst.msk [vmem:[%s260 + $0xc0] sm:$0xff] %vm3219, %v3179
        %3245 = vst.msk [vmem:[%s260 + $0xc8] sm:$0xff] %vm3219, %v3180
        %3246 = vst.msk [vmem:[%s260 + $0xd0] sm:$0xff] %vm3219, %v3181
        %3247 = vst.msk [vmem:[%s260 + $0xd8] sm:$0xff] %vm3219, %v3182
        %3248 = vst.msk [vmem:[%s260 + $0xe0] sm:$0xff] %vm3219, %v3183
        %3249 = vst.msk [vmem:[%s260 + $0xe8] sm:$0xff] %vm3219, %v3184
        %3250 = vst.msk [vmem:[%s260 + $0xf0] sm:$0xff] %vm3219, %v3185
        %3251 = vst.msk [vmem:[%s260 + $0xf8] sm:$0xff] %vm3219, %v3186
        %3252 = vst.msk [vmem:[%s260 + $0x100] sm:$0xff] %vm3219, %v3187
        %3253 = vst.msk [vmem:[%s260 + $0x108] sm:$0xff] %vm3219, %v3188
        %3254 = vst.msk [vmem:[%s260 + $0x110] sm:$0xff] %vm3219, %v3189
        %3255 = vst.msk [vmem:[%s260 + $0x118] sm:$0xff] %vm3219, %v3190
        %3256 = vst.msk [vmem:[%s260 + $0x120] sm:$0xff] %vm3219, %v3191
        %3257 = vst.msk [vmem:[%s260 + $0x128] sm:$0xff] %vm3219, %v3192
        %3258 = vst.msk [vmem:[%s260 + $0x130] sm:$0xff] %vm3219, %v3193
        %3259 = vst.msk [vmem:[%s260 + $0x138] sm:$0xff] %vm3219, %v3194
        %3260 = vst.msk [vmem:[%s260 + $0x140] sm:$0xff] %vm3219, %v3195
        %3261 = vst.msk [vmem:[%s260 + $0x148] sm:$0xff] %vm3219, %v3196
        %3262 = vst.msk [vmem:[%s260 + $0x150] sm:$0xff] %vm3219, %v3197
        %3263 = vst.msk [vmem:[%s260 + $0x158] sm:$0xff] %vm3219, %v3198
        %3264 = vst.msk [vmem:[%s260 + $0x160] sm:$0xff] %vm3219, %v3199
        %3265 = vst.msk [vmem:[%s260 + $0x168] sm:$0xff] %vm3219, %v3200
        %3266 = vst.msk [vmem:[%s260 + $0x170] sm:$0xff] %vm3219, %v3201
        %3267 = vst.msk [vmem:[%s260 + $0x178] sm:$0xff] %vm3219, %v3202
        %3268 = vst.msk [vmem:[%s260 + $0x180] sm:$0xff] %vm3219, %v3203
        %3269 = vst.msk [vmem:[%s260 + $0x188] sm:$0xff] %vm3219, %v3204
        %3270 = vst.msk [vmem:[%s260 + $0x190] sm:$0xff] %vm3219, %v3205
        %3271 = vst.msk [vmem:[%s260 + $0x198] sm:$0xff] %vm3219, %v3206
        %3272 = vst.msk [vmem:[%s260 + $0x1a0] sm:$0xff] %vm3219, %v3207
        %3273 = vst.msk [vmem:[%s260 + $0x1a8] sm:$0xff] %vm3219, %v3208
        %3274 = vst.msk [vmem:[%s260 + $0x1b0] sm:$0xff] %vm3219, %v3209
        %3275 = vst.msk [vmem:[%s260 + $0x1b8] sm:$0xff] %vm3219, %v3210
        %3276 = vst.msk [vmem:[%s260 + $0x1c0] sm:$0xff] %vm3219, %v3211
        %3277 = vst.msk [vmem:[%s260 + $0x1c8] sm:$0xff] %vm3219, %v3212
        %3278 = vst.msk [vmem:[%s260 + $0x1d0] sm:$0xff] %vm3219, %v3213
        %3279 = vst.msk [vmem:[%s260 + $0x1d8] sm:$0xff] %vm3219, %v3214
        %3280 = vst.msk [vmem:[%s260 + $0x1e0] sm:$0xff] %vm3219, %v3215
        %3281 = vst.msk [vmem:[%s260 + $0x1e8] sm:$0xff] %vm3219, %v3216
        %3282 = vst.msk [vmem:[%s260 + $0x1f0] sm:$0xff] %vm3219, %v3217
        %3283 = vst.msk [vmem:[%s260 + $0x1f8] sm:$0xff] %vm3219, %v3218
        %s3284 = sld [smem:[#allocation2]]
        %v3285 = vld [vmem:[%s248] sm:$0xff]
        %v3286 = vld [vmem:[%s248 + $0x8] sm:$0xff]
        %v3287 = vld [vmem:[%s248 + $0x10] sm:$0xff]
        %v3288 = vld [vmem:[%s248 + $0x18] sm:$0xff]
        %v3289 = vld [vmem:[%s248 + $0x20] sm:$0xff]
        %v3290 = vld [vmem:[%s248 + $0x28] sm:$0xff]
        %v3291 = vld [vmem:[%s248 + $0x30] sm:$0xff]
        %v3292 = vld [vmem:[%s248 + $0x38] sm:$0xff]
        %v3293 = vld [vmem:[%s248 + $0x40] sm:$0xff]
        %v3294 = vld [vmem:[%s248 + $0x48] sm:$0xff]
        %v3295 = vld [vmem:[%s248 + $0x50] sm:$0xff]
        %v3296 = vld [vmem:[%s248 + $0x58] sm:$0xff]
        %v3297 = vld [vmem:[%s248 + $0x60] sm:$0xff]
        %v3298 = vld [vmem:[%s248 + $0x68] sm:$0xff]
        %v3299 = vld [vmem:[%s248 + $0x70] sm:$0xff]
        %v3300 = vld [vmem:[%s248 + $0x78] sm:$0xff]
        %v3301 = vld [vmem:[%s248 + $0x80] sm:$0xff]
        %v3302 = vld [vmem:[%s248 + $0x88] sm:$0xff]
        %v3303 = vld [vmem:[%s248 + $0x90] sm:$0xff]
        %v3304 = vld [vmem:[%s248 + $0x98] sm:$0xff]
        %v3305 = vld [vmem:[%s248 + $0xa0] sm:$0xff]
        %v3306 = vld [vmem:[%s248 + $0xa8] sm:$0xff]
        %v3307 = vld [vmem:[%s248 + $0xb0] sm:$0xff]
        %v3308 = vld [vmem:[%s248 + $0xb8] sm:$0xff]
        %v3309 = vld [vmem:[%s248 + $0xc0] sm:$0xff]
        %v3310 = vld [vmem:[%s248 + $0xc8] sm:$0xff]
        %v3311 = vld [vmem:[%s248 + $0xd0] sm:$0xff]
        %v3312 = vld [vmem:[%s248 + $0xd8] sm:$0xff]
        %v3313 = vld [vmem:[%s248 + $0xe0] sm:$0xff]
        %v3314 = vld [vmem:[%s248 + $0xe8] sm:$0xff]
        %v3315 = vld [vmem:[%s248 + $0xf0] sm:$0xff]
        %v3316 = vld [vmem:[%s248 + $0xf8] sm:$0xff]
        %v3317 = vld [vmem:[%s248 + $0x100] sm:$0xff]
        %v3318 = vld [vmem:[%s248 + $0x108] sm:$0xff]
        %v3319 = vld [vmem:[%s248 + $0x110] sm:$0xff]
        %v3320 = vld [vmem:[%s248 + $0x118] sm:$0xff]
        %v3321 = vld [vmem:[%s248 + $0x120] sm:$0xff]
        %v3322 = vld [vmem:[%s248 + $0x128] sm:$0xff]
        %v3323 = vld [vmem:[%s248 + $0x130] sm:$0xff]
        %v3324 = vld [vmem:[%s248 + $0x138] sm:$0xff]
        %v3325 = vld [vmem:[%s248 + $0x140] sm:$0xff]
        %v3326 = vld [vmem:[%s248 + $0x148] sm:$0xff]
        %v3327 = vld [vmem:[%s248 + $0x150] sm:$0xff]
        %v3328 = vld [vmem:[%s248 + $0x158] sm:$0xff]
        %v3329 = vld [vmem:[%s248 + $0x160] sm:$0xff]
        %v3330 = vld [vmem:[%s248 + $0x168] sm:$0xff]
        %v3331 = vld [vmem:[%s248 + $0x170] sm:$0xff]
        %v3332 = vld [vmem:[%s248 + $0x178] sm:$0xff]
        %v3333 = vld [vmem:[%s248 + $0x180] sm:$0xff]
        %v3334 = vld [vmem:[%s248 + $0x188] sm:$0xff]
        %v3335 = vld [vmem:[%s248 + $0x190] sm:$0xff]
        %v3336 = vld [vmem:[%s248 + $0x198] sm:$0xff]
        %v3337 = vld [vmem:[%s248 + $0x1a0] sm:$0xff]
        %v3338 = vld [vmem:[%s248 + $0x1a8] sm:$0xff]
        %v3339 = vld [vmem:[%s248 + $0x1b0] sm:$0xff]
        %v3340 = vld [vmem:[%s248 + $0x1b8] sm:$0xff]
        %v3341 = vld [vmem:[%s248 + $0x1c0] sm:$0xff]
        %v3342 = vld [vmem:[%s248 + $0x1c8] sm:$0xff]
        %v3343 = vld [vmem:[%s248 + $0x1d0] sm:$0xff]
        %v3344 = vld [vmem:[%s248 + $0x1d8] sm:$0xff]
        %v3345 = vld [vmem:[%s248 + $0x1e0] sm:$0xff]
        %v3346 = vld [vmem:[%s248 + $0x1e8] sm:$0xff]
        %v3347 = vld [vmem:[%s248 + $0x1f0] sm:$0xff]
        %v3348 = vld [vmem:[%s248 + $0x1f8] sm:$0xff]
        %vm3349 = vcmp.ne.s32.totalorder %v262, 0
        %vm3350 = vcmp.ne.s32.totalorder %v263, 0
        %vm3351 = vcmp.ne.s32.totalorder %v264, 0
        %vm3352 = vcmp.ne.s32.totalorder %v265, 0
        %vm3353 = vcmp.ne.s32.totalorder %v266, 0
        %vm3354 = vcmp.ne.s32.totalorder %v267, 0
        %vm3355 = vcmp.ne.s32.totalorder %v268, 0
        %vm3356 = vcmp.ne.s32.totalorder %v269, 0
        %vm3357 = vcmp.ne.s32.totalorder %v270, 0
        %vm3358 = vcmp.ne.s32.totalorder %v271, 0
        %vm3359 = vcmp.ne.s32.totalorder %v272, 0
        %vm3360 = vcmp.ne.s32.totalorder %v273, 0
        %vm3361 = vcmp.ne.s32.totalorder %v274, 0
        %vm3362 = vcmp.ne.s32.totalorder %v275, 0
        %vm3363 = vcmp.ne.s32.totalorder %v276, 0
        %vm3364 = vcmp.ne.s32.totalorder %v277, 0
        %vm3365 = vcmp.ne.s32.totalorder %v278, 0
        %vm3366 = vcmp.ne.s32.totalorder %v279, 0
        %vm3367 = vcmp.ne.s32.totalorder %v280, 0
        %vm3368 = vcmp.ne.s32.totalorder %v281, 0
        %vm3369 = vcmp.ne.s32.totalorder %v282, 0
        %vm3370 = vcmp.ne.s32.totalorder %v283, 0
        %vm3371 = vcmp.ne.s32.totalorder %v284, 0
        %vm3372 = vcmp.ne.s32.totalorder %v285, 0
        %vm3373 = vcmp.ne.s32.totalorder %v286, 0
        %vm3374 = vcmp.ne.s32.totalorder %v287, 0
        %vm3375 = vcmp.ne.s32.totalorder %v288, 0
        %vm3376 = vcmp.ne.s32.totalorder %v289, 0
        %vm3377 = vcmp.ne.s32.totalorder %v290, 0
        %vm3378 = vcmp.ne.s32.totalorder %v291, 0
        %vm3379 = vcmp.ne.s32.totalorder %v292, 0
        %vm3380 = vcmp.ne.s32.totalorder %v293, 0
        %vm3381 = vcmp.ne.s32.totalorder %v294, 0
        %vm3382 = vcmp.ne.s32.totalorder %v295, 0
        %vm3383 = vcmp.ne.s32.totalorder %v296, 0
        %vm3384 = vcmp.ne.s32.totalorder %v297, 0
        %vm3385 = vcmp.ne.s32.totalorder %v298, 0
        %vm3386 = vcmp.ne.s32.totalorder %v299, 0
        %vm3387 = vcmp.ne.s32.totalorder %v300, 0
        %vm3388 = vcmp.ne.s32.totalorder %v301, 0
        %vm3389 = vcmp.ne.s32.totalorder %v302, 0
        %vm3390 = vcmp.ne.s32.totalorder %v303, 0
        %vm3391 = vcmp.ne.s32.totalorder %v304, 0
        %vm3392 = vcmp.ne.s32.totalorder %v305, 0
        %vm3393 = vcmp.ne.s32.totalorder %v306, 0
        %vm3394 = vcmp.ne.s32.totalorder %v307, 0
        %vm3395 = vcmp.ne.s32.totalorder %v308, 0
        %vm3396 = vcmp.ne.s32.totalorder %v309, 0
        %vm3397 = vcmp.ne.s32.totalorder %v310, 0
        %vm3398 = vcmp.ne.s32.totalorder %v311, 0
        %vm3399 = vcmp.ne.s32.totalorder %v312, 0
        %vm3400 = vcmp.ne.s32.totalorder %v313, 0
        %vm3401 = vcmp.ne.s32.totalorder %v314, 0
        %vm3402 = vcmp.ne.s32.totalorder %v315, 0
        %vm3403 = vcmp.ne.s32.totalorder %v316, 0
        %vm3404 = vcmp.ne.s32.totalorder %v317, 0
        %vm3405 = vcmp.ne.s32.totalorder %v318, 0
        %vm3406 = vcmp.ne.s32.totalorder %v319, 0
        %vm3407 = vcmp.ne.s32.totalorder %v320, 0
        %vm3408 = vcmp.ne.s32.totalorder %v321, 0
        %vm3409 = vcmp.ne.s32.totalorder %v322, 0
        %vm3410 = vcmp.ne.s32.totalorder %v323, 0
        %vm3411 = vcmp.ne.s32.totalorder %v324, 0
        %vm3412 = vcmp.ne.s32.totalorder %v325, 0
        %v3413 = vsel %vm3349, 1, 0
        %v3414 = vsel %vm3350, 1, 0
        %v3415 = vsel %vm3351, 1, 0
        %v3416 = vsel %vm3352, 1, 0
        %v3417 = vsel %vm3353, 1, 0
        %v3418 = vsel %vm3354, 1, 0
        %v3419 = vsel %vm3355, 1, 0
        %v3420 = vsel %vm3356, 1, 0
        %v3421 = vsel %vm3357, 1, 0
        %v3422 = vsel %vm3358, 1, 0
        %v3423 = vsel %vm3359, 1, 0
        %v3424 = vsel %vm3360, 1, 0
        %v3425 = vsel %vm3361, 1, 0
        %v3426 = vsel %vm3362, 1, 0
        %v3427 = vsel %vm3363, 1, 0
        %v3428 = vsel %vm3364, 1, 0
        %v3429 = vsel %vm3365, 1, 0
        %v3430 = vsel %vm3366, 1, 0
        %v3431 = vsel %vm3367, 1, 0
        %v3432 = vsel %vm3368, 1, 0
        %v3433 = vsel %vm3369, 1, 0
        %v3434 = vsel %vm3370, 1, 0
        %v3435 = vsel %vm3371, 1, 0
        %v3436 = vsel %vm3372, 1, 0
        %v3437 = vsel %vm3373, 1, 0
        %v3438 = vsel %vm3374, 1, 0
        %v3439 = vsel %vm3375, 1, 0
        %v3440 = vsel %vm3376, 1, 0
        %v3441 = vsel %vm3377, 1, 0
        %v3442 = vsel %vm3378, 1, 0
        %v3443 = vsel %vm3379, 1, 0
        %v3444 = vsel %vm3380, 1, 0
        %v3445 = vsel %vm3381, 1, 0
        %v3446 = vsel %vm3382, 1, 0
        %v3447 = vsel %vm3383, 1, 0
        %v3448 = vsel %vm3384, 1, 0
        %v3449 = vsel %vm3385, 1, 0
        %v3450 = vsel %vm3386, 1, 0
        %v3451 = vsel %vm3387, 1, 0
        %v3452 = vsel %vm3388, 1, 0
        %v3453 = vsel %vm3389, 1, 0
        %v3454 = vsel %vm3390, 1, 0
        %v3455 = vsel %vm3391, 1, 0
        %v3456 = vsel %vm3392, 1, 0
        %v3457 = vsel %vm3393, 1, 0
        %v3458 = vsel %vm3394, 1, 0
        %v3459 = vsel %vm3395, 1, 0
        %v3460 = vsel %vm3396, 1, 0
        %v3461 = vsel %vm3397, 1, 0
        %v3462 = vsel %vm3398, 1, 0
        %v3463 = vsel %vm3399, 1, 0
        %v3464 = vsel %vm3400, 1, 0
        %v3465 = vsel %vm3401, 1, 0
        %v3466 = vsel %vm3402, 1, 0
        %v3467 = vsel %vm3403, 1, 0
        %v3468 = vsel %vm3404, 1, 0
        %v3469 = vsel %vm3405, 1, 0
        %v3470 = vsel %vm3406, 1, 0
        %v3471 = vsel %vm3407, 1, 0
        %v3472 = vsel %vm3408, 1, 0
        %v3473 = vsel %vm3409, 1, 0
        %v3474 = vsel %vm3410, 1, 0
        %v3475 = vsel %vm3411, 1, 0
        %v3476 = vsel %vm3412, 1, 0
        %v3477 = vcvt.s32.f32 %v3413
        %v3478 = vcvt.s32.f32 %v3414
        %v3479 = vcvt.s32.f32 %v3415
        %v3480 = vcvt.s32.f32 %v3416
        %v3481 = vcvt.s32.f32 %v3417
        %v3482 = vcvt.s32.f32 %v3418
        %v3483 = vcvt.s32.f32 %v3419
        %v3484 = vcvt.s32.f32 %v3420
        %v3485 = vcvt.s32.f32 %v3421
        %v3486 = vcvt.s32.f32 %v3422
        %v3487 = vcvt.s32.f32 %v3423
        %v3488 = vcvt.s32.f32 %v3424
        %v3489 = vcvt.s32.f32 %v3425
        %v3490 = vcvt.s32.f32 %v3426
        %v3491 = vcvt.s32.f32 %v3427
        %v3492 = vcvt.s32.f32 %v3428
        %v3493 = vcvt.s32.f32 %v3429
        %v3494 = vcvt.s32.f32 %v3430
        %v3495 = vcvt.s32.f32 %v3431
        %v3496 = vcvt.s32.f32 %v3432
        %v3497 = vcvt.s32.f32 %v3433
        %v3498 = vcvt.s32.f32 %v3434
        %v3499 = vcvt.s32.f32 %v3435
        %v3500 = vcvt.s32.f32 %v3436
        %v3501 = vcvt.s32.f32 %v3437
        %v3502 = vcvt.s32.f32 %v3438
        %v3503 = vcvt.s32.f32 %v3439
        %v3504 = vcvt.s32.f32 %v3440
        %v3505 = vcvt.s32.f32 %v3441
        %v3506 = vcvt.s32.f32 %v3442
        %v3507 = vcvt.s32.f32 %v3443
        %v3508 = vcvt.s32.f32 %v3444
        %v3509 = vcvt.s32.f32 %v3445
        %v3510 = vcvt.s32.f32 %v3446
        %v3511 = vcvt.s32.f32 %v3447
        %v3512 = vcvt.s32.f32 %v3448
        %v3513 = vcvt.s32.f32 %v3449
        %v3514 = vcvt.s32.f32 %v3450
        %v3515 = vcvt.s32.f32 %v3451
        %v3516 = vcvt.s32.f32 %v3452
        %v3517 = vcvt.s32.f32 %v3453
        %v3518 = vcvt.s32.f32 %v3454
        %v3519 = vcvt.s32.f32 %v3455
        %v3520 = vcvt.s32.f32 %v3456
        %v3521 = vcvt.s32.f32 %v3457
        %v3522 = vcvt.s32.f32 %v3458
        %v3523 = vcvt.s32.f32 %v3459
        %v3524 = vcvt.s32.f32 %v3460
        %v3525 = vcvt.s32.f32 %v3461
        %v3526 = vcvt.s32.f32 %v3462
        %v3527 = vcvt.s32.f32 %v3463
        %v3528 = vcvt.s32.f32 %v3464
        %v3529 = vcvt.s32.f32 %v3465
        %v3530 = vcvt.s32.f32 %v3466
        %v3531 = vcvt.s32.f32 %v3467
        %v3532 = vcvt.s32.f32 %v3468
        %v3533 = vcvt.s32.f32 %v3469
        %v3534 = vcvt.s32.f32 %v3470
        %v3535 = vcvt.s32.f32 %v3471
        %v3536 = vcvt.s32.f32 %v3472
        %v3537 = vcvt.s32.f32 %v3473
        %v3538 = vcvt.s32.f32 %v3474
        %v3539 = vcvt.s32.f32 %v3475
        %v3540 = vcvt.s32.f32 %v3476
        %s3541 = ssub.f32 0.5, %s3284
        %vm3542 = vcmp.eq.s32.totalorder %v3285, 1
        %vm3543 = vcmp.eq.s32.totalorder %v3286, 1
        %vm3544 = vcmp.eq.s32.totalorder %v3287, 1
        %vm3545 = vcmp.eq.s32.totalorder %v3288, 1
        %vm3546 = vcmp.eq.s32.totalorder %v3289, 1
        %vm3547 = vcmp.eq.s32.totalorder %v3290, 1
        %vm3548 = vcmp.eq.s32.totalorder %v3291, 1
        %vm3549 = vcmp.eq.s32.totalorder %v3292, 1
        %vm3550 = vcmp.eq.s32.totalorder %v3293, 1
        %vm3551 = vcmp.eq.s32.totalorder %v3294, 1
        %vm3552 = vcmp.eq.s32.totalorder %v3295, 1
        %vm3553 = vcmp.eq.s32.totalorder %v3296, 1
        %vm3554 = vcmp.eq.s32.totalorder %v3297, 1
        %vm3555 = vcmp.eq.s32.totalorder %v3298, 1
        %vm3556 = vcmp.eq.s32.totalorder %v3299, 1
        %vm3557 = vcmp.eq.s32.totalorder %v3300, 1
        %vm3558 = vcmp.eq.s32.totalorder %v3301, 1
        %vm3559 = vcmp.eq.s32.totalorder %v3302, 1
        %vm3560 = vcmp.eq.s32.totalorder %v3303, 1
        %vm3561 = vcmp.eq.s32.totalorder %v3304, 1
        %vm3562 = vcmp.eq.s32.totalorder %v3305, 1
        %vm3563 = vcmp.eq.s32.totalorder %v3306, 1
        %vm3564 = vcmp.eq.s32.totalorder %v3307, 1
        %vm3565 = vcmp.eq.s32.totalorder %v3308, 1
        %vm3566 = vcmp.eq.s32.totalorder %v3309, 1
        %vm3567 = vcmp.eq.s32.totalorder %v3310, 1
        %vm3568 = vcmp.eq.s32.totalorder %v3311, 1
        %vm3569 = vcmp.eq.s32.totalorder %v3312, 1
        %vm3570 = vcmp.eq.s32.totalorder %v3313, 1
        %vm3571 = vcmp.eq.s32.totalorder %v3314, 1
        %vm3572 = vcmp.eq.s32.totalorder %v3315, 1
        %vm3573 = vcmp.eq.s32.totalorder %v3316, 1
        %vm3574 = vcmp.eq.s32.totalorder %v3317, 1
        %vm3575 = vcmp.eq.s32.totalorder %v3318, 1
        %vm3576 = vcmp.eq.s32.totalorder %v3319, 1
        %vm3577 = vcmp.eq.s32.totalorder %v3320, 1
        %vm3578 = vcmp.eq.s32.totalorder %v3321, 1
        %vm3579 = vcmp.eq.s32.totalorder %v3322, 1
        %vm3580 = vcmp.eq.s32.totalorder %v3323, 1
        %vm3581 = vcmp.eq.s32.totalorder %v3324, 1
        %vm3582 = vcmp.eq.s32.totalorder %v3325, 1
        %vm3583 = vcmp.eq.s32.totalorder %v3326, 1
        %vm3584 = vcmp.eq.s32.totalorder %v3327, 1
        %vm3585 = vcmp.eq.s32.totalorder %v3328, 1
        %vm3586 = vcmp.eq.s32.totalorder %v3329, 1
        %vm3587 = vcmp.eq.s32.totalorder %v3330, 1
        %vm3588 = vcmp.eq.s32.totalorder %v3331, 1
        %vm3589 = vcmp.eq.s32.totalorder %v3332, 1
        %vm3590 = vcmp.eq.s32.totalorder %v3333, 1
        %vm3591 = vcmp.eq.s32.totalorder %v3334, 1
        %vm3592 = vcmp.eq.s32.totalorder %v3335, 1
        %vm3593 = vcmp.eq.s32.totalorder %v3336, 1
        %vm3594 = vcmp.eq.s32.totalorder %v3337, 1
        %vm3595 = vcmp.eq.s32.totalorder %v3338, 1
        %vm3596 = vcmp.eq.s32.totalorder %v3339, 1
        %vm3597 = vcmp.eq.s32.totalorder %v3340, 1
        %vm3598 = vcmp.eq.s32.totalorder %v3341, 1
        %vm3599 = vcmp.eq.s32.totalorder %v3342, 1
        %vm3600 = vcmp.eq.s32.totalorder %v3343, 1
        %vm3601 = vcmp.eq.s32.totalorder %v3344, 1
        %vm3602 = vcmp.eq.s32.totalorder %v3345, 1
        %vm3603 = vcmp.eq.s32.totalorder %v3346, 1
        %vm3604 = vcmp.eq.s32.totalorder %v3347, 1
        %vm3605 = vcmp.eq.s32.totalorder %v3348, 1
        %v3606 = vsel %vm3542, 1, 0
        %v3607 = vsel %vm3543, 1, 0
        %v3608 = vsel %vm3544, 1, 0
        %v3609 = vsel %vm3545, 1, 0
        %v3610 = vsel %vm3546, 1, 0
        %v3611 = vsel %vm3547, 1, 0
        %v3612 = vsel %vm3548, 1, 0
        %v3613 = vsel %vm3549, 1, 0
        %v3614 = vsel %vm3550, 1, 0
        %v3615 = vsel %vm3551, 1, 0
        %v3616 = vsel %vm3552, 1, 0
        %v3617 = vsel %vm3553, 1, 0
        %v3618 = vsel %vm3554, 1, 0
        %v3619 = vsel %vm3555, 1, 0
        %v3620 = vsel %vm3556, 1, 0
        %v3621 = vsel %vm3557, 1, 0
        %v3622 = vsel %vm3558, 1, 0
        %v3623 = vsel %vm3559, 1, 0
        %v3624 = vsel %vm3560, 1, 0
        %v3625 = vsel %vm3561, 1, 0
        %v3626 = vsel %vm3562, 1, 0
        %v3627 = vsel %vm3563, 1, 0
        %v3628 = vsel %vm3564, 1, 0
        %v3629 = vsel %vm3565, 1, 0
        %v3630 = vsel %vm3566, 1, 0
        %v3631 = vsel %vm3567, 1, 0
        %v3632 = vsel %vm3568, 1, 0
        %v3633 = vsel %vm3569, 1, 0
        %v3634 = vsel %vm3570, 1, 0
        %v3635 = vsel %vm3571, 1, 0
        %v3636 = vsel %vm3572, 1, 0
        %v3637 = vsel %vm3573, 1, 0
        %v3638 = vsel %vm3574, 1, 0
        %v3639 = vsel %vm3575, 1, 0
        %v3640 = vsel %vm3576, 1, 0
        %v3641 = vsel %vm3577, 1, 0
        %v3642 = vsel %vm3578, 1, 0
        %v3643 = vsel %vm3579, 1, 0
        %v3644 = vsel %vm3580, 1, 0
        %v3645 = vsel %vm3581, 1, 0
        %v3646 = vsel %vm3582, 1, 0
        %v3647 = vsel %vm3583, 1, 0
        %v3648 = vsel %vm3584, 1, 0
        %v3649 = vsel %vm3585, 1, 0
        %v3650 = vsel %vm3586, 1, 0
        %v3651 = vsel %vm3587, 1, 0
        %v3652 = vsel %vm3588, 1, 0
        %v3653 = vsel %vm3589, 1, 0
        %v3654 = vsel %vm3590, 1, 0
        %v3655 = vsel %vm3591, 1, 0
        %v3656 = vsel %vm3592, 1, 0
        %v3657 = vsel %vm3593, 1, 0
        %v3658 = vsel %vm3594, 1, 0
        %v3659 = vsel %vm3595, 1, 0
        %v3660 = vsel %vm3596, 1, 0
        %v3661 = vsel %vm3597, 1, 0
        %v3662 = vsel %vm3598, 1, 0
        %v3663 = vsel %vm3599, 1, 0
        %v3664 = vsel %vm3600, 1, 0
        %v3665 = vsel %vm3601, 1, 0
        %v3666 = vsel %vm3602, 1, 0
        %v3667 = vsel %vm3603, 1, 0
        %v3668 = vsel %vm3604, 1, 0
        %v3669 = vsel %vm3605, 1, 0
        %v3670 = vcvt.s32.f32 %v3606
        %v3671 = vcvt.s32.f32 %v3607
        %v3672 = vcvt.s32.f32 %v3608
        %v3673 = vcvt.s32.f32 %v3609
        %v3674 = vcvt.s32.f32 %v3610
        %v3675 = vcvt.s32.f32 %v3611
        %v3676 = vcvt.s32.f32 %v3612
        %v3677 = vcvt.s32.f32 %v3613
        %v3678 = vcvt.s32.f32 %v3614
        %v3679 = vcvt.s32.f32 %v3615
        %v3680 = vcvt.s32.f32 %v3616
        %v3681 = vcvt.s32.f32 %v3617
        %v3682 = vcvt.s32.f32 %v3618
        %v3683 = vcvt.s32.f32 %v3619
        %v3684 = vcvt.s32.f32 %v3620
        %v3685 = vcvt.s32.f32 %v3621
        %v3686 = vcvt.s32.f32 %v3622
        %v3687 = vcvt.s32.f32 %v3623
        %v3688 = vcvt.s32.f32 %v3624
        %v3689 = vcvt.s32.f32 %v3625
        %v3690 = vcvt.s32.f32 %v3626
        %v3691 = vcvt.s32.f32 %v3627
        %v3692 = vcvt.s32.f32 %v3628
        %v3693 = vcvt.s32.f32 %v3629
        %v3694 = vcvt.s32.f32 %v3630
        %v3695 = vcvt.s32.f32 %v3631
        %v3696 = vcvt.s32.f32 %v3632
        %v3697 = vcvt.s32.f32 %v3633
        %v3698 = vcvt.s32.f32 %v3634
        %v3699 = vcvt.s32.f32 %v3635
        %v3700 = vcvt.s32.f32 %v3636
        %v3701 = vcvt.s32.f32 %v3637
        %v3702 = vcvt.s32.f32 %v3638
        %v3703 = vcvt.s32.f32 %v3639
        %v3704 = vcvt.s32.f32 %v3640
        %v3705 = vcvt.s32.f32 %v3641
        %v3706 = vcvt.s32.f32 %v3642
        %v3707 = vcvt.s32.f32 %v3643
        %v3708 = vcvt.s32.f32 %v3644
        %v3709 = vcvt.s32.f32 %v3645
        %v3710 = vcvt.s32.f32 %v3646
        %v3711 = vcvt.s32.f32 %v3647
        %v3712 = vcvt.s32.f32 %v3648
        %v3713 = vcvt.s32.f32 %v3649
        %v3714 = vcvt.s32.f32 %v3650
        %v3715 = vcvt.s32.f32 %v3651
        %v3716 = vcvt.s32.f32 %v3652
        %v3717 = vcvt.s32.f32 %v3653
        %v3718 = vcvt.s32.f32 %v3654
        %v3719 = vcvt.s32.f32 %v3655
        %v3720 = vcvt.s32.f32 %v3656
        %v3721 = vcvt.s32.f32 %v3657
        %v3722 = vcvt.s32.f32 %v3658
        %v3723 = vcvt.s32.f32 %v3659
        %v3724 = vcvt.s32.f32 %v3660
        %v3725 = vcvt.s32.f32 %v3661
        %v3726 = vcvt.s32.f32 %v3662
        %v3727 = vcvt.s32.f32 %v3663
        %v3728 = vcvt.s32.f32 %v3664
        %v3729 = vcvt.s32.f32 %v3665
        %v3730 = vcvt.s32.f32 %v3666
        %v3731 = vcvt.s32.f32 %v3667
        %v3732 = vcvt.s32.f32 %v3668
        %v3733 = vcvt.s32.f32 %v3669
        %s3734 = smul.f32 %s3284, 2.0
        %v3735 = vstv %s3734
        %v3736 = vmul.f32 %v3670, %v3735
        %v3737 = vmul.f32 %v3671, %v3735
        %v3738 = vmul.f32 %v3672, %v3735
        %v3739 = vmul.f32 %v3673, %v3735
        %v3740 = vmul.f32 %v3674, %v3735
        %v3741 = vmul.f32 %v3675, %v3735
        %v3742 = vmul.f32 %v3676, %v3735
        %v3743 = vmul.f32 %v3677, %v3735
        %v3744 = vmul.f32 %v3678, %v3735
        %v3745 = vmul.f32 %v3679, %v3735
        %v3746 = vmul.f32 %v3680, %v3735
        %v3747 = vmul.f32 %v3681, %v3735
        %v3748 = vmul.f32 %v3682, %v3735
        %v3749 = vmul.f32 %v3683, %v3735
        %v3750 = vmul.f32 %v3684, %v3735
        %v3751 = vmul.f32 %v3685, %v3735
        %v3752 = vmul.f32 %v3686, %v3735
        %v3753 = vmul.f32 %v3687, %v3735
        %v3754 = vmul.f32 %v3688, %v3735
        %v3755 = vmul.f32 %v3689, %v3735
        %v3756 = vmul.f32 %v3690, %v3735
        %v3757 = vmul.f32 %v3691, %v3735
        %v3758 = vmul.f32 %v3692, %v3735
        %v3759 = vmul.f32 %v3693, %v3735
        %v3760 = vmul.f32 %v3694, %v3735
        %v3761 = vmul.f32 %v3695, %v3735
        %v3762 = vmul.f32 %v3696, %v3735
        %v3763 = vmul.f32 %v3697, %v3735
        %v3764 = vmul.f32 %v3698, %v3735
        %v3765 = vmul.f32 %v3699, %v3735
        %v3766 = vmul.f32 %v3700, %v3735
        %v3767 = vmul.f32 %v3701, %v3735
        %v3768 = vmul.f32 %v3702, %v3735
        %v3769 = vmul.f32 %v3703, %v3735
        %v3770 = vmul.f32 %v3704, %v3735
        %v3771 = vmul.f32 %v3705, %v3735
        %v3772 = vmul.f32 %v3706, %v3735
        %v3773 = vmul.f32 %v3707, %v3735
        %v3774 = vmul.f32 %v3708, %v3735
        %v3775 = vmul.f32 %v3709, %v3735
        %v3776 = vmul.f32 %v3710, %v3735
        %v3777 = vmul.f32 %v3711, %v3735
        %v3778 = vmul.f32 %v3712, %v3735
        %v3779 = vmul.f32 %v3713, %v3735
        %v3780 = vmul.f32 %v3714, %v3735
        %v3781 = vmul.f32 %v3715, %v3735
        %v3782 = vmul.f32 %v3716, %v3735
        %v3783 = vmul.f32 %v3717, %v3735
        %v3784 = vmul.f32 %v3718, %v3735
        %v3785 = vmul.f32 %v3719, %v3735
        %v3786 = vmul.f32 %v3720, %v3735
        %v3787 = vmul.f32 %v3721, %v3735
        %v3788 = vmul.f32 %v3722, %v3735
        %v3789 = vmul.f32 %v3723, %v3735
        %v3790 = vmul.f32 %v3724, %v3735
        %v3791 = vmul.f32 %v3725, %v3735
        %v3792 = vmul.f32 %v3726, %v3735
        %v3793 = vmul.f32 %v3727, %v3735
        %v3794 = vmul.f32 %v3728, %v3735
        %v3795 = vmul.f32 %v3729, %v3735
        %v3796 = vmul.f32 %v3730, %v3735
        %v3797 = vmul.f32 %v3731, %v3735
        %v3798 = vmul.f32 %v3732, %v3735
        %v3799 = vmul.f32 %v3733, %v3735
        %v3800 = vstv %s3541
        %v3801 = vadd.f32 %v3800, %v3736
        %v3802 = vadd.f32 %v3800, %v3737
        %v3803 = vadd.f32 %v3800, %v3738
        %v3804 = vadd.f32 %v3800, %v3739
        %v3805 = vadd.f32 %v3800, %v3740
        %v3806 = vadd.f32 %v3800, %v3741
        %v3807 = vadd.f32 %v3800, %v3742
        %v3808 = vadd.f32 %v3800, %v3743
        %v3809 = vadd.f32 %v3800, %v3744
        %v3810 = vadd.f32 %v3800, %v3745
        %v3811 = vadd.f32 %v3800, %v3746
        %v3812 = vadd.f32 %v3800, %v3747
        %v3813 = vadd.f32 %v3800, %v3748
        %v3814 = vadd.f32 %v3800, %v3749
        %v3815 = vadd.f32 %v3800, %v3750
        %v3816 = vadd.f32 %v3800, %v3751
        %v3817 = vadd.f32 %v3800, %v3752
        %v3818 = vadd.f32 %v3800, %v3753
        %v3819 = vadd.f32 %v3800, %v3754
        %v3820 = vadd.f32 %v3800, %v3755
        %v3821 = vadd.f32 %v3800, %v3756
        %v3822 = vadd.f32 %v3800, %v3757
        %v3823 = vadd.f32 %v3800, %v3758
        %v3824 = vadd.f32 %v3800, %v3759
        %v3825 = vadd.f32 %v3800, %v3760
        %v3826 = vadd.f32 %v3800, %v3761
        %v3827 = vadd.f32 %v3800, %v3762
        %v3828 = vadd.f32 %v3800, %v3763
        %v3829 = vadd.f32 %v3800, %v3764
        %v3830 = vadd.f32 %v3800, %v3765
        %v3831 = vadd.f32 %v3800, %v3766
        %v3832 = vadd.f32 %v3800, %v3767
        %v3833 = vadd.f32 %v3800, %v3768
        %v3834 = vadd.f32 %v3800, %v3769
        %v3835 = vadd.f32 %v3800, %v3770
        %v3836 = vadd.f32 %v3800, %v3771
        %v3837 = vadd.f32 %v3800, %v3772
        %v3838 = vadd.f32 %v3800, %v3773
        %v3839 = vadd.f32 %v3800, %v3774
        %v3840 = vadd.f32 %v3800, %v3775
        %v3841 = vadd.f32 %v3800, %v3776
        %v3842 = vadd.f32 %v3800, %v3777
        %v3843 = vadd.f32 %v3800, %v3778
        %v3844 = vadd.f32 %v3800, %v3779
        %v3845 = vadd.f32 %v3800, %v3780
        %v3846 = vadd.f32 %v3800, %v3781
        %v3847 = vadd.f32 %v3800, %v3782
        %v3848 = vadd.f32 %v3800, %v3783
        %v3849 = vadd.f32 %v3800, %v3784
        %v3850 = vadd.f32 %v3800, %v3785
        %v3851 = vadd.f32 %v3800, %v3786
        %v3852 = vadd.f32 %v3800, %v3787
        %v3853 = vadd.f32 %v3800, %v3788
        %v3854 = vadd.f32 %v3800, %v3789
        %v3855 = vadd.f32 %v3800, %v3790
        %v3856 = vadd.f32 %v3800, %v3791
        %v3857 = vadd.f32 %v3800, %v3792
        %v3858 = vadd.f32 %v3800, %v3793
        %v3859 = vadd.f32 %v3800, %v3794
        %v3860 = vadd.f32 %v3800, %v3795
        %v3861 = vadd.f32 %v3800, %v3796
        %v3862 = vadd.f32 %v3800, %v3797
        %v3863 = vadd.f32 %v3800, %v3798
        %v3864 = vadd.f32 %v3800, %v3799
        %v3865 = vmax.f32 %v3155, 0.0
        %v3866 = vmax.f32 %v3156, 0.0
        %v3867 = vmax.f32 %v3157, 0.0
        %v3868 = vmax.f32 %v3158, 0.0
        %v3869 = vmax.f32 %v3159, 0.0
        %v3870 = vmax.f32 %v3160, 0.0
        %v3871 = vmax.f32 %v3161, 0.0
        %v3872 = vmax.f32 %v3162, 0.0
        %v3873 = vmax.f32 %v3163, 0.0
        %v3874 = vmax.f32 %v3164, 0.0
        %v3875 = vmax.f32 %v3165, 0.0
        %v3876 = vmax.f32 %v3166, 0.0
        %v3877 = vmax.f32 %v3167, 0.0
        %v3878 = vmax.f32 %v3168, 0.0
        %v3879 = vmax.f32 %v3169, 0.0
        %v3880 = vmax.f32 %v3170, 0.0
        %v3881 = vmax.f32 %v3171, 0.0
        %v3882 = vmax.f32 %v3172, 0.0
        %v3883 = vmax.f32 %v3173, 0.0
        %v3884 = vmax.f32 %v3174, 0.0
        %v3885 = vmax.f32 %v3175, 0.0
        %v3886 = vmax.f32 %v3176, 0.0
        %v3887 = vmax.f32 %v3177, 0.0
        %v3888 = vmax.f32 %v3178, 0.0
        %v3889 = vmax.f32 %v3179, 0.0
        %v3890 = vmax.f32 %v3180, 0.0
        %v3891 = vmax.f32 %v3181, 0.0
        %v3892 = vmax.f32 %v3182, 0.0
        %v3893 = vmax.f32 %v3183, 0.0
        %v3894 = vmax.f32 %v3184, 0.0
        %v3895 = vmax.f32 %v3185, 0.0
        %v3896 = vmax.f32 %v3186, 0.0
        %v3897 = vmax.f32 %v3187, 0.0
        %v3898 = vmax.f32 %v3188, 0.0
        %v3899 = vmax.f32 %v3189, 0.0
        %v3900 = vmax.f32 %v3190, 0.0
        %v3901 = vmax.f32 %v3191, 0.0
        %v3902 = vmax.f32 %v3192, 0.0
        %v3903 = vmax.f32 %v3193, 0.0
        %v3904 = vmax.f32 %v3194, 0.0
        %v3905 = vmax.f32 %v3195, 0.0
        %v3906 = vmax.f32 %v3196, 0.0
        %v3907 = vmax.f32 %v3197, 0.0
        %v3908 = vmax.f32 %v3198, 0.0
        %v3909 = vmax.f32 %v3199, 0.0
        %v3910 = vmax.f32 %v3200, 0.0
        %v3911 = vmax.f32 %v3201, 0.0
        %v3912 = vmax.f32 %v3202, 0.0
        %v3913 = vmax.f32 %v3203, 0.0
        %v3914 = vmax.f32 %v3204, 0.0
        %v3915 = vmax.f32 %v3205, 0.0
        %v3916 = vmax.f32 %v3206, 0.0
        %v3917 = vmax.f32 %v3207, 0.0
        %v3918 = vmax.f32 %v3208, 0.0
        %v3919 = vmax.f32 %v3209, 0.0
        %v3920 = vmax.f32 %v3210, 0.0
        %v3921 = vmax.f32 %v3211, 0.0
        %v3922 = vmax.f32 %v3212, 0.0
        %v3923 = vmax.f32 %v3213, 0.0
        %v3924 = vmax.f32 %v3214, 0.0
        %v3925 = vmax.f32 %v3215, 0.0
        %v3926 = vmax.f32 %v3216, 0.0
        %v3927 = vmax.f32 %v3217, 0.0
        %v3928 = vmax.f32 %v3218, 0.0
        %v3929 = vmul.f32 %v3155, %v3801
        %v3930 = vmul.f32 %v3156, %v3802
        %v3931 = vmul.f32 %v3157, %v3803
        %v3932 = vmul.f32 %v3158, %v3804
        %v3933 = vmul.f32 %v3159, %v3805
        %v3934 = vmul.f32 %v3160, %v3806
        %v3935 = vmul.f32 %v3161, %v3807
        %v3936 = vmul.f32 %v3162, %v3808
        %v3937 = vmul.f32 %v3163, %v3809
        %v3938 = vmul.f32 %v3164, %v3810
        %v3939 = vmul.f32 %v3165, %v3811
        %v3940 = vmul.f32 %v3166, %v3812
        %v3941 = vmul.f32 %v3167, %v3813
        %v3942 = vmul.f32 %v3168, %v3814
        %v3943 = vmul.f32 %v3169, %v3815
        %v3944 = vmul.f32 %v3170, %v3816
        %v3945 = vmul.f32 %v3171, %v3817
        %v3946 = vmul.f32 %v3172, %v3818
        %v3947 = vmul.f32 %v3173, %v3819
        %v3948 = vmul.f32 %v3174, %v3820
        %v3949 = vmul.f32 %v3175, %v3821
        %v3950 = vmul.f32 %v3176, %v3822
        %v3951 = vmul.f32 %v3177, %v3823
        %v3952 = vmul.f32 %v3178, %v3824
        %v3953 = vmul.f32 %v3179, %v3825
        %v3954 = vmul.f32 %v3180, %v3826
        %v3955 = vmul.f32 %v3181, %v3827
        %v3956 = vmul.f32 %v3182, %v3828
        %v3957 = vmul.f32 %v3183, %v3829
        %v3958 = vmul.f32 %v3184, %v3830
        %v3959 = vmul.f32 %v3185, %v3831
        %v3960 = vmul.f32 %v3186, %v3832
        %v3961 = vmul.f32 %v3187, %v3833
        %v3962 = vmul.f32 %v3188, %v3834
        %v3963 = vmul.f32 %v3189, %v3835
        %v3964 = vmul.f32 %v3190, %v3836
        %v3965 = vmul.f32 %v3191, %v3837
        %v3966 = vmul.f32 %v3192, %v3838
        %v3967 = vmul.f32 %v3193, %v3839
        %v3968 = vmul.f32 %v3194, %v3840
        %v3969 = vmul.f32 %v3195, %v3841
        %v3970 = vmul.f32 %v3196, %v3842
        %v3971 = vmul.f32 %v3197, %v3843
        %v3972 = vmul.f32 %v3198, %v3844
        %v3973 = vmul.f32 %v3199, %v3845
        %v3974 = vmul.f32 %v3200, %v3846
        %v3975 = vmul.f32 %v3201, %v3847
        %v3976 = vmul.f32 %v3202, %v3848
        %v3977 = vmul.f32 %v3203, %v3849
        %v3978 = vmul.f32 %v3204, %v3850
        %v3979 = vmul.f32 %v3205, %v3851
        %v3980 = vmul.f32 %v3206, %v3852
        %v3981 = vmul.f32 %v3207, %v3853
        %v3982 = vmul.f32 %v3208, %v3854
        %v3983 = vmul.f32 %v3209, %v3855
        %v3984 = vmul.f32 %v3210, %v3856
        %v3985 = vmul.f32 %v3211, %v3857
        %v3986 = vmul.f32 %v3212, %v3858
        %v3987 = vmul.f32 %v3213, %v3859
        %v3988 = vmul.f32 %v3214, %v3860
        %v3989 = vmul.f32 %v3215, %v3861
        %v3990 = vmul.f32 %v3216, %v3862
        %v3991 = vmul.f32 %v3217, %v3863
        %v3992 = vmul.f32 %v3218, %v3864
        %v3993 = vsub.f32 %v3865, %v3929
        %v3994 = vsub.f32 %v3866, %v3930
        %v3995 = vsub.f32 %v3867, %v3931
        %v3996 = vsub.f32 %v3868, %v3932
        %v3997 = vsub.f32 %v3869, %v3933
        %v3998 = vsub.f32 %v3870, %v3934
        %v3999 = vsub.f32 %v3871, %v3935
        %v4000 = vsub.f32 %v3872, %v3936
        %v4001 = vsub.f32 %v3873, %v3937
        %v4002 = vsub.f32 %v3874, %v3938
        %v4003 = vsub.f32 %v3875, %v3939
        %v4004 = vsub.f32 %v3876, %v3940
        %v4005 = vsub.f32 %v3877, %v3941
        %v4006 = vsub.f32 %v3878, %v3942
        %v4007 = vsub.f32 %v3879, %v3943
        %v4008 = vsub.f32 %v3880, %v3944
        %v4009 = vsub.f32 %v3881, %v3945
        %v4010 = vsub.f32 %v3882, %v3946
        %v4011 = vsub.f32 %v3883, %v3947
        %v4012 = vsub.f32 %v3884, %v3948
        %v4013 = vsub.f32 %v3885, %v3949
        %v4014 = vsub.f32 %v3886, %v3950
        %v4015 = vsub.f32 %v3887, %v3951
        %v4016 = vsub.f32 %v3888, %v3952
        %v4017 = vsub.f32 %v3889, %v3953
        %v4018 = vsub.f32 %v3890, %v3954
        %v4019 = vsub.f32 %v3891, %v3955
        %v4020 = vsub.f32 %v3892, %v3956
        %v4021 = vsub.f32 %v3893, %v3957
        %v4022 = vsub.f32 %v3894, %v3958
        %v4023 = vsub.f32 %v3895, %v3959
        %v4024 = vsub.f32 %v3896, %v3960
        %v4025 = vsub.f32 %v3897, %v3961
        %v4026 = vsub.f32 %v3898, %v3962
        %v4027 = vsub.f32 %v3899, %v3963
        %v4028 = vsub.f32 %v3900, %v3964
        %v4029 = vsub.f32 %v3901, %v3965
        %v4030 = vsub.f32 %v3902, %v3966
        %v4031 = vsub.f32 %v3903, %v3967
        %v4032 = vsub.f32 %v3904, %v3968
        %v4033 = vsub.f32 %v3905, %v3969
        %v4034 = vsub.f32 %v3906, %v3970
        %v4035 = vsub.f32 %v3907, %v3971
        %v4036 = vsub.f32 %v3908, %v3972
        %v4037 = vsub.f32 %v3909, %v3973
        %v4038 = vsub.f32 %v3910, %v3974
        %v4039 = vsub.f32 %v3911, %v3975
        %v4040 = vsub.f32 %v3912, %v3976
        %v4041 = vsub.f32 %v3913, %v3977
        %v4042 = vsub.f32 %v3914, %v3978
        %v4043 = vsub.f32 %v3915, %v3979
        %v4044 = vsub.f32 %v3916, %v3980
        %v4045 = vsub.f32 %v3917, %v3981
        %v4046 = vsub.f32 %v3918, %v3982
        %v4047 = vsub.f32 %v3919, %v3983
        %v4048 = vsub.f32 %v3920, %v3984
        %v4049 = vsub.f32 %v3921, %v3985
        %v4050 = vsub.f32 %v3922, %v3986
        %v4051 = vsub.f32 %v3923, %v3987
        %v4052 = vsub.f32 %v3924, %v3988
        %v4053 = vsub.f32 %v3925, %v3989
        %v4054 = vsub.f32 %v3926, %v3990
        %v4055 = vsub.f32 %v3927, %v3991
        %v4056 = vsub.f32 %v3928, %v3992
        %v4057 = vand.u32 2147483647, %v3155
        %v4058 = vand.u32 2147483647, %v3156
        %v4059 = vand.u32 2147483647, %v3157
        %v4060 = vand.u32 2147483647, %v3158
        %v4061 = vand.u32 2147483647, %v3159
        %v4062 = vand.u32 2147483647, %v3160
        %v4063 = vand.u32 2147483647, %v3161
        %v4064 = vand.u32 2147483647, %v3162
        %v4065 = vand.u32 2147483647, %v3163
        %v4066 = vand.u32 2147483647, %v3164
        %v4067 = vand.u32 2147483647, %v3165
        %v4068 = vand.u32 2147483647, %v3166
        %v4069 = vand.u32 2147483647, %v3167
        %v4070 = vand.u32 2147483647, %v3168
        %v4071 = vand.u32 2147483647, %v3169
        %v4072 = vand.u32 2147483647, %v3170
        %v4073 = vand.u32 2147483647, %v3171
        %v4074 = vand.u32 2147483647, %v3172
        %v4075 = vand.u32 2147483647, %v3173
        %v4076 = vand.u32 2147483647, %v3174
        %v4077 = vand.u32 2147483647, %v3175
        %v4078 = vand.u32 2147483647, %v3176
        %v4079 = vand.u32 2147483647, %v3177
        %v4080 = vand.u32 2147483647, %v3178
        %v4081 = vand.u32 2147483647, %v3179
        %v4082 = vand.u32 2147483647, %v3180
        %v4083 = vand.u32 2147483647, %v3181
        %v4084 = vand.u32 2147483647, %v3182
        %v4085 = vand.u32 2147483647, %v3183
        %v4086 = vand.u32 2147483647, %v3184
        %v4087 = vand.u32 2147483647, %v3185
        %v4088 = vand.u32 2147483647, %v3186
        %v4089 = vand.u32 2147483647, %v3187
        %v4090 = vand.u32 2147483647, %v3188
        %v4091 = vand.u32 2147483647, %v3189
        %v4092 = vand.u32 2147483647, %v3190
        %v4093 = vand.u32 2147483647, %v3191
        %v4094 = vand.u32 2147483647, %v3192
        %v4095 = vand.u32 2147483647, %v3193
        %v4096 = vand.u32 2147483647, %v3194
        %v4097 = vand.u32 2147483647, %v3195
        %v4098 = vand.u32 2147483647, %v3196
        %v4099 = vand.u32 2147483647, %v3197
        %v4100 = vand.u32 2147483647, %v3198
        %v4101 = vand.u32 2147483647, %v3199
        %v4102 = vand.u32 2147483647, %v3200
        %v4103 = vand.u32 2147483647, %v3201
        %v4104 = vand.u32 2147483647, %v3202
        %v4105 = vand.u32 2147483647, %v3203
        %v4106 = vand.u32 2147483647, %v3204
        %v4107 = vand.u32 2147483647, %v3205
        %v4108 = vand.u32 2147483647, %v3206
        %v4109 = vand.u32 2147483647, %v3207
        %v4110 = vand.u32 2147483647, %v3208
        %v4111 = vand.u32 2147483647, %v3209
        %v4112 = vand.u32 2147483647, %v3210
        %v4113 = vand.u32 2147483647, %v3211
        %v4114 = vand.u32 2147483647, %v3212
        %v4115 = vand.u32 2147483647, %v3213
        %v4116 = vand.u32 2147483647, %v3214
        %v4117 = vand.u32 2147483647, %v3215
        %v4118 = vand.u32 2147483647, %v3216
        %v4119 = vand.u32 2147483647, %v3217
        %v4120 = vand.u32 2147483647, %v3218
        %v4121 = vsub.f32 0.0, %v4057
        %v4122 = vsub.f32 0.0, %v4058
        %v4123 = vsub.f32 0.0, %v4059
        %v4124 = vsub.f32 0.0, %v4060
        %v4125 = vsub.f32 0.0, %v4061
        %v4126 = vsub.f32 0.0, %v4062
        %v4127 = vsub.f32 0.0, %v4063
        %v4128 = vsub.f32 0.0, %v4064
        %v4129 = vsub.f32 0.0, %v4065
        %v4130 = vsub.f32 0.0, %v4066
        %v4131 = vsub.f32 0.0, %v4067
        %v4132 = vsub.f32 0.0, %v4068
        %v4133 = vsub.f32 0.0, %v4069
        %v4134 = vsub.f32 0.0, %v4070
        %v4135 = vsub.f32 0.0, %v4071
        %v4136 = vsub.f32 0.0, %v4072
        %v4137 = vsub.f32 0.0, %v4073
        %v4138 = vsub.f32 0.0, %v4074
        %v4139 = vsub.f32 0.0, %v4075
        %v4140 = vsub.f32 0.0, %v4076
        %v4141 = vsub.f32 0.0, %v4077
        %v4142 = vsub.f32 0.0, %v4078
        %v4143 = vsub.f32 0.0, %v4079
        %v4144 = vsub.f32 0.0, %v4080
        %v4145 = vsub.f32 0.0, %v4081
        %v4146 = vsub.f32 0.0, %v4082
        %v4147 = vsub.f32 0.0, %v4083
        %v4148 = vsub.f32 0.0, %v4084
        %v4149 = vsub.f32 0.0, %v4085
        %v4150 = vsub.f32 0.0, %v4086
        %v4151 = vsub.f32 0.0, %v4087
        %v4152 = vsub.f32 0.0, %v4088
        %v4153 = vsub.f32 0.0, %v4089
        %v4154 = vsub.f32 0.0, %v4090
        %v4155 = vsub.f32 0.0, %v4091
        %v4156 = vsub.f32 0.0, %v4092
        %v4157 = vsub.f32 0.0, %v4093
        %v4158 = vsub.f32 0.0, %v4094
        %v4159 = vsub.f32 0.0, %v4095
        %v4160 = vsub.f32 0.0, %v4096
        %v4161 = vsub.f32 0.0, %v4097
        %v4162 = vsub.f32 0.0, %v4098
        %v4163 = vsub.f32 0.0, %v4099
        %v4164 = vsub.f32 0.0, %v4100
        %v4165 = vsub.f32 0.0, %v4101
        %v4166 = vsub.f32 0.0, %v4102
        %v4167 = vsub.f32 0.0, %v4103
        %v4168 = vsub.f32 0.0, %v4104
        %v4169 = vsub.f32 0.0, %v4105
        %v4170 = vsub.f32 0.0, %v4106
        %v4171 = vsub.f32 0.0, %v4107
        %v4172 = vsub.f32 0.0, %v4108
        %v4173 = vsub.f32 0.0, %v4109
        %v4174 = vsub.f32 0.0, %v4110
        %v4175 = vsub.f32 0.0, %v4111
        %v4176 = vsub.f32 0.0, %v4112
        %v4177 = vsub.f32 0.0, %v4113
        %v4178 = vsub.f32 0.0, %v4114
        %v4179 = vsub.f32 0.0, %v4115
        %v4180 = vsub.f32 0.0, %v4116
        %v4181 = vsub.f32 0.0, %v4117
        %v4182 = vsub.f32 0.0, %v4118
        %v4183 = vsub.f32 0.0, %v4119
        %v4184 = vsub.f32 0.0, %v4120
        %v4185 = vmul.f32 %v4121, 1.442695
        %v4186 = vpow.pop %v4185
        %v4187 = vmul.f32 %v4122, 1.442695
        %v4188 = vpow.pop %v4187
        %v4189 = vmul.f32 %v4123, 1.442695
        %v4190 = vpow.pop %v4189
        %v4191 = vmul.f32 %v4124, 1.442695
        %v4192 = vpow.pop %v4191
        %v4193 = vmul.f32 %v4125, 1.442695
        %v4194 = vpow.pop %v4193
        %v4195 = vmul.f32 %v4126, 1.442695
        %v4196 = vpow.pop %v4195
        %v4197 = vmul.f32 %v4127, 1.442695
        %v4198 = vpow.pop %v4197
        %v4199 = vmul.f32 %v4128, 1.442695
        %v4200 = vpow.pop %v4199
        %v4201 = vmul.f32 %v4129, 1.442695
        %v4202 = vpow.pop %v4201
        %v4203 = vmul.f32 %v4130, 1.442695
        %v4204 = vpow.pop %v4203
        %v4205 = vmul.f32 %v4131, 1.442695
        %v4206 = vpow.pop %v4205
        %v4207 = vmul.f32 %v4132, 1.442695
        %v4208 = vpow.pop %v4207
        %v4209 = vmul.f32 %v4133, 1.442695
        %v4210 = vpow.pop %v4209
        %v4211 = vmul.f32 %v4134, 1.442695
        %v4212 = vpow.pop %v4211
        %v4213 = vmul.f32 %v4135, 1.442695
        %v4214 = vpow.pop %v4213
        %v4215 = vmul.f32 %v4136, 1.442695
        %v4216 = vpow.pop %v4215
        %v4217 = vmul.f32 %v4137, 1.442695
        %v4218 = vpow.pop %v4217
        %v4219 = vmul.f32 %v4138, 1.442695
        %v4220 = vpow.pop %v4219
        %v4221 = vmul.f32 %v4139, 1.442695
        %v4222 = vpow.pop %v4221
        %v4223 = vmul.f32 %v4140, 1.442695
        %v4224 = vpow.pop %v4223
        %v4225 = vmul.f32 %v4141, 1.442695
        %v4226 = vpow.pop %v4225
        %v4227 = vmul.f32 %v4142, 1.442695
        %v4228 = vpow.pop %v4227
        %v4229 = vmul.f32 %v4143, 1.442695
        %v4230 = vpow.pop %v4229
        %v4231 = vmul.f32 %v4144, 1.442695
        %v4232 = vpow.pop %v4231
        %v4233 = vmul.f32 %v4145, 1.442695
        %v4234 = vpow.pop %v4233
        %v4235 = vmul.f32 %v4146, 1.442695
        %v4236 = vpow.pop %v4235
        %v4237 = vmul.f32 %v4147, 1.442695
        %v4238 = vpow.pop %v4237
        %v4239 = vmul.f32 %v4148, 1.442695
        %v4240 = vpow.pop %v4239
        %v4241 = vmul.f32 %v4149, 1.442695
        %v4242 = vpow.pop %v4241
        %v4243 = vmul.f32 %v4150, 1.442695
        %v4244 = vpow.pop %v4243
        %v4245 = vmul.f32 %v4151, 1.442695
        %v4246 = vpow.pop %v4245
        %v4247 = vmul.f32 %v4152, 1.442695
        %v4248 = vpow.pop %v4247
        %v4249 = vmul.f32 %v4153, 1.442695
        %v4250 = vpow.pop %v4249
        %v4251 = vmul.f32 %v4154, 1.442695
        %v4252 = vpow.pop %v4251
        %v4253 = vmul.f32 %v4155, 1.442695
        %v4254 = vpow.pop %v4253
        %v4255 = vmul.f32 %v4156, 1.442695
        %v4256 = vpow.pop %v4255
        %v4257 = vmul.f32 %v4157, 1.442695
        %v4258 = vpow.pop %v4257
        %v4259 = vmul.f32 %v4158, 1.442695
        %v4260 = vpow.pop %v4259
        %v4261 = vmul.f32 %v4159, 1.442695
        %v4262 = vpow.pop %v4261
        %v4263 = vmul.f32 %v4160, 1.442695
        %v4264 = vpow.pop %v4263
        %v4265 = vmul.f32 %v4161, 1.442695
        %v4266 = vpow.pop %v4265
        %v4267 = vmul.f32 %v4162, 1.442695
        %v4268 = vpow.pop %v4267
        %v4269 = vmul.f32 %v4163, 1.442695
        %v4270 = vpow.pop %v4269
        %v4271 = vmul.f32 %v4164, 1.442695
        %v4272 = vpow.pop %v4271
        %v4273 = vmul.f32 %v4165, 1.442695
        %v4274 = vpow.pop %v4273
        %v4275 = vmul.f32 %v4166, 1.442695
        %v4276 = vpow.pop %v4275
        %v4277 = vmul.f32 %v4167, 1.442695
        %v4278 = vpow.pop %v4277
        %v4279 = vmul.f32 %v4168, 1.442695
        %v4280 = vpow.pop %v4279
        %v4281 = vmul.f32 %v4169, 1.442695
        %v4282 = vpow.pop %v4281
        %v4283 = vmul.f32 %v4170, 1.442695
        %v4284 = vpow.pop %v4283
        %v4285 = vmul.f32 %v4171, 1.442695
        %v4286 = vpow.pop %v4285
        %v4287 = vmul.f32 %v4172, 1.442695
        %v4288 = vpow.pop %v4287
        %v4289 = vmul.f32 %v4173, 1.442695
        %v4290 = vpow.pop %v4289
        %v4291 = vmul.f32 %v4174, 1.442695
        %v4292 = vpow.pop %v4291
        %v4293 = vmul.f32 %v4175, 1.442695
        %v4294 = vpow.pop %v4293
        %v4295 = vmul.f32 %v4176, 1.442695
        %v4296 = vpow.pop %v4295
        %v4297 = vmul.f32 %v4177, 1.442695
        %v4298 = vpow.pop %v4297
        %v4299 = vmul.f32 %v4178, 1.442695
        %v4300 = vpow.pop %v4299
        %v4301 = vmul.f32 %v4179, 1.442695
        %v4302 = vpow.pop %v4301
        %v4303 = vmul.f32 %v4180, 1.442695
        %v4304 = vpow.pop %v4303
        %v4305 = vmul.f32 %v4181, 1.442695
        %v4306 = vpow.pop %v4305
        %v4307 = vmul.f32 %v4182, 1.442695
        %v4308 = vpow.pop %v4307
        %v4309 = vmul.f32 %v4183, 1.442695
        %v4310 = vpow.pop %v4309
        %v4311 = vmul.f32 %v4184, 1.442695
        %v4312 = vpow.pop %v4311
        %v4313 = vadd.f32 %v4186, 1.0
        %v4314 = vlog2.pop %v4313
        %v4315 = vmul.f32 %v4314, 0.6931472
        %v4316 = vmul.f32 -0.5, %v4186
        %v4317 = vadd.f32 %v4316, 1.0
        %v4318 = vmul.f32 %v4317, %v4186
        %v4319 = vand.u32 2147483647, %v4186
        %vm4320 = vcmp.lt.f32.partialorder %v4319, 0.0004427343
        %v4321 = vsel %vm4320, %v4318, %v4315
        %v4322 = vadd.f32 %v4188, 1.0
        %v4323 = vlog2.pop %v4322
        %v4324 = vmul.f32 %v4323, 0.6931472
        %v4325 = vmul.f32 -0.5, %v4188
        %v4326 = vadd.f32 %v4325, 1.0
        %v4327 = vmul.f32 %v4326, %v4188
        %v4328 = vand.u32 2147483647, %v4188
        %vm4329 = vcmp.lt.f32.partialorder %v4328, 0.0004427343
        %v4330 = vsel %vm4329, %v4327, %v4324
        %v4331 = vadd.f32 %v4190, 1.0
        %v4332 = vlog2.pop %v4331
        %v4333 = vmul.f32 %v4332, 0.6931472
        %v4334 = vmul.f32 -0.5, %v4190
        %v4335 = vadd.f32 %v4334, 1.0
        %v4336 = vmul.f32 %v4335, %v4190
        %v4337 = vand.u32 2147483647, %v4190
        %vm4338 = vcmp.lt.f32.partialorder %v4337, 0.0004427343
        %v4339 = vsel %vm4338, %v4336, %v4333
        %v4340 = vadd.f32 %v4192, 1.0
        %v4341 = vlog2.pop %v4340
        %v4342 = vmul.f32 %v4341, 0.6931472
        %v4343 = vmul.f32 -0.5, %v4192
        %v4344 = vadd.f32 %v4343, 1.0
        %v4345 = vmul.f32 %v4344, %v4192
        %v4346 = vand.u32 2147483647, %v4192
        %vm4347 = vcmp.lt.f32.partialorder %v4346, 0.0004427343
        %v4348 = vsel %vm4347, %v4345, %v4342
        %v4349 = vadd.f32 %v4194, 1.0
        %v4350 = vlog2.pop %v4349
        %v4351 = vmul.f32 %v4350, 0.6931472
        %v4352 = vmul.f32 -0.5, %v4194
        %v4353 = vadd.f32 %v4352, 1.0
        %v4354 = vmul.f32 %v4353, %v4194
        %v4355 = vand.u32 2147483647, %v4194
        %vm4356 = vcmp.lt.f32.partialorder %v4355, 0.0004427343
        %v4357 = vsel %vm4356, %v4354, %v4351
        %v4358 = vadd.f32 %v4196, 1.0
        %v4359 = vlog2.pop %v4358
        %v4360 = vmul.f32 %v4359, 0.6931472
        %v4361 = vmul.f32 -0.5, %v4196
        %v4362 = vadd.f32 %v4361, 1.0
        %v4363 = vmul.f32 %v4362, %v4196
        %v4364 = vand.u32 2147483647, %v4196
        %vm4365 = vcmp.lt.f32.partialorder %v4364, 0.0004427343
        %v4366 = vsel %vm4365, %v4363, %v4360
        %v4367 = vadd.f32 %v4198, 1.0
        %v4368 = vlog2.pop %v4367
        %v4369 = vmul.f32 %v4368, 0.6931472
        %v4370 = vmul.f32 -0.5, %v4198
        %v4371 = vadd.f32 %v4370, 1.0
        %v4372 = vmul.f32 %v4371, %v4198
        %v4373 = vand.u32 2147483647, %v4198
        %vm4374 = vcmp.lt.f32.partialorder %v4373, 0.0004427343
        %v4375 = vsel %vm4374, %v4372, %v4369
        %v4376 = vadd.f32 %v4200, 1.0
        %v4377 = vlog2.pop %v4376
        %v4378 = vmul.f32 %v4377, 0.6931472
        %v4379 = vmul.f32 -0.5, %v4200
        %v4380 = vadd.f32 %v4379, 1.0
        %v4381 = vmul.f32 %v4380, %v4200
        %v4382 = vand.u32 2147483647, %v4200
        %vm4383 = vcmp.lt.f32.partialorder %v4382, 0.0004427343
        %v4384 = vsel %vm4383, %v4381, %v4378
        %v4385 = vadd.f32 %v4202, 1.0
        %v4386 = vlog2.pop %v4385
        %v4387 = vmul.f32 %v4386, 0.6931472
        %v4388 = vmul.f32 -0.5, %v4202
        %v4389 = vadd.f32 %v4388, 1.0
        %v4390 = vmul.f32 %v4389, %v4202
        %v4391 = vand.u32 2147483647, %v4202
        %vm4392 = vcmp.lt.f32.partialorder %v4391, 0.0004427343
        %v4393 = vsel %vm4392, %v4390, %v4387
        %v4394 = vadd.f32 %v4204, 1.0
        %v4395 = vlog2.pop %v4394
        %v4396 = vmul.f32 %v4395, 0.6931472
        %v4397 = vmul.f32 -0.5, %v4204
        %v4398 = vadd.f32 %v4397, 1.0
        %v4399 = vmul.f32 %v4398, %v4204
        %v4400 = vand.u32 2147483647, %v4204
        %vm4401 = vcmp.lt.f32.partialorder %v4400, 0.0004427343
        %v4402 = vsel %vm4401, %v4399, %v4396
        %v4403 = vadd.f32 %v4206, 1.0
        %v4404 = vlog2.pop %v4403
        %v4405 = vmul.f32 %v4404, 0.6931472
        %v4406 = vmul.f32 -0.5, %v4206
        %v4407 = vadd.f32 %v4406, 1.0
        %v4408 = vmul.f32 %v4407, %v4206
        %v4409 = vand.u32 2147483647, %v4206
        %vm4410 = vcmp.lt.f32.partialorder %v4409, 0.0004427343
        %v4411 = vsel %vm4410, %v4408, %v4405
        %v4412 = vadd.f32 %v4208, 1.0
        %v4413 = vlog2.pop %v4412
        %v4414 = vmul.f32 %v4413, 0.6931472
        %v4415 = vmul.f32 -0.5, %v4208
        %v4416 = vadd.f32 %v4415, 1.0
        %v4417 = vmul.f32 %v4416, %v4208
        %v4418 = vand.u32 2147483647, %v4208
        %vm4419 = vcmp.lt.f32.partialorder %v4418, 0.0004427343
        %v4420 = vsel %vm4419, %v4417, %v4414
        %v4421 = vadd.f32 %v4210, 1.0
        %v4422 = vlog2.pop %v4421
        %v4423 = vmul.f32 %v4422, 0.6931472
        %v4424 = vmul.f32 -0.5, %v4210
        %v4425 = vadd.f32 %v4424, 1.0
        %v4426 = vmul.f32 %v4425, %v4210
        %v4427 = vand.u32 2147483647, %v4210
        %vm4428 = vcmp.lt.f32.partialorder %v4427, 0.0004427343
        %v4429 = vsel %vm4428, %v4426, %v4423
        %v4430 = vadd.f32 %v4212, 1.0
        %v4431 = vlog2.pop %v4430
        %v4432 = vmul.f32 %v4431, 0.6931472
        %v4433 = vmul.f32 -0.5, %v4212
        %v4434 = vadd.f32 %v4433, 1.0
        %v4435 = vmul.f32 %v4434, %v4212
        %v4436 = vand.u32 2147483647, %v4212
        %vm4437 = vcmp.lt.f32.partialorder %v4436, 0.0004427343
        %v4438 = vsel %vm4437, %v4435, %v4432
        %v4439 = vadd.f32 %v4214, 1.0
        %v4440 = vlog2.pop %v4439
        %v4441 = vmul.f32 %v4440, 0.6931472
        %v4442 = vmul.f32 -0.5, %v4214
        %v4443 = vadd.f32 %v4442, 1.0
        %v4444 = vmul.f32 %v4443, %v4214
        %v4445 = vand.u32 2147483647, %v4214
        %vm4446 = vcmp.lt.f32.partialorder %v4445, 0.0004427343
        %v4447 = vsel %vm4446, %v4444, %v4441
        %v4448 = vadd.f32 %v4216, 1.0
        %v4449 = vlog2.pop %v4448
        %v4450 = vmul.f32 %v4449, 0.6931472
        %v4451 = vmul.f32 -0.5, %v4216
        %v4452 = vadd.f32 %v4451, 1.0
        %v4453 = vmul.f32 %v4452, %v4216
        %v4454 = vand.u32 2147483647, %v4216
        %vm4455 = vcmp.lt.f32.partialorder %v4454, 0.0004427343
        %v4456 = vsel %vm4455, %v4453, %v4450
        %v4457 = vadd.f32 %v4218, 1.0
        %v4458 = vlog2.pop %v4457
        %v4459 = vmul.f32 %v4458, 0.6931472
        %v4460 = vmul.f32 -0.5, %v4218
        %v4461 = vadd.f32 %v4460, 1.0
        %v4462 = vmul.f32 %v4461, %v4218
        %v4463 = vand.u32 2147483647, %v4218
        %vm4464 = vcmp.lt.f32.partialorder %v4463, 0.0004427343
        %v4465 = vsel %vm4464, %v4462, %v4459
        %v4466 = vadd.f32 %v4220, 1.0
        %v4467 = vlog2.pop %v4466
        %v4468 = vmul.f32 %v4467, 0.6931472
        %v4469 = vmul.f32 -0.5, %v4220
        %v4470 = vadd.f32 %v4469, 1.0
        %v4471 = vmul.f32 %v4470, %v4220
        %v4472 = vand.u32 2147483647, %v4220
        %vm4473 = vcmp.lt.f32.partialorder %v4472, 0.0004427343
        %v4474 = vsel %vm4473, %v4471, %v4468
        %v4475 = vadd.f32 %v4222, 1.0
        %v4476 = vlog2.pop %v4475
        %v4477 = vmul.f32 %v4476, 0.6931472
        %v4478 = vmul.f32 -0.5, %v4222
        %v4479 = vadd.f32 %v4478, 1.0
        %v4480 = vmul.f32 %v4479, %v4222
        %v4481 = vand.u32 2147483647, %v4222
        %vm4482 = vcmp.lt.f32.partialorder %v4481, 0.0004427343
        %v4483 = vsel %vm4482, %v4480, %v4477
        %v4484 = vadd.f32 %v4224, 1.0
        %v4485 = vlog2.pop %v4484
        %v4486 = vmul.f32 %v4485, 0.6931472
        %v4487 = vmul.f32 -0.5, %v4224
        %v4488 = vadd.f32 %v4487, 1.0
        %v4489 = vmul.f32 %v4488, %v4224
        %v4490 = vand.u32 2147483647, %v4224
        %vm4491 = vcmp.lt.f32.partialorder %v4490, 0.0004427343
        %v4492 = vsel %vm4491, %v4489, %v4486
        %v4493 = vadd.f32 %v4226, 1.0
        %v4494 = vlog2.pop %v4493
        %v4495 = vmul.f32 %v4494, 0.6931472
        %v4496 = vmul.f32 -0.5, %v4226
        %v4497 = vadd.f32 %v4496, 1.0
        %v4498 = vmul.f32 %v4497, %v4226
        %v4499 = vand.u32 2147483647, %v4226
        %vm4500 = vcmp.lt.f32.partialorder %v4499, 0.0004427343
        %v4501 = vsel %vm4500, %v4498, %v4495
        %v4502 = vadd.f32 %v4228, 1.0
        %v4503 = vlog2.pop %v4502
        %v4504 = vmul.f32 %v4503, 0.6931472
        %v4505 = vmul.f32 -0.5, %v4228
        %v4506 = vadd.f32 %v4505, 1.0
        %v4507 = vmul.f32 %v4506, %v4228
        %v4508 = vand.u32 2147483647, %v4228
        %vm4509 = vcmp.lt.f32.partialorder %v4508, 0.0004427343
        %v4510 = vsel %vm4509, %v4507, %v4504
        %v4511 = vadd.f32 %v4230, 1.0
        %v4512 = vlog2.pop %v4511
        %v4513 = vmul.f32 %v4512, 0.6931472
        %v4514 = vmul.f32 -0.5, %v4230
        %v4515 = vadd.f32 %v4514, 1.0
        %v4516 = vmul.f32 %v4515, %v4230
        %v4517 = vand.u32 2147483647, %v4230
        %vm4518 = vcmp.lt.f32.partialorder %v4517, 0.0004427343
        %v4519 = vsel %vm4518, %v4516, %v4513
        %v4520 = vadd.f32 %v4232, 1.0
        %v4521 = vlog2.pop %v4520
        %v4522 = vmul.f32 %v4521, 0.6931472
        %v4523 = vmul.f32 -0.5, %v4232
        %v4524 = vadd.f32 %v4523, 1.0
        %v4525 = vmul.f32 %v4524, %v4232
        %v4526 = vand.u32 2147483647, %v4232
        %vm4527 = vcmp.lt.f32.partialorder %v4526, 0.0004427343
        %v4528 = vsel %vm4527, %v4525, %v4522
        %v4529 = vadd.f32 %v4234, 1.0
        %v4530 = vlog2.pop %v4529
        %v4531 = vmul.f32 %v4530, 0.6931472
        %v4532 = vmul.f32 -0.5, %v4234
        %v4533 = vadd.f32 %v4532, 1.0
        %v4534 = vmul.f32 %v4533, %v4234
        %v4535 = vand.u32 2147483647, %v4234
        %vm4536 = vcmp.lt.f32.partialorder %v4535, 0.0004427343
        %v4537 = vsel %vm4536, %v4534, %v4531
        %v4538 = vadd.f32 %v4236, 1.0
        %v4539 = vlog2.pop %v4538
        %v4540 = vmul.f32 %v4539, 0.6931472
        %v4541 = vmul.f32 -0.5, %v4236
        %v4542 = vadd.f32 %v4541, 1.0
        %v4543 = vmul.f32 %v4542, %v4236
        %v4544 = vand.u32 2147483647, %v4236
        %vm4545 = vcmp.lt.f32.partialorder %v4544, 0.0004427343
        %v4546 = vsel %vm4545, %v4543, %v4540
        %v4547 = vadd.f32 %v4238, 1.0
        %v4548 = vlog2.pop %v4547
        %v4549 = vmul.f32 %v4548, 0.6931472
        %v4550 = vmul.f32 -0.5, %v4238
        %v4551 = vadd.f32 %v4550, 1.0
        %v4552 = vmul.f32 %v4551, %v4238
        %v4553 = vand.u32 2147483647, %v4238
        %vm4554 = vcmp.lt.f32.partialorder %v4553, 0.0004427343
        %v4555 = vsel %vm4554, %v4552, %v4549
        %v4556 = vadd.f32 %v4240, 1.0
        %v4557 = vlog2.pop %v4556
        %v4558 = vmul.f32 %v4557, 0.6931472
        %v4559 = vmul.f32 -0.5, %v4240
        %v4560 = vadd.f32 %v4559, 1.0
        %v4561 = vmul.f32 %v4560, %v4240
        %v4562 = vand.u32 2147483647, %v4240
        %vm4563 = vcmp.lt.f32.partialorder %v4562, 0.0004427343
        %v4564 = vsel %vm4563, %v4561, %v4558
        %v4565 = vadd.f32 %v4242, 1.0
        %v4566 = vlog2.pop %v4565
        %v4567 = vmul.f32 %v4566, 0.6931472
        %v4568 = vmul.f32 -0.5, %v4242
        %v4569 = vadd.f32 %v4568, 1.0
        %v4570 = vmul.f32 %v4569, %v4242
        %v4571 = vand.u32 2147483647, %v4242
        %vm4572 = vcmp.lt.f32.partialorder %v4571, 0.0004427343
        %v4573 = vsel %vm4572, %v4570, %v4567
        %v4574 = vadd.f32 %v4244, 1.0
        %v4575 = vlog2.pop %v4574
        %v4576 = vmul.f32 %v4575, 0.6931472
        %v4577 = vmul.f32 -0.5, %v4244
        %v4578 = vadd.f32 %v4577, 1.0
        %v4579 = vmul.f32 %v4578, %v4244
        %v4580 = vand.u32 2147483647, %v4244
        %vm4581 = vcmp.lt.f32.partialorder %v4580, 0.0004427343
        %v4582 = vsel %vm4581, %v4579, %v4576
        %v4583 = vadd.f32 %v4246, 1.0
        %v4584 = vlog2.pop %v4583
        %v4585 = vmul.f32 %v4584, 0.6931472
        %v4586 = vmul.f32 -0.5, %v4246
        %v4587 = vadd.f32 %v4586, 1.0
        %v4588 = vmul.f32 %v4587, %v4246
        %v4589 = vand.u32 2147483647, %v4246
        %vm4590 = vcmp.lt.f32.partialorder %v4589, 0.0004427343
        %v4591 = vsel %vm4590, %v4588, %v4585
        %v4592 = vadd.f32 %v4248, 1.0
        %v4593 = vlog2.pop %v4592
        %v4594 = vmul.f32 %v4593, 0.6931472
        %v4595 = vmul.f32 -0.5, %v4248
        %v4596 = vadd.f32 %v4595, 1.0
        %v4597 = vmul.f32 %v4596, %v4248
        %v4598 = vand.u32 2147483647, %v4248
        %vm4599 = vcmp.lt.f32.partialorder %v4598, 0.0004427343
        %v4600 = vsel %vm4599, %v4597, %v4594
        %v4601 = vadd.f32 %v4250, 1.0
        %v4602 = vlog2.pop %v4601
        %v4603 = vmul.f32 %v4602, 0.6931472
        %v4604 = vmul.f32 -0.5, %v4250
        %v4605 = vadd.f32 %v4604, 1.0
        %v4606 = vmul.f32 %v4605, %v4250
        %v4607 = vand.u32 2147483647, %v4250
        %vm4608 = vcmp.lt.f32.partialorder %v4607, 0.0004427343
        %v4609 = vsel %vm4608, %v4606, %v4603
        %v4610 = vadd.f32 %v4252, 1.0
        %v4611 = vlog2.pop %v4610
        %v4612 = vmul.f32 %v4611, 0.6931472
        %v4613 = vmul.f32 -0.5, %v4252
        %v4614 = vadd.f32 %v4613, 1.0
        %v4615 = vmul.f32 %v4614, %v4252
        %v4616 = vand.u32 2147483647, %v4252
        %vm4617 = vcmp.lt.f32.partialorder %v4616, 0.0004427343
        %v4618 = vsel %vm4617, %v4615, %v4612
        %v4619 = vadd.f32 %v4254, 1.0
        %v4620 = vlog2.pop %v4619
        %v4621 = vmul.f32 %v4620, 0.6931472
        %v4622 = vmul.f32 -0.5, %v4254
        %v4623 = vadd.f32 %v4622, 1.0
        %v4624 = vmul.f32 %v4623, %v4254
        %v4625 = vand.u32 2147483647, %v4254
        %vm4626 = vcmp.lt.f32.partialorder %v4625, 0.0004427343
        %v4627 = vsel %vm4626, %v4624, %v4621
        %v4628 = vadd.f32 %v4256, 1.0
        %v4629 = vlog2.pop %v4628
        %v4630 = vmul.f32 %v4629, 0.6931472
        %v4631 = vmul.f32 -0.5, %v4256
        %v4632 = vadd.f32 %v4631, 1.0
        %v4633 = vmul.f32 %v4632, %v4256
        %v4634 = vand.u32 2147483647, %v4256
        %vm4635 = vcmp.lt.f32.partialorder %v4634, 0.0004427343
        %v4636 = vsel %vm4635, %v4633, %v4630
        %v4637 = vadd.f32 %v4258, 1.0
        %v4638 = vlog2.pop %v4637
        %v4639 = vmul.f32 %v4638, 0.6931472
        %v4640 = vmul.f32 -0.5, %v4258
        %v4641 = vadd.f32 %v4640, 1.0
        %v4642 = vmul.f32 %v4641, %v4258
        %v4643 = vand.u32 2147483647, %v4258
        %vm4644 = vcmp.lt.f32.partialorder %v4643, 0.0004427343
        %v4645 = vsel %vm4644, %v4642, %v4639
        %v4646 = vadd.f32 %v4260, 1.0
        %v4647 = vlog2.pop %v4646
        %v4648 = vmul.f32 %v4647, 0.6931472
        %v4649 = vmul.f32 -0.5, %v4260
        %v4650 = vadd.f32 %v4649, 1.0
        %v4651 = vmul.f32 %v4650, %v4260
        %v4652 = vand.u32 2147483647, %v4260
        %vm4653 = vcmp.lt.f32.partialorder %v4652, 0.0004427343
        %v4654 = vsel %vm4653, %v4651, %v4648
        %v4655 = vadd.f32 %v4262, 1.0
        %v4656 = vlog2.pop %v4655
        %v4657 = vmul.f32 %v4656, 0.6931472
        %v4658 = vmul.f32 -0.5, %v4262
        %v4659 = vadd.f32 %v4658, 1.0
        %v4660 = vmul.f32 %v4659, %v4262
        %v4661 = vand.u32 2147483647, %v4262
        %vm4662 = vcmp.lt.f32.partialorder %v4661, 0.0004427343
        %v4663 = vsel %vm4662, %v4660, %v4657
        %v4664 = vadd.f32 %v4264, 1.0
        %v4665 = vlog2.pop %v4664
        %v4666 = vmul.f32 %v4665, 0.6931472
        %v4667 = vmul.f32 -0.5, %v4264
        %v4668 = vadd.f32 %v4667, 1.0
        %v4669 = vmul.f32 %v4668, %v4264
        %v4670 = vand.u32 2147483647, %v4264
        %vm4671 = vcmp.lt.f32.partialorder %v4670, 0.0004427343
        %v4672 = vsel %vm4671, %v4669, %v4666
        %v4673 = vadd.f32 %v4266, 1.0
        %v4674 = vlog2.pop %v4673
        %v4675 = vmul.f32 %v4674, 0.6931472
        %v4676 = vmul.f32 -0.5, %v4266
        %v4677 = vadd.f32 %v4676, 1.0
        %v4678 = vmul.f32 %v4677, %v4266
        %v4679 = vand.u32 2147483647, %v4266
        %vm4680 = vcmp.lt.f32.partialorder %v4679, 0.0004427343
        %v4681 = vsel %vm4680, %v4678, %v4675
        %v4682 = vadd.f32 %v4268, 1.0
        %v4683 = vlog2.pop %v4682
        %v4684 = vmul.f32 %v4683, 0.6931472
        %v4685 = vmul.f32 -0.5, %v4268
        %v4686 = vadd.f32 %v4685, 1.0
        %v4687 = vmul.f32 %v4686, %v4268
        %v4688 = vand.u32 2147483647, %v4268
        %vm4689 = vcmp.lt.f32.partialorder %v4688, 0.0004427343
        %v4690 = vsel %vm4689, %v4687, %v4684
        %v4691 = vadd.f32 %v4270, 1.0
        %v4692 = vlog2.pop %v4691
        %v4693 = vmul.f32 %v4692, 0.6931472
        %v4694 = vmul.f32 -0.5, %v4270
        %v4695 = vadd.f32 %v4694, 1.0
        %v4696 = vmul.f32 %v4695, %v4270
        %v4697 = vand.u32 2147483647, %v4270
        %vm4698 = vcmp.lt.f32.partialorder %v4697, 0.0004427343
        %v4699 = vsel %vm4698, %v4696, %v4693
        %v4700 = vadd.f32 %v4272, 1.0
        %v4701 = vlog2.pop %v4700
        %v4702 = vmul.f32 %v4701, 0.6931472
        %v4703 = vmul.f32 -0.5, %v4272
        %v4704 = vadd.f32 %v4703, 1.0
        %v4705 = vmul.f32 %v4704, %v4272
        %v4706 = vand.u32 2147483647, %v4272
        %vm4707 = vcmp.lt.f32.partialorder %v4706, 0.0004427343
        %v4708 = vsel %vm4707, %v4705, %v4702
        %v4709 = vadd.f32 %v4274, 1.0
        %v4710 = vlog2.pop %v4709
        %v4711 = vmul.f32 %v4710, 0.6931472
        %v4712 = vmul.f32 -0.5, %v4274
        %v4713 = vadd.f32 %v4712, 1.0
        %v4714 = vmul.f32 %v4713, %v4274
        %v4715 = vand.u32 2147483647, %v4274
        %vm4716 = vcmp.lt.f32.partialorder %v4715, 0.0004427343
        %v4717 = vsel %vm4716, %v4714, %v4711
        %v4718 = vadd.f32 %v4276, 1.0
        %v4719 = vlog2.pop %v4718
        %v4720 = vmul.f32 %v4719, 0.6931472
        %v4721 = vmul.f32 -0.5, %v4276
        %v4722 = vadd.f32 %v4721, 1.0
        %v4723 = vmul.f32 %v4722, %v4276
        %v4724 = vand.u32 2147483647, %v4276
        %vm4725 = vcmp.lt.f32.partialorder %v4724, 0.0004427343
        %v4726 = vsel %vm4725, %v4723, %v4720
        %v4727 = vadd.f32 %v4278, 1.0
        %v4728 = vlog2.pop %v4727
        %v4729 = vmul.f32 %v4728, 0.6931472
        %v4730 = vmul.f32 -0.5, %v4278
        %v4731 = vadd.f32 %v4730, 1.0
        %v4732 = vmul.f32 %v4731, %v4278
        %v4733 = vand.u32 2147483647, %v4278
        %vm4734 = vcmp.lt.f32.partialorder %v4733, 0.0004427343
        %v4735 = vsel %vm4734, %v4732, %v4729
        %v4736 = vadd.f32 %v4280, 1.0
        %v4737 = vlog2.pop %v4736
        %v4738 = vmul.f32 %v4737, 0.6931472
        %v4739 = vmul.f32 -0.5, %v4280
        %v4740 = vadd.f32 %v4739, 1.0
        %v4741 = vmul.f32 %v4740, %v4280
        %v4742 = vand.u32 2147483647, %v4280
        %vm4743 = vcmp.lt.f32.partialorder %v4742, 0.0004427343
        %v4744 = vsel %vm4743, %v4741, %v4738
        %v4745 = vadd.f32 %v4282, 1.0
        %v4746 = vlog2.pop %v4745
        %v4747 = vmul.f32 %v4746, 0.6931472
        %v4748 = vmul.f32 -0.5, %v4282
        %v4749 = vadd.f32 %v4748, 1.0
        %v4750 = vmul.f32 %v4749, %v4282
        %v4751 = vand.u32 2147483647, %v4282
        %vm4752 = vcmp.lt.f32.partialorder %v4751, 0.0004427343
        %v4753 = vsel %vm4752, %v4750, %v4747
        %v4754 = vadd.f32 %v4284, 1.0
        %v4755 = vlog2.pop %v4754
        %v4756 = vmul.f32 %v4755, 0.6931472
        %v4757 = vmul.f32 -0.5, %v4284
        %v4758 = vadd.f32 %v4757, 1.0
        %v4759 = vmul.f32 %v4758, %v4284
        %v4760 = vand.u32 2147483647, %v4284
        %vm4761 = vcmp.lt.f32.partialorder %v4760, 0.0004427343
        %v4762 = vsel %vm4761, %v4759, %v4756
        %v4763 = vadd.f32 %v4286, 1.0
        %v4764 = vlog2.pop %v4763
        %v4765 = vmul.f32 %v4764, 0.6931472
        %v4766 = vmul.f32 -0.5, %v4286
        %v4767 = vadd.f32 %v4766, 1.0
        %v4768 = vmul.f32 %v4767, %v4286
        %v4769 = vand.u32 2147483647, %v4286
        %vm4770 = vcmp.lt.f32.partialorder %v4769, 0.0004427343
        %v4771 = vsel %vm4770, %v4768, %v4765
        %v4772 = vadd.f32 %v4288, 1.0
        %v4773 = vlog2.pop %v4772
        %v4774 = vmul.f32 %v4773, 0.6931472
        %v4775 = vmul.f32 -0.5, %v4288
        %v4776 = vadd.f32 %v4775, 1.0
        %v4777 = vmul.f32 %v4776, %v4288
        %v4778 = vand.u32 2147483647, %v4288
        %vm4779 = vcmp.lt.f32.partialorder %v4778, 0.0004427343
        %v4780 = vsel %vm4779, %v4777, %v4774
        %v4781 = vadd.f32 %v4290, 1.0
        %v4782 = vlog2.pop %v4781
        %v4783 = vmul.f32 %v4782, 0.6931472
        %v4784 = vmul.f32 -0.5, %v4290
        %v4785 = vadd.f32 %v4784, 1.0
        %v4786 = vmul.f32 %v4785, %v4290
        %v4787 = vand.u32 2147483647, %v4290
        %vm4788 = vcmp.lt.f32.partialorder %v4787, 0.0004427343
        %v4789 = vsel %vm4788, %v4786, %v4783
        %v4790 = vadd.f32 %v4292, 1.0
        %v4791 = vlog2.pop %v4790
        %v4792 = vmul.f32 %v4791, 0.6931472
        %v4793 = vmul.f32 -0.5, %v4292
        %v4794 = vadd.f32 %v4793, 1.0
        %v4795 = vmul.f32 %v4794, %v4292
        %v4796 = vand.u32 2147483647, %v4292
        %vm4797 = vcmp.lt.f32.partialorder %v4796, 0.0004427343
        %v4798 = vsel %vm4797, %v4795, %v4792
        %v4799 = vadd.f32 %v4294, 1.0
        %v4800 = vlog2.pop %v4799
        %v4801 = vmul.f32 %v4800, 0.6931472
        %v4802 = vmul.f32 -0.5, %v4294
        %v4803 = vadd.f32 %v4802, 1.0
        %v4804 = vmul.f32 %v4803, %v4294
        %v4805 = vand.u32 2147483647, %v4294
        %vm4806 = vcmp.lt.f32.partialorder %v4805, 0.0004427343
        %v4807 = vsel %vm4806, %v4804, %v4801
        %v4808 = vadd.f32 %v4296, 1.0
        %v4809 = vlog2.pop %v4808
        %v4810 = vmul.f32 %v4809, 0.6931472
        %v4811 = vmul.f32 -0.5, %v4296
        %v4812 = vadd.f32 %v4811, 1.0
        %v4813 = vmul.f32 %v4812, %v4296
        %v4814 = vand.u32 2147483647, %v4296
        %vm4815 = vcmp.lt.f32.partialorder %v4814, 0.0004427343
        %v4816 = vsel %vm4815, %v4813, %v4810
        %v4817 = vadd.f32 %v4298, 1.0
        %v4818 = vlog2.pop %v4817
        %v4819 = vmul.f32 %v4818, 0.6931472
        %v4820 = vmul.f32 -0.5, %v4298
        %v4821 = vadd.f32 %v4820, 1.0
        %v4822 = vmul.f32 %v4821, %v4298
        %v4823 = vand.u32 2147483647, %v4298
        %vm4824 = vcmp.lt.f32.partialorder %v4823, 0.0004427343
        %v4825 = vsel %vm4824, %v4822, %v4819
        %v4826 = vadd.f32 %v4300, 1.0
        %v4827 = vlog2.pop %v4826
        %v4828 = vmul.f32 %v4827, 0.6931472
        %v4829 = vmul.f32 -0.5, %v4300
        %v4830 = vadd.f32 %v4829, 1.0
        %v4831 = vmul.f32 %v4830, %v4300
        %v4832 = vand.u32 2147483647, %v4300
        %vm4833 = vcmp.lt.f32.partialorder %v4832, 0.0004427343
        %v4834 = vsel %vm4833, %v4831, %v4828
        %v4835 = vadd.f32 %v4302, 1.0
        %v4836 = vlog2.pop %v4835
        %v4837 = vmul.f32 %v4836, 0.6931472
        %v4838 = vmul.f32 -0.5, %v4302
        %v4839 = vadd.f32 %v4838, 1.0
        %v4840 = vmul.f32 %v4839, %v4302
        %v4841 = vand.u32 2147483647, %v4302
        %vm4842 = vcmp.lt.f32.partialorder %v4841, 0.0004427343
        %v4843 = vsel %vm4842, %v4840, %v4837
        %v4844 = vadd.f32 %v4304, 1.0
        %v4845 = vlog2.pop %v4844
        %v4846 = vmul.f32 %v4845, 0.6931472
        %v4847 = vmul.f32 -0.5, %v4304
        %v4848 = vadd.f32 %v4847, 1.0
        %v4849 = vmul.f32 %v4848, %v4304
        %v4850 = vand.u32 2147483647, %v4304
        %vm4851 = vcmp.lt.f32.partialorder %v4850, 0.0004427343
        %v4852 = vsel %vm4851, %v4849, %v4846
        %v4853 = vadd.f32 %v4306, 1.0
        %v4854 = vlog2.pop %v4853
        %v4855 = vmul.f32 %v4854, 0.6931472
        %v4856 = vmul.f32 -0.5, %v4306
        %v4857 = vadd.f32 %v4856, 1.0
        %v4858 = vmul.f32 %v4857, %v4306
        %v4859 = vand.u32 2147483647, %v4306
        %vm4860 = vcmp.lt.f32.partialorder %v4859, 0.0004427343
        %v4861 = vsel %vm4860, %v4858, %v4855
        %v4862 = vadd.f32 %v4308, 1.0
        %v4863 = vlog2.pop %v4862
        %v4864 = vmul.f32 %v4863, 0.6931472
        %v4865 = vmul.f32 -0.5, %v4308
        %v4866 = vadd.f32 %v4865, 1.0
        %v4867 = vmul.f32 %v4866, %v4308
        %v4868 = vand.u32 2147483647, %v4308
        %vm4869 = vcmp.lt.f32.partialorder %v4868, 0.0004427343
        %v4870 = vsel %vm4869, %v4867, %v4864
        %v4871 = vadd.f32 %v4310, 1.0
        %v4872 = vlog2.pop %v4871
        %v4873 = vmul.f32 %v4872, 0.6931472
        %v4874 = vmul.f32 -0.5, %v4310
        %v4875 = vadd.f32 %v4874, 1.0
        %v4876 = vmul.f32 %v4875, %v4310
        %v4877 = vand.u32 2147483647, %v4310
        %vm4878 = vcmp.lt.f32.partialorder %v4877, 0.0004427343
        %v4879 = vsel %vm4878, %v4876, %v4873
        %v4880 = vadd.f32 %v4312, 1.0
        %v4881 = vlog2.pop %v4880
        %v4882 = vmul.f32 %v4881, 0.6931472
        %v4883 = vmul.f32 -0.5, %v4312
        %v4884 = vadd.f32 %v4883, 1.0
        %v4885 = vmul.f32 %v4884, %v4312
        %v4886 = vand.u32 2147483647, %v4312
        %vm4887 = vcmp.lt.f32.partialorder %v4886, 0.0004427343
        %v4888 = vsel %vm4887, %v4885, %v4882
        %v4889 = vadd.f32 %v3993, %v4321
        %v4890 = vadd.f32 %v3994, %v4330
        %v4891 = vadd.f32 %v3995, %v4339
        %v4892 = vadd.f32 %v3996, %v4348
        %v4893 = vadd.f32 %v3997, %v4357
        %v4894 = vadd.f32 %v3998, %v4366
        %v4895 = vadd.f32 %v3999, %v4375
        %v4896 = vadd.f32 %v4000, %v4384
        %v4897 = vadd.f32 %v4001, %v4393
        %v4898 = vadd.f32 %v4002, %v4402
        %v4899 = vadd.f32 %v4003, %v4411
        %v4900 = vadd.f32 %v4004, %v4420
        %v4901 = vadd.f32 %v4005, %v4429
        %v4902 = vadd.f32 %v4006, %v4438
        %v4903 = vadd.f32 %v4007, %v4447
        %v4904 = vadd.f32 %v4008, %v4456
        %v4905 = vadd.f32 %v4009, %v4465
        %v4906 = vadd.f32 %v4010, %v4474
        %v4907 = vadd.f32 %v4011, %v4483
        %v4908 = vadd.f32 %v4012, %v4492
        %v4909 = vadd.f32 %v4013, %v4501
        %v4910 = vadd.f32 %v4014, %v4510
        %v4911 = vadd.f32 %v4015, %v4519
        %v4912 = vadd.f32 %v4016, %v4528
        %v4913 = vadd.f32 %v4017, %v4537
        %v4914 = vadd.f32 %v4018, %v4546
        %v4915 = vadd.f32 %v4019, %v4555
        %v4916 = vadd.f32 %v4020, %v4564
        %v4917 = vadd.f32 %v4021, %v4573
        %v4918 = vadd.f32 %v4022, %v4582
        %v4919 = vadd.f32 %v4023, %v4591
        %v4920 = vadd.f32 %v4024, %v4600
        %v4921 = vadd.f32 %v4025, %v4609
        %v4922 = vadd.f32 %v4026, %v4618
        %v4923 = vadd.f32 %v4027, %v4627
        %v4924 = vadd.f32 %v4028, %v4636
        %v4925 = vadd.f32 %v4029, %v4645
        %v4926 = vadd.f32 %v4030, %v4654
        %v4927 = vadd.f32 %v4031, %v4663
        %v4928 = vadd.f32 %v4032, %v4672
        %v4929 = vadd.f32 %v4033, %v4681
        %v4930 = vadd.f32 %v4034, %v4690
        %v4931 = vadd.f32 %v4035, %v4699
        %v4932 = vadd.f32 %v4036, %v4708
        %v4933 = vadd.f32 %v4037, %v4717
        %v4934 = vadd.f32 %v4038, %v4726
        %v4935 = vadd.f32 %v4039, %v4735
        %v4936 = vadd.f32 %v4040, %v4744
        %v4937 = vadd.f32 %v4041, %v4753
        %v4938 = vadd.f32 %v4042, %v4762
        %v4939 = vadd.f32 %v4043, %v4771
        %v4940 = vadd.f32 %v4044, %v4780
        %v4941 = vadd.f32 %v4045, %v4789
        %v4942 = vadd.f32 %v4046, %v4798
        %v4943 = vadd.f32 %v4047, %v4807
        %v4944 = vadd.f32 %v4048, %v4816
        %v4945 = vadd.f32 %v4049, %v4825
        %v4946 = vadd.f32 %v4050, %v4834
        %v4947 = vadd.f32 %v4051, %v4843
        %v4948 = vadd.f32 %v4052, %v4852
        %v4949 = vadd.f32 %v4053, %v4861
        %v4950 = vadd.f32 %v4054, %v4870
        %v4951 = vadd.f32 %v4055, %v4879
        %v4952 = vadd.f32 %v4056, %v4888
        %v4953 = vmul.f32 %v4889, %v3477
        %v4954 = vmul.f32 %v4890, %v3478
        %v4955 = vmul.f32 %v4891, %v3479
        %v4956 = vmul.f32 %v4892, %v3480
        %v4957 = vmul.f32 %v4893, %v3481
        %v4958 = vmul.f32 %v4894, %v3482
        %v4959 = vmul.f32 %v4895, %v3483
        %v4960 = vmul.f32 %v4896, %v3484
        %v4961 = vmul.f32 %v4897, %v3485
        %v4962 = vmul.f32 %v4898, %v3486
        %v4963 = vmul.f32 %v4899, %v3487
        %v4964 = vmul.f32 %v4900, %v3488
        %v4965 = vmul.f32 %v4901, %v3489
        %v4966 = vmul.f32 %v4902, %v3490
        %v4967 = vmul.f32 %v4903, %v3491
        %v4968 = vmul.f32 %v4904, %v3492
        %v4969 = vmul.f32 %v4905, %v3493
        %v4970 = vmul.f32 %v4906, %v3494
        %v4971 = vmul.f32 %v4907, %v3495
        %v4972 = vmul.f32 %v4908, %v3496
        %v4973 = vmul.f32 %v4909, %v3497
        %v4974 = vmul.f32 %v4910, %v3498
        %v4975 = vmul.f32 %v4911, %v3499
        %v4976 = vmul.f32 %v4912, %v3500
        %v4977 = vmul.f32 %v4913, %v3501
        %v4978 = vmul.f32 %v4914, %v3502
        %v4979 = vmul.f32 %v4915, %v3503
        %v4980 = vmul.f32 %v4916, %v3504
        %v4981 = vmul.f32 %v4917, %v3505
        %v4982 = vmul.f32 %v4918, %v3506
        %v4983 = vmul.f32 %v4919, %v3507
        %v4984 = vmul.f32 %v4920, %v3508
        %v4985 = vmul.f32 %v4921, %v3509
        %v4986 = vmul.f32 %v4922, %v3510
        %v4987 = vmul.f32 %v4923, %v3511
        %v4988 = vmul.f32 %v4924, %v3512
        %v4989 = vmul.f32 %v4925, %v3513
        %v4990 = vmul.f32 %v4926, %v3514
        %v4991 = vmul.f32 %v4927, %v3515
        %v4992 = vmul.f32 %v4928, %v3516
        %v4993 = vmul.f32 %v4929, %v3517
        %v4994 = vmul.f32 %v4930, %v3518
        %v4995 = vmul.f32 %v4931, %v3519
        %v4996 = vmul.f32 %v4932, %v3520
        %v4997 = vmul.f32 %v4933, %v3521
        %v4998 = vmul.f32 %v4934, %v3522
        %v4999 = vmul.f32 %v4935, %v3523
        %v5000 = vmul.f32 %v4936, %v3524
        %v5001 = vmul.f32 %v4937, %v3525
        %v5002 = vmul.f32 %v4938, %v3526
        %v5003 = vmul.f32 %v4939, %v3527
        %v5004 = vmul.f32 %v4940, %v3528
        %v5005 = vmul.f32 %v4941, %v3529
        %v5006 = vmul.f32 %v4942, %v3530
        %v5007 = vmul.f32 %v4943, %v3531
        %v5008 = vmul.f32 %v4944, %v3532
        %v5009 = vmul.f32 %v4945, %v3533
        %v5010 = vmul.f32 %v4946, %v3534
        %v5011 = vmul.f32 %v4947, %v3535
        %v5012 = vmul.f32 %v4948, %v3536
        %v5013 = vmul.f32 %v4949, %v3537
        %v5014 = vmul.f32 %v4950, %v3538
        %v5015 = vmul.f32 %v4951, %v3539
        %v5016 = vmul.f32 %v4952, %v3540
        %vm5017 = vcmask 7168
        %v5018 = vsel %vm5017, %v4953, 0.0
        %v5019 = vsel %vm5017, %v4954, 0.0
        %v5020 = vadd.f32 %v5018, %v5019
        %v5021 = vsel %vm5017, %v4955, 0.0
        %v5022 = vadd.f32 %v5020, %v5021
        %v5023 = vsel %vm5017, %v4956, 0.0
        %v5024 = vadd.f32 %v5022, %v5023
        %v5025 = vsel %vm5017, %v4957, 0.0
        %v5026 = vadd.f32 %v5024, %v5025
        %v5027 = vsel %vm5017, %v4958, 0.0
        %v5028 = vadd.f32 %v5026, %v5027
        %v5029 = vsel %vm5017, %v4959, 0.0
        %v5030 = vadd.f32 %v5028, %v5029
        %v5031 = vsel %vm5017, %v4960, 0.0
        %v5032 = vadd.f32 %v5030, %v5031
        %v5033 = vsel %vm5017, %v4961, 0.0
        %v5034 = vadd.f32 %v5032, %v5033
        %v5035 = vsel %vm5017, %v4962, 0.0
        %v5036 = vadd.f32 %v5034, %v5035
        %v5037 = vsel %vm5017, %v4963, 0.0
        %v5038 = vadd.f32 %v5036, %v5037
        %v5039 = vsel %vm5017, %v4964, 0.0
        %v5040 = vadd.f32 %v5038, %v5039
        %v5041 = vsel %vm5017, %v4965, 0.0
        %v5042 = vadd.f32 %v5040, %v5041
        %v5043 = vsel %vm5017, %v4966, 0.0
        %v5044 = vadd.f32 %v5042, %v5043
        %v5045 = vsel %vm5017, %v4967, 0.0
        %v5046 = vadd.f32 %v5044, %v5045
        %v5047 = vsel %vm5017, %v4968, 0.0
        %v5048 = vadd.f32 %v5046, %v5047
        %v5049 = vsel %vm5017, %v4969, 0.0
        %v5050 = vadd.f32 %v5048, %v5049
        %v5051 = vsel %vm5017, %v4970, 0.0
        %v5052 = vadd.f32 %v5050, %v5051
        %v5053 = vsel %vm5017, %v4971, 0.0
        %v5054 = vadd.f32 %v5052, %v5053
        %v5055 = vsel %vm5017, %v4972, 0.0
        %v5056 = vadd.f32 %v5054, %v5055
        %v5057 = vsel %vm5017, %v4973, 0.0
        %v5058 = vadd.f32 %v5056, %v5057
        %v5059 = vsel %vm5017, %v4974, 0.0
        %v5060 = vadd.f32 %v5058, %v5059
        %v5061 = vsel %vm5017, %v4975, 0.0
        %v5062 = vadd.f32 %v5060, %v5061
        %v5063 = vsel %vm5017, %v4976, 0.0
        %v5064 = vadd.f32 %v5062, %v5063
        %v5065 = vsel %vm5017, %v4977, 0.0
        %v5066 = vadd.f32 %v5064, %v5065
        %v5067 = vsel %vm5017, %v4978, 0.0
        %v5068 = vadd.f32 %v5066, %v5067
        %v5069 = vsel %vm5017, %v4979, 0.0
        %v5070 = vadd.f32 %v5068, %v5069
        %v5071 = vsel %vm5017, %v4980, 0.0
        %v5072 = vadd.f32 %v5070, %v5071
        %v5073 = vsel %vm5017, %v4981, 0.0
        %v5074 = vadd.f32 %v5072, %v5073
        %v5075 = vsel %vm5017, %v4982, 0.0
        %v5076 = vadd.f32 %v5074, %v5075
        %v5077 = vsel %vm5017, %v4983, 0.0
        %v5078 = vadd.f32 %v5076, %v5077
        %v5079 = vsel %vm5017, %v4984, 0.0
        %v5080 = vadd.f32 %v5078, %v5079
        %v5081 = vsel %vm5017, %v4985, 0.0
        %v5082 = vadd.f32 %v5080, %v5081
        %v5083 = vsel %vm5017, %v4986, 0.0
        %v5084 = vadd.f32 %v5082, %v5083
        %v5085 = vsel %vm5017, %v4987, 0.0
        %v5086 = vadd.f32 %v5084, %v5085
        %v5087 = vsel %vm5017, %v4988, 0.0
        %v5088 = vadd.f32 %v5086, %v5087
        %v5089 = vsel %vm5017, %v4989, 0.0
        %v5090 = vadd.f32 %v5088, %v5089
        %v5091 = vsel %vm5017, %v4990, 0.0
        %v5092 = vadd.f32 %v5090, %v5091
        %v5093 = vsel %vm5017, %v4991, 0.0
        %v5094 = vadd.f32 %v5092, %v5093
        %v5095 = vsel %vm5017, %v4992, 0.0
        %v5096 = vadd.f32 %v5094, %v5095
        %v5097 = vsel %vm5017, %v4993, 0.0
        %v5098 = vadd.f32 %v5096, %v5097
        %v5099 = vsel %vm5017, %v4994, 0.0
        %v5100 = vadd.f32 %v5098, %v5099
        %v5101 = vsel %vm5017, %v4995, 0.0
        %v5102 = vadd.f32 %v5100, %v5101
        %v5103 = vsel %vm5017, %v4996, 0.0
        %v5104 = vadd.f32 %v5102, %v5103
        %v5105 = vsel %vm5017, %v4997, 0.0
        %v5106 = vadd.f32 %v5104, %v5105
        %v5107 = vsel %vm5017, %v4998, 0.0
        %v5108 = vadd.f32 %v5106, %v5107
        %v5109 = vsel %vm5017, %v4999, 0.0
        %v5110 = vadd.f32 %v5108, %v5109
        %v5111 = vsel %vm5017, %v5000, 0.0
        %v5112 = vadd.f32 %v5110, %v5111
        %v5113 = vsel %vm5017, %v5001, 0.0
        %v5114 = vadd.f32 %v5112, %v5113
        %v5115 = vsel %vm5017, %v5002, 0.0
        %v5116 = vadd.f32 %v5114, %v5115
        %v5117 = vsel %vm5017, %v5003, 0.0
        %v5118 = vadd.f32 %v5116, %v5117
        %v5119 = vsel %vm5017, %v5004, 0.0
        %v5120 = vadd.f32 %v5118, %v5119
        %v5121 = vsel %vm5017, %v5005, 0.0
        %v5122 = vadd.f32 %v5120, %v5121
        %v5123 = vsel %vm5017, %v5006, 0.0
        %v5124 = vadd.f32 %v5122, %v5123
        %v5125 = vsel %vm5017, %v5007, 0.0
        %v5126 = vadd.f32 %v5124, %v5125
        %v5127 = vsel %vm5017, %v5008, 0.0
        %v5128 = vadd.f32 %v5126, %v5127
        %v5129 = vsel %vm5017, %v5009, 0.0
        %v5130 = vadd.f32 %v5128, %v5129
        %v5131 = vsel %vm5017, %v5010, 0.0
        %v5132 = vadd.f32 %v5130, %v5131
        %v5133 = vsel %vm5017, %v5011, 0.0
        %v5134 = vadd.f32 %v5132, %v5133
        %v5135 = vsel %vm5017, %v5012, 0.0
        %v5136 = vadd.f32 %v5134, %v5135
        %v5137 = vsel %vm5017, %v5013, 0.0
        %v5138 = vadd.f32 %v5136, %v5137
        %v5139 = vsel %vm5017, %v5014, 0.0
        %v5140 = vadd.f32 %v5138, %v5139
        %v5141 = vsel %vm5017, %v5015, 0.0
        %v5142 = vadd.f32 %v5140, %v5141
        %v5143 = vsel %vm5017, %v5016, 0.0
        %v5144 = vadd.f32 %v5142, %v5143
        %5145 = vadd.xlane.f32.xlu0 %v5144
        %v5146 = vpop.xlane.xlu0 %5145
        %v5147 = vrot.slane %v5146, 4
        %v5148 = vadd.f32 %v5146, %v5147
        %v5149 = vrot.slane %v5148, 2
        %v5150 = vadd.f32 %v5148, %v5149
        %v5151 = vrot.slane %v5150, 1
        %v5152 = vadd.f32 %v5150, %v5151
        %s5153 = vtos %v5152
        %v5154 = vsel %vm5017, %v3477, 0.0
        %v5155 = vsel %vm5017, %v3478, 0.0
        %v5156 = vadd.f32 %v5154, %v5155
        %v5157 = vsel %vm5017, %v3479, 0.0
        %v5158 = vadd.f32 %v5156, %v5157
        %v5159 = vsel %vm5017, %v3480, 0.0
        %v5160 = vadd.f32 %v5158, %v5159
        %v5161 = vsel %vm5017, %v3481, 0.0
        %v5162 = vadd.f32 %v5160, %v5161
        %v5163 = vsel %vm5017, %v3482, 0.0
        %v5164 = vadd.f32 %v5162, %v5163
        %v5165 = vsel %vm5017, %v3483, 0.0
        %v5166 = vadd.f32 %v5164, %v5165
        %v5167 = vsel %vm5017, %v3484, 0.0
        %v5168 = vadd.f32 %v5166, %v5167
        %v5169 = vsel %vm5017, %v3485, 0.0
        %v5170 = vadd.f32 %v5168, %v5169
        %v5171 = vsel %vm5017, %v3486, 0.0
        %v5172 = vadd.f32 %v5170, %v5171
        %v5173 = vsel %vm5017, %v3487, 0.0
        %v5174 = vadd.f32 %v5172, %v5173
        %v5175 = vsel %vm5017, %v3488, 0.0
        %v5176 = vadd.f32 %v5174, %v5175
        %v5177 = vsel %vm5017, %v3489, 0.0
        %v5178 = vadd.f32 %v5176, %v5177
        %v5179 = vsel %vm5017, %v3490, 0.0
        %v5180 = vadd.f32 %v5178, %v5179
        %v5181 = vsel %vm5017, %v3491, 0.0
        %v5182 = vadd.f32 %v5180, %v5181
        %v5183 = vsel %vm5017, %v3492, 0.0
        %v5184 = vadd.f32 %v5182, %v5183
        %v5185 = vsel %vm5017, %v3493, 0.0
        %v5186 = vadd.f32 %v5184, %v5185
        %v5187 = vsel %vm5017, %v3494, 0.0
        %v5188 = vadd.f32 %v5186, %v5187
        %v5189 = vsel %vm5017, %v3495, 0.0
        %v5190 = vadd.f32 %v5188, %v5189
        %v5191 = vsel %vm5017, %v3496, 0.0
        %v5192 = vadd.f32 %v5190, %v5191
        %v5193 = vsel %vm5017, %v3497, 0.0
        %v5194 = vadd.f32 %v5192, %v5193
        %v5195 = vsel %vm5017, %v3498, 0.0
        %v5196 = vadd.f32 %v5194, %v5195
        %v5197 = vsel %vm5017, %v3499, 0.0
        %v5198 = vadd.f32 %v5196, %v5197
        %v5199 = vsel %vm5017, %v3500, 0.0
        %v5200 = vadd.f32 %v5198, %v5199
        %v5201 = vsel %vm5017, %v3501, 0.0
        %v5202 = vadd.f32 %v5200, %v5201
        %v5203 = vsel %vm5017, %v3502, 0.0
        %v5204 = vadd.f32 %v5202, %v5203
        %v5205 = vsel %vm5017, %v3503, 0.0
        %v5206 = vadd.f32 %v5204, %v5205
        %v5207 = vsel %vm5017, %v3504, 0.0
        %v5208 = vadd.f32 %v5206, %v5207
        %v5209 = vsel %vm5017, %v3505, 0.0
        %v5210 = vadd.f32 %v5208, %v5209
        %v5211 = vsel %vm5017, %v3506, 0.0
        %v5212 = vadd.f32 %v5210, %v5211
        %v5213 = vsel %vm5017, %v3507, 0.0
        %v5214 = vadd.f32 %v5212, %v5213
        %v5215 = vsel %vm5017, %v3508, 0.0
        %v5216 = vadd.f32 %v5214, %v5215
        %v5217 = vsel %vm5017, %v3509, 0.0
        %v5218 = vadd.f32 %v5216, %v5217
        %v5219 = vsel %vm5017, %v3510, 0.0
        %v5220 = vadd.f32 %v5218, %v5219
        %v5221 = vsel %vm5017, %v3511, 0.0
        %v5222 = vadd.f32 %v5220, %v5221
        %v5223 = vsel %vm5017, %v3512, 0.0
        %v5224 = vadd.f32 %v5222, %v5223
        %v5225 = vsel %vm5017, %v3513, 0.0
        %v5226 = vadd.f32 %v5224, %v5225
        %v5227 = vsel %vm5017, %v3514, 0.0
        %v5228 = vadd.f32 %v5226, %v5227
        %v5229 = vsel %vm5017, %v3515, 0.0
        %v5230 = vadd.f32 %v5228, %v5229
        %v5231 = vsel %vm5017, %v3516, 0.0
        %v5232 = vadd.f32 %v5230, %v5231
        %v5233 = vsel %vm5017, %v3517, 0.0
        %v5234 = vadd.f32 %v5232, %v5233
        %v5235 = vsel %vm5017, %v3518, 0.0
        %v5236 = vadd.f32 %v5234, %v5235
        %v5237 = vsel %vm5017, %v3519, 0.0
        %v5238 = vadd.f32 %v5236, %v5237
        %v5239 = vsel %vm5017, %v3520, 0.0
        %v5240 = vadd.f32 %v5238, %v5239
        %v5241 = vsel %vm5017, %v3521, 0.0
        %v5242 = vadd.f32 %v5240, %v5241
        %v5243 = vsel %vm5017, %v3522, 0.0
        %v5244 = vadd.f32 %v5242, %v5243
        %v5245 = vsel %vm5017, %v3523, 0.0
        %v5246 = vadd.f32 %v5244, %v5245
        %v5247 = vsel %vm5017, %v3524, 0.0
        %v5248 = vadd.f32 %v5246, %v5247
        %v5249 = vsel %vm5017, %v3525, 0.0
        %v5250 = vadd.f32 %v5248, %v5249
        %v5251 = vsel %vm5017, %v3526, 0.0
        %v5252 = vadd.f32 %v5250, %v5251
        %v5253 = vsel %vm5017, %v3527, 0.0
        %v5254 = vadd.f32 %v5252, %v5253
        %v5255 = vsel %vm5017, %v3528, 0.0
        %v5256 = vadd.f32 %v5254, %v5255
        %v5257 = vsel %vm5017, %v3529, 0.0
        %v5258 = vadd.f32 %v5256, %v5257
        %v5259 = vsel %vm5017, %v3530, 0.0
        %v5260 = vadd.f32 %v5258, %v5259
        %v5261 = vsel %vm5017, %v3531, 0.0
        %v5262 = vadd.f32 %v5260, %v5261
        %v5263 = vsel %vm5017, %v3532, 0.0
        %v5264 = vadd.f32 %v5262, %v5263
        %v5265 = vsel %vm5017, %v3533, 0.0
        %v5266 = vadd.f32 %v5264, %v5265
        %v5267 = vsel %vm5017, %v3534, 0.0
        %v5268 = vadd.f32 %v5266, %v5267
        %v5269 = vsel %vm5017, %v3535, 0.0
        %v5270 = vadd.f32 %v5268, %v5269
        %v5271 = vsel %vm5017, %v3536, 0.0
        %v5272 = vadd.f32 %v5270, %v5271
        %v5273 = vsel %vm5017, %v3537, 0.0
        %v5274 = vadd.f32 %v5272, %v5273
        %v5275 = vsel %vm5017, %v3538, 0.0
        %v5276 = vadd.f32 %v5274, %v5275
        %v5277 = vsel %vm5017, %v3539, 0.0
        %v5278 = vadd.f32 %v5276, %v5277
        %v5279 = vsel %vm5017, %v3540, 0.0
        %v5280 = vadd.f32 %v5278, %v5279
        %5281 = vadd.xlane.f32.xlu0 %v5280
        %v5282 = vpop.xlane.xlu0 %5281
        %v5283 = vrot.slane %v5282, 4
        %v5284 = vadd.f32 %v5282, %v5283
        %v5285 = vrot.slane %v5284, 2
        %v5286 = vadd.f32 %v5284, %v5285
        %v5287 = vrot.slane %v5286, 1
        %v5288 = vadd.f32 %v5286, %v5287
        %s5289 = vtos %v5288
        %v5290 = vlaneseq
        %v5291 = vshrl.u32 %v5290, 7
        %vm5292 = vcmp.eq.s32.totalorder %v5291, 0
        %vm5293 = vcmp.eq.s32.totalorder %v5291, 1
        %v5294 = vstv %s5289
        %v5295 = vsel %vm5293, %v5294, 0.0
        %v5296 = vstv %s5153
        %v5297 = vsel %vm5292, %v5296, %v5295
        %5298 = vst [vmem:[%s243] sm:$0xff] %v5297
        %s5299 = smul.u32 64, %s21
        %p5300 = scmp.lt.s32.totalorder %s5299, 127
        %s5301 = scalar_select %p5300, %s5299, 127
        %s5302 = smul.addr %s5301, 8
        %s5303 = scalar_lea.vmem %s4, %s5302
        %s5304 = sand.u32 %s149, 1
        %s5305 = scalar_lea.sflag [#allocation4], %s5304
        %s5306 = sand.u32 %s149, 1
        %s5307 = smul.addr %s5306, 8
        %s5308 = scalar_lea.vmem [#allocation3], %s5307
        // Predicated region
        $region37: #{tpu_custom_call.1} parent=35 // pred_check
          %p5309 = pneg %p133
        $region38: #{tpu_custom_call.1} parent=35 // pred_check_branch
          %5311 = sbr.rel (%p5309) target = $region40
        $region39: #{tpu_custom_call.1} parent=35 // pred_region
          %s5312 = smul.u32 64, %s21
        $region40: #{tpu_custom_call.1} parent=35 // pred_fallthru
          _
        // Predicated region
        $region41: #{tpu_custom_call.1} parent=35 // pred_check
          %p5313 = pneg %p159
        $region42: #{tpu_custom_call.1} parent=35 // pred_check_branch
          %5315 = sbr.rel (%p5313) target = $region44
        $region43: #{tpu_custom_call.1} parent=35 // pred_region
          %5317 = vsyncadd %s5305, 0
          %s5318 = smul.addr %s21, 8
          %s5319 = scalar_lea.hbm %s5, %s5318
          %s5321 = sshll.u32 %s5308, 4
          %s5322 = int_to_ptr.vmem [resolvable:$true] %s5321
          %s5323 = sshll.u32 %s5319, 4
          %s5324 = int_to_ptr.hbm [resolvable:$true] %s5323
          %5326 = dma.vmem_to_hbm [thread:$0]  %s5322, 128, %s5324, %s5305
        $region44: #{tpu_custom_call.1} parent=35 // pred_fallthru
          _
      $region36: #{tpu_custom_call.1} parent=5 // pred_fallthru
        _
      %p5327 = scmp.le.s32.totalorder 2, %s16
      // Predicated region
      $region45: #{tpu_custom_call.1} parent=5 // pred_check
        %p5328 = pneg %p5327
      $region46: #{tpu_custom_call.1} parent=5 // pred_check_branch
        %5330 = sbr.rel (%p5328) target = $region48
      $region47: #{tpu_custom_call.1} parent=5 // pred_region
        %s5331 = ssub.s32 %s16, 2
        // Predicated region
        $region49: #{tpu_custom_call.1} parent=47 // pred_check
          %p5332 = pneg %p139
        $region50: #{tpu_custom_call.1} parent=47 // pred_check_branch
          %5334 = sbr.rel (%p5332) target = $region52
        $region51: #{tpu_custom_call.1} parent=47 // pred_region
          %s5335 = smul.u32 64, %s22
          %p5336 = scmp.lt.s32.totalorder %s5335, 127
          %s5337 = scalar_select %p5336, %s5335, 127
          %s5338 = smul.addr %s5337, 8
          %s5339 = scalar_lea.vmem %s4, %s5338
        $region52: #{tpu_custom_call.1} parent=47 // pred_fallthru
          _
        // Predicated region
        $region53: #{tpu_custom_call.1} parent=47 // pred_check
          %p5340 = pneg %p165
        $region54: #{tpu_custom_call.1} parent=47 // pred_check_branch
          %5342 = sbr.rel (%p5340) target = $region56
        $region55: #{tpu_custom_call.1} parent=47 // pred_region
          %s5343 = sand.u32 %s150, 1
          %s5344 = scalar_lea.sflag [#allocation4], %s5343
          %s5345 = sand.u32 %s150, 1
          %s5346 = smul.addr %s5345, 8
          %s5347 = scalar_lea.vmem [#allocation3], %s5346
          %5349 = dma.done %s5344, 128
        $region56: #{tpu_custom_call.1} parent=47 // pred_fallthru
          _
      $region48: #{tpu_custom_call.1} parent=5 // pred_fallthru
        _
    $region6: #{tpu_custom_call.1} parent=1 // loop_footer
      %s20 = sadd.s32 1, %s16
    $region7: #{tpu_custom_call.1} parent=1 // loop_footer_branch
      %15 = sbr.rel target = $region3
    $region8: #{tpu_custom_call.1} parent=1 // loop_exit
      _
    %5350 = vsyncpa [#allocation4], 1
    %s5351 = scalar_lea.sflag [#allocation4], 1
    %5352 = vsyncpa %s5351, 1

</llo_original>
